<compile_context>
chip_gen: v5e
topology: v5e:2x2
jax: 0.10.0
libtpu: 0.0.40
codegen_flags: <defaults>
</compile_context>

<pallas_src>
import functools

import jax
import jax.numpy as jnp
from jax.experimental import pallas as pl
from jax.experimental.pallas import tpu as pltpu

BN_EPS = 1e-5
COUT_PAD = 128  # lane-dense output width (multiple of 128)


def bag_kernel(p_ref, i_ref, d_ref, w_ref, gamma_ref, beta_ref, o_ref,
               *, N, H, W, C):
    M = N * H * W

    p = p_ref[...]    # (M, C)
    im = i_ref[...]   # (M, C)
    d = d_ref[...]    # (M, C)

    # edge_att = sigmoid(d) computed via tanh (EUP slot, no VPU divide);
    # x = att * p + (1 - att) * i  ==  i + att * (p - i)
    att = 0.5 * jnp.tanh(0.5 * d) + 0.5
    x = im + att * (p - im)                               # (M, C), float32

    # BatchNorm2d, training-mode biased batch statistics over (N, H, W):
    # single fused reduction pass (sum and sum-of-squares), var = E[x^2] - mean^2.
    s1 = jnp.sum(x, axis=0, keepdims=True)                # (1, C)
    s2 = jnp.sum(x * x, axis=0, keepdims=True)            # (1, C)
    inv_m = 1.0 / M
    mean = s1 * inv_m
    var = s2 * inv_m - mean * mean
    scale = gamma_ref[...] * jax.lax.rsqrt(var + BN_EPS)  # (1, C)
    shift = beta_ref[...] - mean * scale                  # (1, C)
    y = jnp.maximum(x * scale + shift, 0.0)               # ReLU, (M, C)

    # Recover spatial structure only for the conv; zero-pad H and W by 1 in registers
    # (no VMEM scratch, no store/reload round trip).
    y4 = y.reshape(N, H, W, C)
    zw = jnp.zeros((N, H, 1, C), jnp.float32)
    yp = jnp.concatenate([zw, y4, zw], axis=2)            # (N, H, W+2, C)
    zh = jnp.zeros((N, 1, W + 2, C), jnp.float32)
    yp = jnp.concatenate([zh, yp, zh], axis=1)            # (N, H+2, W+2, C)

    # im2col: 9 shifted windows concatenated along channels -> one MXU matmul.
    cols = [yp[:, ky:ky + H, kx:kx + W, :]
            for ky in range(3) for kx in range(3)]
    patches = jnp.concatenate(cols, axis=3).reshape(M, 9 * C)   # (M, 9*C)

    acc = jnp.dot(patches, w_ref[...],                    # (M, COUT_PAD)
                  preferred_element_type=jnp.float32)
    o_ref[...] = acc.astype(o_ref.dtype)                  # full-lane, unmasked stores


def bag_forward(p, i, d, conv_w_oihw, gamma, beta):
    """p, i, d: (N, H, W, C) NHWC float32. conv_w_oihw: (Cout, Cin, 3, 3)."""
    N, H, W, C = p.shape
    Cout = conv_w_oihw.shape[0]
    M = N * H * W

    # OIHW -> (ky, kx, Cin, Cout) -> (9*Cin, Cout), zero-padded to COUT_PAD columns
    # so the kernel's output stores are lane-dense (128-wide) and unmasked.
    w_k = jnp.transpose(conv_w_oihw, (2, 3, 1, 0)).reshape(9 * C, Cout)
    w_pad = jnp.zeros((9 * C, COUT_PAD), jnp.float32).at[:, :Cout].set(
        w_k.astype(jnp.float32))

    # Pre-flatten inputs to the 2D shape the blend/BN path wants.
    p2 = p.reshape(M, C).astype(jnp.float32)
    i2 = i.reshape(M, C).astype(jnp.float32)
    d2 = d.reshape(M, C).astype(jnp.float32)
    gamma2 = gamma.reshape(1, C).astype(jnp.float32)
    beta2 = beta.reshape(1, C).astype(jnp.float32)

    cost = pl.CostEstimate(
        flops=2 * M * 9 * C * Cout + 12 * M * C,
        transcendentals=M * C,
        bytes_accessed=4 * (3 * M * C + M * COUT_PAD + 9 * C * COUT_PAD + 2 * C),
    )

    kern = functools.partial(bag_kernel, N=N, H=H, W=W, C=C)
    vmem_spec = pl.BlockSpec(memory_space=pltpu.MemorySpace.VMEM)
    out2d = pl.pallas_call(
        kern,
        out_shape=jax.ShapeDtypeStruct((M, COUT_PAD), jnp.float32),
        in_specs=[vmem_spec] * 6,
        out_specs=vmem_spec,
        cost_estimate=cost,
    )(p2, i2, d2, w_pad, gamma2, beta2)

    return out2d[:, :Cout].reshape(N, H, W, Cout)


def bag_reference(p, i, d, conv_w_oihw, gamma, beta):
    """Pure-JAX reference matching the PyTorch forward (training-mode BN)."""
    att = jax.nn.sigmoid(d)
    x = att * p + (1.0 - att) * i
    mean = x.mean(axis=(0, 1, 2), keepdims=True)
    var = ((x - mean) ** 2).mean(axis=(0, 1, 2), keepdims=True)
    y = (x - mean) / jnp.sqrt(var + BN_EPS) * gamma.reshape(1, 1, 1, -1) \
        + beta.reshape(1, 1, 1, -1)
    y = jnp.maximum(y, 0.0)
    w_hwio = jnp.transpose(conv_w_oihw, (2, 3, 1, 0))
    return jax.lax.conv_general_dilated(
        y, w_hwio, window_strides=(1, 1), padding="SAME",
        dimension_numbers=("NHWC", "HWIO", "NHWC"))


if __name__ == "__main__":
    N, H, W, Cin, Cout = 2, 16, 16, 4, 8

    key = jax.random.PRNGKey(0)
    kp, ki, kd, kw = jax.random.split(key, 4)

    # Inputs (NHWC; corresponds to PyTorch NCHW (2, 4, 16, 16))
    p = jax.random.normal(kp, (N, H, W, Cin), dtype=jnp.float32)
    i = jax.random.normal(ki, (N, H, W, Cin), dtype=jnp.float32)
    d = jax.random.normal(kd, (N, H, W, Cin), dtype=jnp.float32)

    # Parameters per weight_init:
    #   Conv2d: kaiming_normal_(fan_in, relu) -> std = sqrt(2 / (Cin*3*3)), no bias
    #   BatchNorm2d: weight (gamma) = 1, bias (beta) = 0
    fan_in = Cin * 3 * 3
    conv_w = jax.random.normal(kw, (Cout, Cin, 3, 3), dtype=jnp.float32) \
        * jnp.sqrt(2.0 / fan_in)
    gamma = jnp.ones((Cin,), dtype=jnp.float32)
    beta = jnp.zeros((Cin,), dtype=jnp.float32)

    out = jax.block_until_ready(bag_forward(p, i, d, conv_w, gamma, beta))
    ref = jax.block_until_ready(bag_reference(p, i, d, conv_w, gamma, beta))

    assert out.shape == (N, H, W, Cout)
    assert jnp.allclose(out, ref, atol=1e-4, rtol=1e-4), \
        f"max abs err = {jnp.max(jnp.abs(out - ref))}"

    print("KERNEL_OK")
</pallas_src>

<mosaic_0001>
module attributes {stable_mosaic.version = 11 : i64} {
  func.func @bag_kernel(%arg0: memref<512x4xf32, #tpu.memory_space<vmem>>, %arg1: memref<512x4xf32, #tpu.memory_space<vmem>>, %arg2: memref<512x4xf32, #tpu.memory_space<vmem>>, %arg3: memref<36x128xf32, #tpu.memory_space<vmem>>, %arg4: memref<1x4xf32, #tpu.memory_space<vmem>>, %arg5: memref<1x4xf32, #tpu.memory_space<vmem>>, %arg6: memref<512x128xf32, #tpu.memory_space<vmem>>) attributes {dimension_semantics = [], scalar_prefetch = 0 : i64, scratch_operands = 0 : i64, tpu.core_type = #tpu.core_type<tc>} {
    %c0 = arith.constant 0 : index
    %c0_0 = arith.constant 0 : index
    %0 = vector.load %arg0[%c0, %c0_0] : memref<512x4xf32, #tpu.memory_space<vmem>>, vector<512x4xf32>
    %c0_1 = arith.constant 0 : index
    %c0_2 = arith.constant 0 : index
    %1 = vector.load %arg1[%c0_1, %c0_2] : memref<512x4xf32, #tpu.memory_space<vmem>>, vector<512x4xf32>
    %c0_3 = arith.constant 0 : index
    %c0_4 = arith.constant 0 : index
    %2 = vector.load %arg2[%c0_3, %c0_4] : memref<512x4xf32, #tpu.memory_space<vmem>>, vector<512x4xf32>
    %cst = arith.constant 5.000000e-01 : f32
    %3 = vector.broadcast %cst : f32 to vector<512x4xf32>
    %4 = arith.mulf %3, %2 : vector<512x4xf32>
    %5 = math.tanh %4 : vector<512x4xf32>
    %cst_5 = arith.constant 5.000000e-01 : f32
    %6 = vector.broadcast %cst_5 : f32 to vector<512x4xf32>
    %7 = arith.mulf %6, %5 : vector<512x4xf32>
    %cst_6 = arith.constant 5.000000e-01 : f32
    %8 = vector.broadcast %cst_6 : f32 to vector<512x4xf32>
    %9 = arith.addf %7, %8 : vector<512x4xf32>
    %10 = arith.subf %0, %1 : vector<512x4xf32>
    %11 = arith.mulf %9, %10 : vector<512x4xf32>
    %12 = arith.addf %1, %11 : vector<512x4xf32>
    %cst_7 = arith.constant dense<0.000000e+00> : vector<4xf32>
    %13 = vector.multi_reduction <add>, %12, %cst_7 [0] : vector<512x4xf32> to vector<4xf32>
    %14 = vector.shape_cast %13 : vector<4xf32> to vector<1x4xf32>
    %15 = arith.mulf %12, %12 : vector<512x4xf32>
    %cst_8 = arith.constant dense<0.000000e+00> : vector<4xf32>
    %16 = vector.multi_reduction <add>, %15, %cst_8 [0] : vector<512x4xf32> to vector<4xf32>
    %17 = vector.shape_cast %16 : vector<4xf32> to vector<1x4xf32>
    %cst_9 = arith.constant 0.001953125 : f32
    %18 = vector.broadcast %cst_9 : f32 to vector<1x4xf32>
    %19 = arith.mulf %14, %18 : vector<1x4xf32>
    %cst_10 = arith.constant 0.001953125 : f32
    %20 = vector.broadcast %cst_10 : f32 to vector<1x4xf32>
    %21 = arith.mulf %17, %20 : vector<1x4xf32>
    %22 = arith.mulf %19, %19 : vector<1x4xf32>
    %23 = arith.subf %21, %22 : vector<1x4xf32>
    %c0_11 = arith.constant 0 : index
    %c0_12 = arith.constant 0 : index
    %24 = vector.load %arg4[%c0_11, %c0_12] : memref<1x4xf32, #tpu.memory_space<vmem>>, vector<1x4xf32>
    %cst_13 = arith.constant 9.99999974E-6 : f32
    %25 = vector.broadcast %cst_13 : f32 to vector<1x4xf32>
    %26 = arith.addf %23, %25 : vector<1x4xf32>
    %27 = math.rsqrt %26 : vector<1x4xf32>
    %28 = arith.mulf %24, %27 : vector<1x4xf32>
    %c0_14 = arith.constant 0 : index
    %c0_15 = arith.constant 0 : index
    %29 = vector.load %arg5[%c0_14, %c0_15] : memref<1x4xf32, #tpu.memory_space<vmem>>, vector<1x4xf32>
    %30 = arith.mulf %19, %28 : vector<1x4xf32>
    %31 = arith.subf %29, %30 : vector<1x4xf32>
    %32 = vector.broadcast %28 : vector<1x4xf32> to vector<512x4xf32>
    %33 = arith.mulf %12, %32 : vector<512x4xf32>
    %34 = vector.broadcast %31 : vector<1x4xf32> to vector<512x4xf32>
    %35 = arith.addf %33, %34 : vector<512x4xf32>
    %cst_16 = arith.constant 0.000000e+00 : f32
    %36 = vector.broadcast %cst_16 : f32 to vector<512x4xf32>
    %37 = arith.maximumf %35, %36 : vector<512x4xf32>
    %38 = vector.shape_cast %37 : vector<512x4xf32> to vector<2x16x16x4xf32>
    %cst_17 = arith.constant 0.000000e+00 : f32
    %39 = vector.broadcast %cst_17 : f32 to vector<2x16x1x4xf32>
    %40 = tpu.concatenate %39, %38, %39 in 2 : vector<2x16x1x4xf32>, vector<2x16x16x4xf32>, vector<2x16x1x4xf32> -> vector<2x16x18x4xf32>
    %cst_18 = arith.constant 0.000000e+00 : f32
    %41 = vector.broadcast %cst_18 : f32 to vector<2x1x18x4xf32>
    %42 = tpu.concatenate %41, %40, %41 in 1 : vector<2x1x18x4xf32>, vector<2x16x18x4xf32>, vector<2x1x18x4xf32> -> vector<2x18x18x4xf32>
    %43 = vector.extract_strided_slice %42 {offsets = [0, 0, 0, 0], sizes = [2, 16, 16, 4], strides = [1, 1, 1, 1]} : vector<2x18x18x4xf32> to vector<2x16x16x4xf32>
    %44 = vector.extract_strided_slice %42 {offsets = [0, 0, 1, 0], sizes = [2, 16, 16, 4], strides = [1, 1, 1, 1]} : vector<2x18x18x4xf32> to vector<2x16x16x4xf32>
    %45 = vector.extract_strided_slice %42 {offsets = [0, 0, 2, 0], sizes = [2, 16, 16, 4], strides = [1, 1, 1, 1]} : vector<2x18x18x4xf32> to vector<2x16x16x4xf32>
    %46 = vector.extract_strided_slice %42 {offsets = [0, 1, 0, 0], sizes = [2, 16, 16, 4], strides = [1, 1, 1, 1]} : vector<2x18x18x4xf32> to vector<2x16x16x4xf32>
    %47 = vector.extract_strided_slice %42 {offsets = [0, 1, 1, 0], sizes = [2, 16, 16, 4], strides = [1, 1, 1, 1]} : vector<2x18x18x4xf32> to vector<2x16x16x4xf32>
    %48 = vector.extract_strided_slice %42 {offsets = [0, 1, 2, 0], sizes = [2, 16, 16, 4], strides = [1, 1, 1, 1]} : vector<2x18x18x4xf32> to vector<2x16x16x4xf32>
    %49 = vector.extract_strided_slice %42 {offsets = [0, 2, 0, 0], sizes = [2, 16, 16, 4], strides = [1, 1, 1, 1]} : vector<2x18x18x4xf32> to vector<2x16x16x4xf32>
    %50 = vector.extract_strided_slice %42 {offsets = [0, 2, 1, 0], sizes = [2, 16, 16, 4], strides = [1, 1, 1, 1]} : vector<2x18x18x4xf32> to vector<2x16x16x4xf32>
    %51 = vector.extract_strided_slice %42 {offsets = [0, 2, 2, 0], sizes = [2, 16, 16, 4], strides = [1, 1, 1, 1]} : vector<2x18x18x4xf32> to vector<2x16x16x4xf32>
    %52 = tpu.concatenate %43, %44, %45, %46, %47, %48, %49, %50, %51 in 3 : vector<2x16x16x4xf32>, vector<2x16x16x4xf32>, vector<2x16x16x4xf32>, vector<2x16x16x4xf32>, vector<2x16x16x4xf32>, vector<2x16x16x4xf32>, vector<2x16x16x4xf32>, vector<2x16x16x4xf32>, vector<2x16x16x4xf32> -> vector<2x16x16x36xf32>
    %53 = vector.shape_cast %52 : vector<2x16x16x36xf32> to vector<512x36xf32>
    %c0_19 = arith.constant 0 : index
    %c0_20 = arith.constant 0 : index
    %54 = vector.load %arg3[%c0_19, %c0_20] : memref<36x128xf32, #tpu.memory_space<vmem>>, vector<36x128xf32>
    %cst_21 = arith.constant dense<0.000000e+00> : vector<512x128xf32>
    %55 = tpu.matmul %53, %54, %cst_21 {dimension_numbers = #tpu.dot_dimension_numbers<[1], [0], [0], [1], [0, 0, 1, 1], [], []>} : vector<512x36xf32>, vector<36x128xf32>, vector<512x128xf32> -> vector<512x128xf32>
    %c0_22 = arith.constant 0 : index
    %c0_23 = arith.constant 0 : index
    %56 = vector.load %arg6[%c0_22, %c0_23] : memref<512x128xf32, #tpu.memory_space<vmem>>, vector<512x128xf32>
    tpu.vector_store %arg6[%c0_22, %c0_23], %55 {strides = array<i32>} : memref<512x128xf32, #tpu.memory_space<vmem>>, vector<512x128xf32>,
    return
  }
}

</mosaic_0001>

<llo_original>
// kernel: tpu_custom_call.1
$region0: #{tpu_custom_call.1}
  #allocation0 [shape = 'u32[]', space=smem, size = 0x4, offset = 0x4, fixed_abs, tag = 'smem constant byte address 0x4 - core index']
  #allocation1 [shape = 'u32[72,128]{1,0:T(1,128)}', space=vmem, size = 0x9000, scoped, tag = 'internal scratch']
  %s0 = inlined_call_operand.vmem [shape: f32[512,4], index: 0, kind: input, shape index: {}]
  %s1 = inlined_call_operand.vmem [shape: f32[512,4], index: 1, kind: input, shape index: {}]
  %s2 = inlined_call_operand.vmem [shape: f32[512,4], index: 2, kind: input, shape index: {}]
  %s3 = inlined_call_operand.vmem [shape: f32[36,128], index: 3, kind: input, shape index: {}]
  %s4 = inlined_call_operand.vmem [shape: f32[1,4], index: 4, kind: input, shape index: {}]
  %s5 = inlined_call_operand.vmem [shape: f32[1,4], index: 5, kind: input, shape index: {}]
  %s6 = inlined_call_operand.hbm [shape: f32[512,128], index: 6, kind: output, shape index: {}]
  %s7 = sld [smem:[#allocation0]]
  $region34: #{tpu_custom_call.1} parent=0
    _
  %s9 = ssub.s32 1, %s7
  %s10 = scalar_select 0, %s9, %s7
  $region1: #{tpu_custom_call.1} parent=0
    #allocation2 [shape = 'u8[262144]{0}', space=vmem, size = 0x40000, scoped, tag = 'output window, operand 0, single buffered']
    #allocation3 [shape = 's32[1]{0}', space=sflag, size = 0x4, scoped, tag = 'scoped memory for tpu_custom_call.1']
    %11 = vsyncpa [#allocation3], 0
    // Predicated region
    $region2: #{tpu_custom_call.1} parent=1 // pred_check
      _
    $region3: #{tpu_custom_call.1} parent=1 // pred_check_branch
      %13 = sbr.rel (0) target = $region5
    $region4: #{tpu_custom_call.1} parent=1 // pred_region
      _
    $region5: #{tpu_custom_call.1} parent=1 // pred_fallthru
      _
    // Predicated region
    $region6: #{tpu_custom_call.1} parent=1 // pred_check
      _
    $region7: #{tpu_custom_call.1} parent=1 // pred_check_branch
      %15 = sbr.rel (0) target = $region9
    $region8: #{tpu_custom_call.1} parent=1 // pred_region
      _
    $region9: #{tpu_custom_call.1} parent=1 // pred_fallthru
      _
    // Predicated region
    $region10: #{tpu_custom_call.1} parent=1 // pred_check
      _
    $region11: #{tpu_custom_call.1} parent=1 // pred_check_branch
      %17 = sbr.rel (0) target = $region13
    $region12: #{tpu_custom_call.1} parent=1 // pred_region
      _
    $region13: #{tpu_custom_call.1} parent=1 // pred_fallthru
      _
    // Predicated region
    $region14: #{tpu_custom_call.1} parent=1 // pred_check
      _
    $region15: #{tpu_custom_call.1} parent=1 // pred_check_branch
      %19 = sbr.rel (0) target = $region17
    $region16: #{tpu_custom_call.1} parent=1 // pred_region
      _
    $region17: #{tpu_custom_call.1} parent=1 // pred_fallthru
      _
    // Predicated region
    $region18: #{tpu_custom_call.1} parent=1 // pred_check
      _
    $region19: #{tpu_custom_call.1} parent=1 // pred_check_branch
      %21 = sbr.rel (0) target = $region21
    $region20: #{tpu_custom_call.1} parent=1 // pred_region
      _
    $region21: #{tpu_custom_call.1} parent=1 // pred_fallthru
      _
    // Predicated region
    $region22: #{tpu_custom_call.1} parent=1 // pred_check
      _
    $region23: #{tpu_custom_call.1} parent=1 // pred_check_branch
      %23 = sbr.rel (0) target = $region25
    $region24: #{tpu_custom_call.1} parent=1 // pred_region
      _
    $region25: #{tpu_custom_call.1} parent=1 // pred_fallthru
      _
    %v24 = vld [vmem:[%s0] sm:$0xff]
    %v25 = vld [vmem:[%s0 + $0x8] sm:$0xff]
    %v26 = vld [vmem:[%s0 + $0x10] sm:$0xff]
    %v27 = vld [vmem:[%s0 + $0x18] sm:$0xff]
    %v28 = vld [vmem:[%s0 + $0x20] sm:$0xff]
    %v29 = vld [vmem:[%s0 + $0x28] sm:$0xff]
    %v30 = vld [vmem:[%s0 + $0x30] sm:$0xff]
    %v31 = vld [vmem:[%s0 + $0x38] sm:$0xff]
    %v32 = vld [vmem:[%s0 + $0x40] sm:$0xff]
    %v33 = vld [vmem:[%s0 + $0x48] sm:$0xff]
    %v34 = vld [vmem:[%s0 + $0x50] sm:$0xff]
    %v35 = vld [vmem:[%s0 + $0x58] sm:$0xff]
    %v36 = vld [vmem:[%s0 + $0x60] sm:$0xff]
    %v37 = vld [vmem:[%s0 + $0x68] sm:$0xff]
    %v38 = vld [vmem:[%s0 + $0x70] sm:$0xff]
    %v39 = vld [vmem:[%s0 + $0x78] sm:$0xff]
    %v40 = vld [vmem:[%s0 + $0x80] sm:$0xff]
    %v41 = vld [vmem:[%s0 + $0x88] sm:$0xff]
    %v42 = vld [vmem:[%s0 + $0x90] sm:$0xff]
    %v43 = vld [vmem:[%s0 + $0x98] sm:$0xff]
    %v44 = vld [vmem:[%s0 + $0xa0] sm:$0xff]
    %v45 = vld [vmem:[%s0 + $0xa8] sm:$0xff]
    %v46 = vld [vmem:[%s0 + $0xb0] sm:$0xff]
    %v47 = vld [vmem:[%s0 + $0xb8] sm:$0xff]
    %v48 = vld [vmem:[%s0 + $0xc0] sm:$0xff]
    %v49 = vld [vmem:[%s0 + $0xc8] sm:$0xff]
    %v50 = vld [vmem:[%s0 + $0xd0] sm:$0xff]
    %v51 = vld [vmem:[%s0 + $0xd8] sm:$0xff]
    %v52 = vld [vmem:[%s0 + $0xe0] sm:$0xff]
    %v53 = vld [vmem:[%s0 + $0xe8] sm:$0xff]
    %v54 = vld [vmem:[%s0 + $0xf0] sm:$0xff]
    %v55 = vld [vmem:[%s0 + $0xf8] sm:$0xff]
    %v56 = vld [vmem:[%s0 + $0x100] sm:$0xff]
    %v57 = vld [vmem:[%s0 + $0x108] sm:$0xff]
    %v58 = vld [vmem:[%s0 + $0x110] sm:$0xff]
    %v59 = vld [vmem:[%s0 + $0x118] sm:$0xff]
    %v60 = vld [vmem:[%s0 + $0x120] sm:$0xff]
    %v61 = vld [vmem:[%s0 + $0x128] sm:$0xff]
    %v62 = vld [vmem:[%s0 + $0x130] sm:$0xff]
    %v63 = vld [vmem:[%s0 + $0x138] sm:$0xff]
    %v64 = vld [vmem:[%s0 + $0x140] sm:$0xff]
    %v65 = vld [vmem:[%s0 + $0x148] sm:$0xff]
    %v66 = vld [vmem:[%s0 + $0x150] sm:$0xff]
    %v67 = vld [vmem:[%s0 + $0x158] sm:$0xff]
    %v68 = vld [vmem:[%s0 + $0x160] sm:$0xff]
    %v69 = vld [vmem:[%s0 + $0x168] sm:$0xff]
    %v70 = vld [vmem:[%s0 + $0x170] sm:$0xff]
    %v71 = vld [vmem:[%s0 + $0x178] sm:$0xff]
    %v72 = vld [vmem:[%s0 + $0x180] sm:$0xff]
    %v73 = vld [vmem:[%s0 + $0x188] sm:$0xff]
    %v74 = vld [vmem:[%s0 + $0x190] sm:$0xff]
    %v75 = vld [vmem:[%s0 + $0x198] sm:$0xff]
    %v76 = vld [vmem:[%s0 + $0x1a0] sm:$0xff]
    %v77 = vld [vmem:[%s0 + $0x1a8] sm:$0xff]
    %v78 = vld [vmem:[%s0 + $0x1b0] sm:$0xff]
    %v79 = vld [vmem:[%s0 + $0x1b8] sm:$0xff]
    %v80 = vld [vmem:[%s0 + $0x1c0] sm:$0xff]
    %v81 = vld [vmem:[%s0 + $0x1c8] sm:$0xff]
    %v82 = vld [vmem:[%s0 + $0x1d0] sm:$0xff]
    %v83 = vld [vmem:[%s0 + $0x1d8] sm:$0xff]
    %v84 = vld [vmem:[%s0 + $0x1e0] sm:$0xff]
    %v85 = vld [vmem:[%s0 + $0x1e8] sm:$0xff]
    %v86 = vld [vmem:[%s0 + $0x1f0] sm:$0xff]
    %v87 = vld [vmem:[%s0 + $0x1f8] sm:$0xff]
    %v88 = vld [vmem:[%s1] sm:$0xff]
    %v89 = vld [vmem:[%s1 + $0x8] sm:$0xff]
    %v90 = vld [vmem:[%s1 + $0x10] sm:$0xff]
    %v91 = vld [vmem:[%s1 + $0x18] sm:$0xff]
    %v92 = vld [vmem:[%s1 + $0x20] sm:$0xff]
    %v93 = vld [vmem:[%s1 + $0x28] sm:$0xff]
    %v94 = vld [vmem:[%s1 + $0x30] sm:$0xff]
    %v95 = vld [vmem:[%s1 + $0x38] sm:$0xff]
    %v96 = vld [vmem:[%s1 + $0x40] sm:$0xff]
    %v97 = vld [vmem:[%s1 + $0x48] sm:$0xff]
    %v98 = vld [vmem:[%s1 + $0x50] sm:$0xff]
    %v99 = vld [vmem:[%s1 + $0x58] sm:$0xff]
    %v100 = vld [vmem:[%s1 + $0x60] sm:$0xff]
    %v101 = vld [vmem:[%s1 + $0x68] sm:$0xff]
    %v102 = vld [vmem:[%s1 + $0x70] sm:$0xff]
    %v103 = vld [vmem:[%s1 + $0x78] sm:$0xff]
    %v104 = vld [vmem:[%s1 + $0x80] sm:$0xff]
    %v105 = vld [vmem:[%s1 + $0x88] sm:$0xff]
    %v106 = vld [vmem:[%s1 + $0x90] sm:$0xff]
    %v107 = vld [vmem:[%s1 + $0x98] sm:$0xff]
    %v108 = vld [vmem:[%s1 + $0xa0] sm:$0xff]
    %v109 = vld [vmem:[%s1 + $0xa8] sm:$0xff]
    %v110 = vld [vmem:[%s1 + $0xb0] sm:$0xff]
    %v111 = vld [vmem:[%s1 + $0xb8] sm:$0xff]
    %v112 = vld [vmem:[%s1 + $0xc0] sm:$0xff]
    %v113 = vld [vmem:[%s1 + $0xc8] sm:$0xff]
    %v114 = vld [vmem:[%s1 + $0xd0] sm:$0xff]
    %v115 = vld [vmem:[%s1 + $0xd8] sm:$0xff]
    %v116 = vld [vmem:[%s1 + $0xe0] sm:$0xff]
    %v117 = vld [vmem:[%s1 + $0xe8] sm:$0xff]
    %v118 = vld [vmem:[%s1 + $0xf0] sm:$0xff]
    %v119 = vld [vmem:[%s1 + $0xf8] sm:$0xff]
    %v120 = vld [vmem:[%s1 + $0x100] sm:$0xff]
    %v121 = vld [vmem:[%s1 + $0x108] sm:$0xff]
    %v122 = vld [vmem:[%s1 + $0x110] sm:$0xff]
    %v123 = vld [vmem:[%s1 + $0x118] sm:$0xff]
    %v124 = vld [vmem:[%s1 + $0x120] sm:$0xff]
    %v125 = vld [vmem:[%s1 + $0x128] sm:$0xff]
    %v126 = vld [vmem:[%s1 + $0x130] sm:$0xff]
    %v127 = vld [vmem:[%s1 + $0x138] sm:$0xff]
    %v128 = vld [vmem:[%s1 + $0x140] sm:$0xff]
    %v129 = vld [vmem:[%s1 + $0x148] sm:$0xff]
    %v130 = vld [vmem:[%s1 + $0x150] sm:$0xff]
    %v131 = vld [vmem:[%s1 + $0x158] sm:$0xff]
    %v132 = vld [vmem:[%s1 + $0x160] sm:$0xff]
    %v133 = vld [vmem:[%s1 + $0x168] sm:$0xff]
    %v134 = vld [vmem:[%s1 + $0x170] sm:$0xff]
    %v135 = vld [vmem:[%s1 + $0x178] sm:$0xff]
    %v136 = vld [vmem:[%s1 + $0x180] sm:$0xff]
    %v137 = vld [vmem:[%s1 + $0x188] sm:$0xff]
    %v138 = vld [vmem:[%s1 + $0x190] sm:$0xff]
    %v139 = vld [vmem:[%s1 + $0x198] sm:$0xff]
    %v140 = vld [vmem:[%s1 + $0x1a0] sm:$0xff]
    %v141 = vld [vmem:[%s1 + $0x1a8] sm:$0xff]
    %v142 = vld [vmem:[%s1 + $0x1b0] sm:$0xff]
    %v143 = vld [vmem:[%s1 + $0x1b8] sm:$0xff]
    %v144 = vld [vmem:[%s1 + $0x1c0] sm:$0xff]
    %v145 = vld [vmem:[%s1 + $0x1c8] sm:$0xff]
    %v146 = vld [vmem:[%s1 + $0x1d0] sm:$0xff]
    %v147 = vld [vmem:[%s1 + $0x1d8] sm:$0xff]
    %v148 = vld [vmem:[%s1 + $0x1e0] sm:$0xff]
    %v149 = vld [vmem:[%s1 + $0x1e8] sm:$0xff]
    %v150 = vld [vmem:[%s1 + $0x1f0] sm:$0xff]
    %v151 = vld [vmem:[%s1 + $0x1f8] sm:$0xff]
    %v152 = vld [vmem:[%s2] sm:$0xff]
    %v153 = vld [vmem:[%s2 + $0x8] sm:$0xff]
    %v154 = vld [vmem:[%s2 + $0x10] sm:$0xff]
    %v155 = vld [vmem:[%s2 + $0x18] sm:$0xff]
    %v156 = vld [vmem:[%s2 + $0x20] sm:$0xff]
    %v157 = vld [vmem:[%s2 + $0x28] sm:$0xff]
    %v158 = vld [vmem:[%s2 + $0x30] sm:$0xff]
    %v159 = vld [vmem:[%s2 + $0x38] sm:$0xff]
    %v160 = vld [vmem:[%s2 + $0x40] sm:$0xff]
    %v161 = vld [vmem:[%s2 + $0x48] sm:$0xff]
    %v162 = vld [vmem:[%s2 + $0x50] sm:$0xff]
    %v163 = vld [vmem:[%s2 + $0x58] sm:$0xff]
    %v164 = vld [vmem:[%s2 + $0x60] sm:$0xff]
    %v165 = vld [vmem:[%s2 + $0x68] sm:$0xff]
    %v166 = vld [vmem:[%s2 + $0x70] sm:$0xff]
    %v167 = vld [vmem:[%s2 + $0x78] sm:$0xff]
    %v168 = vld [vmem:[%s2 + $0x80] sm:$0xff]
    %v169 = vld [vmem:[%s2 + $0x88] sm:$0xff]
    %v170 = vld [vmem:[%s2 + $0x90] sm:$0xff]
    %v171 = vld [vmem:[%s2 + $0x98] sm:$0xff]
    %v172 = vld [vmem:[%s2 + $0xa0] sm:$0xff]
    %v173 = vld [vmem:[%s2 + $0xa8] sm:$0xff]
    %v174 = vld [vmem:[%s2 + $0xb0] sm:$0xff]
    %v175 = vld [vmem:[%s2 + $0xb8] sm:$0xff]
    %v176 = vld [vmem:[%s2 + $0xc0] sm:$0xff]
    %v177 = vld [vmem:[%s2 + $0xc8] sm:$0xff]
    %v178 = vld [vmem:[%s2 + $0xd0] sm:$0xff]
    %v179 = vld [vmem:[%s2 + $0xd8] sm:$0xff]
    %v180 = vld [vmem:[%s2 + $0xe0] sm:$0xff]
    %v181 = vld [vmem:[%s2 + $0xe8] sm:$0xff]
    %v182 = vld [vmem:[%s2 + $0xf0] sm:$0xff]
    %v183 = vld [vmem:[%s2 + $0xf8] sm:$0xff]
    %v184 = vld [vmem:[%s2 + $0x100] sm:$0xff]
    %v185 = vld [vmem:[%s2 + $0x108] sm:$0xff]
    %v186 = vld [vmem:[%s2 + $0x110] sm:$0xff]
    %v187 = vld [vmem:[%s2 + $0x118] sm:$0xff]
    %v188 = vld [vmem:[%s2 + $0x120] sm:$0xff]
    %v189 = vld [vmem:[%s2 + $0x128] sm:$0xff]
    %v190 = vld [vmem:[%s2 + $0x130] sm:$0xff]
    %v191 = vld [vmem:[%s2 + $0x138] sm:$0xff]
    %v192 = vld [vmem:[%s2 + $0x140] sm:$0xff]
    %v193 = vld [vmem:[%s2 + $0x148] sm:$0xff]
    %v194 = vld [vmem:[%s2 + $0x150] sm:$0xff]
    %v195 = vld [vmem:[%s2 + $0x158] sm:$0xff]
    %v196 = vld [vmem:[%s2 + $0x160] sm:$0xff]
    %v197 = vld [vmem:[%s2 + $0x168] sm:$0xff]
    %v198 = vld [vmem:[%s2 + $0x170] sm:$0xff]
    %v199 = vld [vmem:[%s2 + $0x178] sm:$0xff]
    %v200 = vld [vmem:[%s2 + $0x180] sm:$0xff]
    %v201 = vld [vmem:[%s2 + $0x188] sm:$0xff]
    %v202 = vld [vmem:[%s2 + $0x190] sm:$0xff]
    %v203 = vld [vmem:[%s2 + $0x198] sm:$0xff]
    %v204 = vld [vmem:[%s2 + $0x1a0] sm:$0xff]
    %v205 = vld [vmem:[%s2 + $0x1a8] sm:$0xff]
    %v206 = vld [vmem:[%s2 + $0x1b0] sm:$0xff]
    %v207 = vld [vmem:[%s2 + $0x1b8] sm:$0xff]
    %v208 = vld [vmem:[%s2 + $0x1c0] sm:$0xff]
    %v209 = vld [vmem:[%s2 + $0x1c8] sm:$0xff]
    %v210 = vld [vmem:[%s2 + $0x1d0] sm:$0xff]
    %v211 = vld [vmem:[%s2 + $0x1d8] sm:$0xff]
    %v212 = vld [vmem:[%s2 + $0x1e0] sm:$0xff]
    %v213 = vld [vmem:[%s2 + $0x1e8] sm:$0xff]
    %v214 = vld [vmem:[%s2 + $0x1f0] sm:$0xff]
    %v215 = vld [vmem:[%s2 + $0x1f8] sm:$0xff]
    %v216 = vmul.f32 %v152, 0.5
    %v217 = vmul.f32 %v153, 0.5
    %v218 = vmul.f32 %v154, 0.5
    %v219 = vmul.f32 %v155, 0.5
    %v220 = vmul.f32 %v156, 0.5
    %v221 = vmul.f32 %v157, 0.5
    %v222 = vmul.f32 %v158, 0.5
    %v223 = vmul.f32 %v159, 0.5
    %v224 = vmul.f32 %v160, 0.5
    %v225 = vmul.f32 %v161, 0.5
    %v226 = vmul.f32 %v162, 0.5
    %v227 = vmul.f32 %v163, 0.5
    %v228 = vmul.f32 %v164, 0.5
    %v229 = vmul.f32 %v165, 0.5
    %v230 = vmul.f32 %v166, 0.5
    %v231 = vmul.f32 %v167, 0.5
    %v232 = vmul.f32 %v168, 0.5
    %v233 = vmul.f32 %v169, 0.5
    %v234 = vmul.f32 %v170, 0.5
    %v235 = vmul.f32 %v171, 0.5
    %v236 = vmul.f32 %v172, 0.5
    %v237 = vmul.f32 %v173, 0.5
    %v238 = vmul.f32 %v174, 0.5
    %v239 = vmul.f32 %v175, 0.5
    %v240 = vmul.f32 %v176, 0.5
    %v241 = vmul.f32 %v177, 0.5
    %v242 = vmul.f32 %v178, 0.5
    %v243 = vmul.f32 %v179, 0.5
    %v244 = vmul.f32 %v180, 0.5
    %v245 = vmul.f32 %v181, 0.5
    %v246 = vmul.f32 %v182, 0.5
    %v247 = vmul.f32 %v183, 0.5
    %v248 = vmul.f32 %v184, 0.5
    %v249 = vmul.f32 %v185, 0.5
    %v250 = vmul.f32 %v186, 0.5
    %v251 = vmul.f32 %v187, 0.5
    %v252 = vmul.f32 %v188, 0.5
    %v253 = vmul.f32 %v189, 0.5
    %v254 = vmul.f32 %v190, 0.5
    %v255 = vmul.f32 %v191, 0.5
    %v256 = vmul.f32 %v192, 0.5
    %v257 = vmul.f32 %v193, 0.5
    %v258 = vmul.f32 %v194, 0.5
    %v259 = vmul.f32 %v195, 0.5
    %v260 = vmul.f32 %v196, 0.5
    %v261 = vmul.f32 %v197, 0.5
    %v262 = vmul.f32 %v198, 0.5
    %v263 = vmul.f32 %v199, 0.5
    %v264 = vmul.f32 %v200, 0.5
    %v265 = vmul.f32 %v201, 0.5
    %v266 = vmul.f32 %v202, 0.5
    %v267 = vmul.f32 %v203, 0.5
    %v268 = vmul.f32 %v204, 0.5
    %v269 = vmul.f32 %v205, 0.5
    %v270 = vmul.f32 %v206, 0.5
    %v271 = vmul.f32 %v207, 0.5
    %v272 = vmul.f32 %v208, 0.5
    %v273 = vmul.f32 %v209, 0.5
    %v274 = vmul.f32 %v210, 0.5
    %v275 = vmul.f32 %v211, 0.5
    %v276 = vmul.f32 %v212, 0.5
    %v277 = vmul.f32 %v213, 0.5
    %v278 = vmul.f32 %v214, 0.5
    %v279 = vmul.f32 %v215, 0.5
    %v280 = vtanh.pop %v216
    %v281 = vtanh.pop %v217
    %v282 = vtanh.pop %v218
    %v283 = vtanh.pop %v219
    %v284 = vtanh.pop %v220
    %v285 = vtanh.pop %v221
    %v286 = vtanh.pop %v222
    %v287 = vtanh.pop %v223
    %v288 = vtanh.pop %v224
    %v289 = vtanh.pop %v225
    %v290 = vtanh.pop %v226
    %v291 = vtanh.pop %v227
    %v292 = vtanh.pop %v228
    %v293 = vtanh.pop %v229
    %v294 = vtanh.pop %v230
    %v295 = vtanh.pop %v231
    %v296 = vtanh.pop %v232
    %v297 = vtanh.pop %v233
    %v298 = vtanh.pop %v234
    %v299 = vtanh.pop %v235
    %v300 = vtanh.pop %v236
    %v301 = vtanh.pop %v237
    %v302 = vtanh.pop %v238
    %v303 = vtanh.pop %v239
    %v304 = vtanh.pop %v240
    %v305 = vtanh.pop %v241
    %v306 = vtanh.pop %v242
    %v307 = vtanh.pop %v243
    %v308 = vtanh.pop %v244
    %v309 = vtanh.pop %v245
    %v310 = vtanh.pop %v246
    %v311 = vtanh.pop %v247
    %v312 = vtanh.pop %v248
    %v313 = vtanh.pop %v249
    %v314 = vtanh.pop %v250
    %v315 = vtanh.pop %v251
    %v316 = vtanh.pop %v252
    %v317 = vtanh.pop %v253
    %v318 = vtanh.pop %v254
    %v319 = vtanh.pop %v255
    %v320 = vtanh.pop %v256
    %v321 = vtanh.pop %v257
    %v322 = vtanh.pop %v258
    %v323 = vtanh.pop %v259
    %v324 = vtanh.pop %v260
    %v325 = vtanh.pop %v261
    %v326 = vtanh.pop %v262
    %v327 = vtanh.pop %v263
    %v328 = vtanh.pop %v264
    %v329 = vtanh.pop %v265
    %v330 = vtanh.pop %v266
    %v331 = vtanh.pop %v267
    %v332 = vtanh.pop %v268
    %v333 = vtanh.pop %v269
    %v334 = vtanh.pop %v270
    %v335 = vtanh.pop %v271
    %v336 = vtanh.pop %v272
    %v337 = vtanh.pop %v273
    %v338 = vtanh.pop %v274
    %v339 = vtanh.pop %v275
    %v340 = vtanh.pop %v276
    %v341 = vtanh.pop %v277
    %v342 = vtanh.pop %v278
    %v343 = vtanh.pop %v279
    %v344 = vmul.f32 %v280, 0.5
    %v345 = vmul.f32 %v281, 0.5
    %v346 = vmul.f32 %v282, 0.5
    %v347 = vmul.f32 %v283, 0.5
    %v348 = vmul.f32 %v284, 0.5
    %v349 = vmul.f32 %v285, 0.5
    %v350 = vmul.f32 %v286, 0.5
    %v351 = vmul.f32 %v287, 0.5
    %v352 = vmul.f32 %v288, 0.5
    %v353 = vmul.f32 %v289, 0.5
    %v354 = vmul.f32 %v290, 0.5
    %v355 = vmul.f32 %v291, 0.5
    %v356 = vmul.f32 %v292, 0.5
    %v357 = vmul.f32 %v293, 0.5
    %v358 = vmul.f32 %v294, 0.5
    %v359 = vmul.f32 %v295, 0.5
    %v360 = vmul.f32 %v296, 0.5
    %v361 = vmul.f32 %v297, 0.5
    %v362 = vmul.f32 %v298, 0.5
    %v363 = vmul.f32 %v299, 0.5
    %v364 = vmul.f32 %v300, 0.5
    %v365 = vmul.f32 %v301, 0.5
    %v366 = vmul.f32 %v302, 0.5
    %v367 = vmul.f32 %v303, 0.5
    %v368 = vmul.f32 %v304, 0.5
    %v369 = vmul.f32 %v305, 0.5
    %v370 = vmul.f32 %v306, 0.5
    %v371 = vmul.f32 %v307, 0.5
    %v372 = vmul.f32 %v308, 0.5
    %v373 = vmul.f32 %v309, 0.5
    %v374 = vmul.f32 %v310, 0.5
    %v375 = vmul.f32 %v311, 0.5
    %v376 = vmul.f32 %v312, 0.5
    %v377 = vmul.f32 %v313, 0.5
    %v378 = vmul.f32 %v314, 0.5
    %v379 = vmul.f32 %v315, 0.5
    %v380 = vmul.f32 %v316, 0.5
    %v381 = vmul.f32 %v317, 0.5
    %v382 = vmul.f32 %v318, 0.5
    %v383 = vmul.f32 %v319, 0.5
    %v384 = vmul.f32 %v320, 0.5
    %v385 = vmul.f32 %v321, 0.5
    %v386 = vmul.f32 %v322, 0.5
    %v387 = vmul.f32 %v323, 0.5
    %v388 = vmul.f32 %v324, 0.5
    %v389 = vmul.f32 %v325, 0.5
    %v390 = vmul.f32 %v326, 0.5
    %v391 = vmul.f32 %v327, 0.5
    %v392 = vmul.f32 %v328, 0.5
    %v393 = vmul.f32 %v329, 0.5
    %v394 = vmul.f32 %v330, 0.5
    %v395 = vmul.f32 %v331, 0.5
    %v396 = vmul.f32 %v332, 0.5
    %v397 = vmul.f32 %v333, 0.5
    %v398 = vmul.f32 %v334, 0.5
    %v399 = vmul.f32 %v335, 0.5
    %v400 = vmul.f32 %v336, 0.5
    %v401 = vmul.f32 %v337, 0.5
    %v402 = vmul.f32 %v338, 0.5
    %v403 = vmul.f32 %v339, 0.5
    %v404 = vmul.f32 %v340, 0.5
    %v405 = vmul.f32 %v341, 0.5
    %v406 = vmul.f32 %v342, 0.5
    %v407 = vmul.f32 %v343, 0.5
    %v408 = vadd.f32 %v344, 0.5
    %v409 = vadd.f32 %v345, 0.5
    %v410 = vadd.f32 %v346, 0.5
    %v411 = vadd.f32 %v347, 0.5
    %v412 = vadd.f32 %v348, 0.5
    %v413 = vadd.f32 %v349, 0.5
    %v414 = vadd.f32 %v350, 0.5
    %v415 = vadd.f32 %v351, 0.5
    %v416 = vadd.f32 %v352, 0.5
    %v417 = vadd.f32 %v353, 0.5
    %v418 = vadd.f32 %v354, 0.5
    %v419 = vadd.f32 %v355, 0.5
    %v420 = vadd.f32 %v356, 0.5
    %v421 = vadd.f32 %v357, 0.5
    %v422 = vadd.f32 %v358, 0.5
    %v423 = vadd.f32 %v359, 0.5
    %v424 = vadd.f32 %v360, 0.5
    %v425 = vadd.f32 %v361, 0.5
    %v426 = vadd.f32 %v362, 0.5
    %v427 = vadd.f32 %v363, 0.5
    %v428 = vadd.f32 %v364, 0.5
    %v429 = vadd.f32 %v365, 0.5
    %v430 = vadd.f32 %v366, 0.5
    %v431 = vadd.f32 %v367, 0.5
    %v432 = vadd.f32 %v368, 0.5
    %v433 = vadd.f32 %v369, 0.5
    %v434 = vadd.f32 %v370, 0.5
    %v435 = vadd.f32 %v371, 0.5
    %v436 = vadd.f32 %v372, 0.5
    %v437 = vadd.f32 %v373, 0.5
    %v438 = vadd.f32 %v374, 0.5
    %v439 = vadd.f32 %v375, 0.5
    %v440 = vadd.f32 %v376, 0.5
    %v441 = vadd.f32 %v377, 0.5
    %v442 = vadd.f32 %v378, 0.5
    %v443 = vadd.f32 %v379, 0.5
    %v444 = vadd.f32 %v380, 0.5
    %v445 = vadd.f32 %v381, 0.5
    %v446 = vadd.f32 %v382, 0.5
    %v447 = vadd.f32 %v383, 0.5
    %v448 = vadd.f32 %v384, 0.5
    %v449 = vadd.f32 %v385, 0.5
    %v450 = vadd.f32 %v386, 0.5
    %v451 = vadd.f32 %v387, 0.5
    %v452 = vadd.f32 %v388, 0.5
    %v453 = vadd.f32 %v389, 0.5
    %v454 = vadd.f32 %v390, 0.5
    %v455 = vadd.f32 %v391, 0.5
    %v456 = vadd.f32 %v392, 0.5
    %v457 = vadd.f32 %v393, 0.5
    %v458 = vadd.f32 %v394, 0.5
    %v459 = vadd.f32 %v395, 0.5
    %v460 = vadd.f32 %v396, 0.5
    %v461 = vadd.f32 %v397, 0.5
    %v462 = vadd.f32 %v398, 0.5
    %v463 = vadd.f32 %v399, 0.5
    %v464 = vadd.f32 %v400, 0.5
    %v465 = vadd.f32 %v401, 0.5
    %v466 = vadd.f32 %v402, 0.5
    %v467 = vadd.f32 %v403, 0.5
    %v468 = vadd.f32 %v404, 0.5
    %v469 = vadd.f32 %v405, 0.5
    %v470 = vadd.f32 %v406, 0.5
    %v471 = vadd.f32 %v407, 0.5
    %v472 = vsub.f32 %v24, %v88
    %v473 = vsub.f32 %v25, %v89
    %v474 = vsub.f32 %v26, %v90
    %v475 = vsub.f32 %v27, %v91
    %v476 = vsub.f32 %v28, %v92
    %v477 = vsub.f32 %v29, %v93
    %v478 = vsub.f32 %v30, %v94
    %v479 = vsub.f32 %v31, %v95
    %v480 = vsub.f32 %v32, %v96
    %v481 = vsub.f32 %v33, %v97
    %v482 = vsub.f32 %v34, %v98
    %v483 = vsub.f32 %v35, %v99
    %v484 = vsub.f32 %v36, %v100
    %v485 = vsub.f32 %v37, %v101
    %v486 = vsub.f32 %v38, %v102
    %v487 = vsub.f32 %v39, %v103
    %v488 = vsub.f32 %v40, %v104
    %v489 = vsub.f32 %v41, %v105
    %v490 = vsub.f32 %v42, %v106
    %v491 = vsub.f32 %v43, %v107
    %v492 = vsub.f32 %v44, %v108
    %v493 = vsub.f32 %v45, %v109
    %v494 = vsub.f32 %v46, %v110
    %v495 = vsub.f32 %v47, %v111
    %v496 = vsub.f32 %v48, %v112
    %v497 = vsub.f32 %v49, %v113
    %v498 = vsub.f32 %v50, %v114
    %v499 = vsub.f32 %v51, %v115
    %v500 = vsub.f32 %v52, %v116
    %v501 = vsub.f32 %v53, %v117
    %v502 = vsub.f32 %v54, %v118
    %v503 = vsub.f32 %v55, %v119
    %v504 = vsub.f32 %v56, %v120
    %v505 = vsub.f32 %v57, %v121
    %v506 = vsub.f32 %v58, %v122
    %v507 = vsub.f32 %v59, %v123
    %v508 = vsub.f32 %v60, %v124
    %v509 = vsub.f32 %v61, %v125
    %v510 = vsub.f32 %v62, %v126
    %v511 = vsub.f32 %v63, %v127
    %v512 = vsub.f32 %v64, %v128
    %v513 = vsub.f32 %v65, %v129
    %v514 = vsub.f32 %v66, %v130
    %v515 = vsub.f32 %v67, %v131
    %v516 = vsub.f32 %v68, %v132
    %v517 = vsub.f32 %v69, %v133
    %v518 = vsub.f32 %v70, %v134
    %v519 = vsub.f32 %v71, %v135
    %v520 = vsub.f32 %v72, %v136
    %v521 = vsub.f32 %v73, %v137
    %v522 = vsub.f32 %v74, %v138
    %v523 = vsub.f32 %v75, %v139
    %v524 = vsub.f32 %v76, %v140
    %v525 = vsub.f32 %v77, %v141
    %v526 = vsub.f32 %v78, %v142
    %v527 = vsub.f32 %v79, %v143
    %v528 = vsub.f32 %v80, %v144
    %v529 = vsub.f32 %v81, %v145
    %v530 = vsub.f32 %v82, %v146
    %v531 = vsub.f32 %v83, %v147
    %v532 = vsub.f32 %v84, %v148
    %v533 = vsub.f32 %v85, %v149
    %v534 = vsub.f32 %v86, %v150
    %v535 = vsub.f32 %v87, %v151
    %v536 = vmul.f32 %v408, %v472
    %v537 = vmul.f32 %v409, %v473
    %v538 = vmul.f32 %v410, %v474
    %v539 = vmul.f32 %v411, %v475
    %v540 = vmul.f32 %v412, %v476
    %v541 = vmul.f32 %v413, %v477
    %v542 = vmul.f32 %v414, %v478
    %v543 = vmul.f32 %v415, %v479
    %v544 = vmul.f32 %v416, %v480
    %v545 = vmul.f32 %v417, %v481
    %v546 = vmul.f32 %v418, %v482
    %v547 = vmul.f32 %v419, %v483
    %v548 = vmul.f32 %v420, %v484
    %v549 = vmul.f32 %v421, %v485
    %v550 = vmul.f32 %v422, %v486
    %v551 = vmul.f32 %v423, %v487
    %v552 = vmul.f32 %v424, %v488
    %v553 = vmul.f32 %v425, %v489
    %v554 = vmul.f32 %v426, %v490
    %v555 = vmul.f32 %v427, %v491
    %v556 = vmul.f32 %v428, %v492
    %v557 = vmul.f32 %v429, %v493
    %v558 = vmul.f32 %v430, %v494
    %v559 = vmul.f32 %v431, %v495
    %v560 = vmul.f32 %v432, %v496
    %v561 = vmul.f32 %v433, %v497
    %v562 = vmul.f32 %v434, %v498
    %v563 = vmul.f32 %v435, %v499
    %v564 = vmul.f32 %v436, %v500
    %v565 = vmul.f32 %v437, %v501
    %v566 = vmul.f32 %v438, %v502
    %v567 = vmul.f32 %v439, %v503
    %v568 = vmul.f32 %v440, %v504
    %v569 = vmul.f32 %v441, %v505
    %v570 = vmul.f32 %v442, %v506
    %v571 = vmul.f32 %v443, %v507
    %v572 = vmul.f32 %v444, %v508
    %v573 = vmul.f32 %v445, %v509
    %v574 = vmul.f32 %v446, %v510
    %v575 = vmul.f32 %v447, %v511
    %v576 = vmul.f32 %v448, %v512
    %v577 = vmul.f32 %v449, %v513
    %v578 = vmul.f32 %v450, %v514
    %v579 = vmul.f32 %v451, %v515
    %v580 = vmul.f32 %v452, %v516
    %v581 = vmul.f32 %v453, %v517
    %v582 = vmul.f32 %v454, %v518
    %v583 = vmul.f32 %v455, %v519
    %v584 = vmul.f32 %v456, %v520
    %v585 = vmul.f32 %v457, %v521
    %v586 = vmul.f32 %v458, %v522
    %v587 = vmul.f32 %v459, %v523
    %v588 = vmul.f32 %v460, %v524
    %v589 = vmul.f32 %v461, %v525
    %v590 = vmul.f32 %v462, %v526
    %v591 = vmul.f32 %v463, %v527
    %v592 = vmul.f32 %v464, %v528
    %v593 = vmul.f32 %v465, %v529
    %v594 = vmul.f32 %v466, %v530
    %v595 = vmul.f32 %v467, %v531
    %v596 = vmul.f32 %v468, %v532
    %v597 = vmul.f32 %v469, %v533
    %v598 = vmul.f32 %v470, %v534
    %v599 = vmul.f32 %v471, %v535
    %v600 = vadd.f32 %v88, %v536
    %v601 = vadd.f32 %v89, %v537
    %v602 = vadd.f32 %v90, %v538
    %v603 = vadd.f32 %v91, %v539
    %v604 = vadd.f32 %v92, %v540
    %v605 = vadd.f32 %v93, %v541
    %v606 = vadd.f32 %v94, %v542
    %v607 = vadd.f32 %v95, %v543
    %v608 = vadd.f32 %v96, %v544
    %v609 = vadd.f32 %v97, %v545
    %v610 = vadd.f32 %v98, %v546
    %v611 = vadd.f32 %v99, %v547
    %v612 = vadd.f32 %v100, %v548
    %v613 = vadd.f32 %v101, %v549
    %v614 = vadd.f32 %v102, %v550
    %v615 = vadd.f32 %v103, %v551
    %v616 = vadd.f32 %v104, %v552
    %v617 = vadd.f32 %v105, %v553
    %v618 = vadd.f32 %v106, %v554
    %v619 = vadd.f32 %v107, %v555
    %v620 = vadd.f32 %v108, %v556
    %v621 = vadd.f32 %v109, %v557
    %v622 = vadd.f32 %v110, %v558
    %v623 = vadd.f32 %v111, %v559
    %v624 = vadd.f32 %v112, %v560
    %v625 = vadd.f32 %v113, %v561
    %v626 = vadd.f32 %v114, %v562
    %v627 = vadd.f32 %v115, %v563
    %v628 = vadd.f32 %v116, %v564
    %v629 = vadd.f32 %v117, %v565
    %v630 = vadd.f32 %v118, %v566
    %v631 = vadd.f32 %v119, %v567
    %v632 = vadd.f32 %v120, %v568
    %v633 = vadd.f32 %v121, %v569
    %v634 = vadd.f32 %v122, %v570
    %v635 = vadd.f32 %v123, %v571
    %v636 = vadd.f32 %v124, %v572
    %v637 = vadd.f32 %v125, %v573
    %v638 = vadd.f32 %v126, %v574
    %v639 = vadd.f32 %v127, %v575
    %v640 = vadd.f32 %v128, %v576
    %v641 = vadd.f32 %v129, %v577
    %v642 = vadd.f32 %v130, %v578
    %v643 = vadd.f32 %v131, %v579
    %v644 = vadd.f32 %v132, %v580
    %v645 = vadd.f32 %v133, %v581
    %v646 = vadd.f32 %v134, %v582
    %v647 = vadd.f32 %v135, %v583
    %v648 = vadd.f32 %v136, %v584
    %v649 = vadd.f32 %v137, %v585
    %v650 = vadd.f32 %v138, %v586
    %v651 = vadd.f32 %v139, %v587
    %v652 = vadd.f32 %v140, %v588
    %v653 = vadd.f32 %v141, %v589
    %v654 = vadd.f32 %v142, %v590
    %v655 = vadd.f32 %v143, %v591
    %v656 = vadd.f32 %v144, %v592
    %v657 = vadd.f32 %v145, %v593
    %v658 = vadd.f32 %v146, %v594
    %v659 = vadd.f32 %v147, %v595
    %v660 = vadd.f32 %v148, %v596
    %v661 = vadd.f32 %v149, %v597
    %v662 = vadd.f32 %v150, %v598
    %v663 = vadd.f32 %v151, %v599
    %vm664 = vcmask 31744
    %v665 = vsel %vm664, %v600, 0.0
    %v666 = vsel %vm664, %v601, 0.0
    %v667 = vadd.f32 %v665, %v666
    %v668 = vsel %vm664, %v602, 0.0
    %v669 = vadd.f32 %v667, %v668
    %v670 = vsel %vm664, %v603, 0.0
    %v671 = vadd.f32 %v669, %v670
    %v672 = vsel %vm664, %v604, 0.0
    %v673 = vadd.f32 %v671, %v672
    %v674 = vsel %vm664, %v605, 0.0
    %v675 = vadd.f32 %v673, %v674
    %v676 = vsel %vm664, %v606, 0.0
    %v677 = vadd.f32 %v675, %v676
    %v678 = vsel %vm664, %v607, 0.0
    %v679 = vadd.f32 %v677, %v678
    %v680 = vsel %vm664, %v608, 0.0
    %v681 = vadd.f32 %v679, %v680
    %v682 = vsel %vm664, %v609, 0.0
    %v683 = vadd.f32 %v681, %v682
    %v684 = vsel %vm664, %v610, 0.0
    %v685 = vadd.f32 %v683, %v684
    %v686 = vsel %vm664, %v611, 0.0
    %v687 = vadd.f32 %v685, %v686
    %v688 = vsel %vm664, %v612, 0.0
    %v689 = vadd.f32 %v687, %v688
    %v690 = vsel %vm664, %v613, 0.0
    %v691 = vadd.f32 %v689, %v690
    %v692 = vsel %vm664, %v614, 0.0
    %v693 = vadd.f32 %v691, %v692
    %v694 = vsel %vm664, %v615, 0.0
    %v695 = vadd.f32 %v693, %v694
    %v696 = vsel %vm664, %v616, 0.0
    %v697 = vadd.f32 %v695, %v696
    %v698 = vsel %vm664, %v617, 0.0
    %v699 = vadd.f32 %v697, %v698
    %v700 = vsel %vm664, %v618, 0.0
    %v701 = vadd.f32 %v699, %v700
    %v702 = vsel %vm664, %v619, 0.0
    %v703 = vadd.f32 %v701, %v702
    %v704 = vsel %vm664, %v620, 0.0
    %v705 = vadd.f32 %v703, %v704
    %v706 = vsel %vm664, %v621, 0.0
    %v707 = vadd.f32 %v705, %v706
    %v708 = vsel %vm664, %v622, 0.0
    %v709 = vadd.f32 %v707, %v708
    %v710 = vsel %vm664, %v623, 0.0
    %v711 = vadd.f32 %v709, %v710
    %v712 = vsel %vm664, %v624, 0.0
    %v713 = vadd.f32 %v711, %v712
    %v714 = vsel %vm664, %v625, 0.0
    %v715 = vadd.f32 %v713, %v714
    %v716 = vsel %vm664, %v626, 0.0
    %v717 = vadd.f32 %v715, %v716
    %v718 = vsel %vm664, %v627, 0.0
    %v719 = vadd.f32 %v717, %v718
    %v720 = vsel %vm664, %v628, 0.0
    %v721 = vadd.f32 %v719, %v720
    %v722 = vsel %vm664, %v629, 0.0
    %v723 = vadd.f32 %v721, %v722
    %v724 = vsel %vm664, %v630, 0.0
    %v725 = vadd.f32 %v723, %v724
    %v726 = vsel %vm664, %v631, 0.0
    %v727 = vadd.f32 %v725, %v726
    %v728 = vsel %vm664, %v632, 0.0
    %v729 = vadd.f32 %v727, %v728
    %v730 = vsel %vm664, %v633, 0.0
    %v731 = vadd.f32 %v729, %v730
    %v732 = vsel %vm664, %v634, 0.0
    %v733 = vadd.f32 %v731, %v732
    %v734 = vsel %vm664, %v635, 0.0
    %v735 = vadd.f32 %v733, %v734
    %v736 = vsel %vm664, %v636, 0.0
    %v737 = vadd.f32 %v735, %v736
    %v738 = vsel %vm664, %v637, 0.0
    %v739 = vadd.f32 %v737, %v738
    %v740 = vsel %vm664, %v638, 0.0
    %v741 = vadd.f32 %v739, %v740
    %v742 = vsel %vm664, %v639, 0.0
    %v743 = vadd.f32 %v741, %v742
    %v744 = vsel %vm664, %v640, 0.0
    %v745 = vadd.f32 %v743, %v744
    %v746 = vsel %vm664, %v641, 0.0
    %v747 = vadd.f32 %v745, %v746
    %v748 = vsel %vm664, %v642, 0.0
    %v749 = vadd.f32 %v747, %v748
    %v750 = vsel %vm664, %v643, 0.0
    %v751 = vadd.f32 %v749, %v750
    %v752 = vsel %vm664, %v644, 0.0
    %v753 = vadd.f32 %v751, %v752
    %v754 = vsel %vm664, %v645, 0.0
    %v755 = vadd.f32 %v753, %v754
    %v756 = vsel %vm664, %v646, 0.0
    %v757 = vadd.f32 %v755, %v756
    %v758 = vsel %vm664, %v647, 0.0
    %v759 = vadd.f32 %v757, %v758
    %v760 = vsel %vm664, %v648, 0.0
    %v761 = vadd.f32 %v759, %v760
    %v762 = vsel %vm664, %v649, 0.0
    %v763 = vadd.f32 %v761, %v762
    %v764 = vsel %vm664, %v650, 0.0
    %v765 = vadd.f32 %v763, %v764
    %v766 = vsel %vm664, %v651, 0.0
    %v767 = vadd.f32 %v765, %v766
    %v768 = vsel %vm664, %v652, 0.0
    %v769 = vadd.f32 %v767, %v768
    %v770 = vsel %vm664, %v653, 0.0
    %v771 = vadd.f32 %v769, %v770
    %v772 = vsel %vm664, %v654, 0.0
    %v773 = vadd.f32 %v771, %v772
    %v774 = vsel %vm664, %v655, 0.0
    %v775 = vadd.f32 %v773, %v774
    %v776 = vsel %vm664, %v656, 0.0
    %v777 = vadd.f32 %v775, %v776
    %v778 = vsel %vm664, %v657, 0.0
    %v779 = vadd.f32 %v777, %v778
    %v780 = vsel %vm664, %v658, 0.0
    %v781 = vadd.f32 %v779, %v780
    %v782 = vsel %vm664, %v659, 0.0
    %v783 = vadd.f32 %v781, %v782
    %v784 = vsel %vm664, %v660, 0.0
    %v785 = vadd.f32 %v783, %v784
    %v786 = vsel %vm664, %v661, 0.0
    %v787 = vadd.f32 %v785, %v786
    %v788 = vsel %vm664, %v662, 0.0
    %v789 = vadd.f32 %v787, %v788
    %v790 = vsel %vm664, %v663, 0.0
    %v791 = vadd.f32 %v789, %v790
    %v792 = vrot.slane %v791, 4
    %v793 = vadd.f32 %v791, %v792
    %v794 = vrot.slane %v793, 2
    %v795 = vadd.f32 %v793, %v794
    %v796 = vrot.slane %v795, 1
    %v797 = vadd.f32 %v795, %v796
    %v798 = vmul.f32 %v600, %v600
    %v799 = vmul.f32 %v601, %v601
    %v800 = vmul.f32 %v602, %v602
    %v801 = vmul.f32 %v603, %v603
    %v802 = vmul.f32 %v604, %v604
    %v803 = vmul.f32 %v605, %v605
    %v804 = vmul.f32 %v606, %v606
    %v805 = vmul.f32 %v607, %v607
    %v806 = vmul.f32 %v608, %v608
    %v807 = vmul.f32 %v609, %v609
    %v808 = vmul.f32 %v610, %v610
    %v809 = vmul.f32 %v611, %v611
    %v810 = vmul.f32 %v612, %v612
    %v811 = vmul.f32 %v613, %v613
    %v812 = vmul.f32 %v614, %v614
    %v813 = vmul.f32 %v615, %v615
    %v814 = vmul.f32 %v616, %v616
    %v815 = vmul.f32 %v617, %v617
    %v816 = vmul.f32 %v618, %v618
    %v817 = vmul.f32 %v619, %v619
    %v818 = vmul.f32 %v620, %v620
    %v819 = vmul.f32 %v621, %v621
    %v820 = vmul.f32 %v622, %v622
    %v821 = vmul.f32 %v623, %v623
    %v822 = vmul.f32 %v624, %v624
    %v823 = vmul.f32 %v625, %v625
    %v824 = vmul.f32 %v626, %v626
    %v825 = vmul.f32 %v627, %v627
    %v826 = vmul.f32 %v628, %v628
    %v827 = vmul.f32 %v629, %v629
    %v828 = vmul.f32 %v630, %v630
    %v829 = vmul.f32 %v631, %v631
    %v830 = vmul.f32 %v632, %v632
    %v831 = vmul.f32 %v633, %v633
    %v832 = vmul.f32 %v634, %v634
    %v833 = vmul.f32 %v635, %v635
    %v834 = vmul.f32 %v636, %v636
    %v835 = vmul.f32 %v637, %v637
    %v836 = vmul.f32 %v638, %v638
    %v837 = vmul.f32 %v639, %v639
    %v838 = vmul.f32 %v640, %v640
    %v839 = vmul.f32 %v641, %v641
    %v840 = vmul.f32 %v642, %v642
    %v841 = vmul.f32 %v643, %v643
    %v842 = vmul.f32 %v644, %v644
    %v843 = vmul.f32 %v645, %v645
    %v844 = vmul.f32 %v646, %v646
    %v845 = vmul.f32 %v647, %v647
    %v846 = vmul.f32 %v648, %v648
    %v847 = vmul.f32 %v649, %v649
    %v848 = vmul.f32 %v650, %v650
    %v849 = vmul.f32 %v651, %v651
    %v850 = vmul.f32 %v652, %v652
    %v851 = vmul.f32 %v653, %v653
    %v852 = vmul.f32 %v654, %v654
    %v853 = vmul.f32 %v655, %v655
    %v854 = vmul.f32 %v656, %v656
    %v855 = vmul.f32 %v657, %v657
    %v856 = vmul.f32 %v658, %v658
    %v857 = vmul.f32 %v659, %v659
    %v858 = vmul.f32 %v660, %v660
    %v859 = vmul.f32 %v661, %v661
    %v860 = vmul.f32 %v662, %v662
    %v861 = vmul.f32 %v663, %v663
    %v862 = vsel %vm664, %v798, 0.0
    %v863 = vsel %vm664, %v799, 0.0
    %v864 = vadd.f32 %v862, %v863
    %v865 = vsel %vm664, %v800, 0.0
    %v866 = vadd.f32 %v864, %v865
    %v867 = vsel %vm664, %v801, 0.0
    %v868 = vadd.f32 %v866, %v867
    %v869 = vsel %vm664, %v802, 0.0
    %v870 = vadd.f32 %v868, %v869
    %v871 = vsel %vm664, %v803, 0.0
    %v872 = vadd.f32 %v870, %v871
    %v873 = vsel %vm664, %v804, 0.0
    %v874 = vadd.f32 %v872, %v873
    %v875 = vsel %vm664, %v805, 0.0
    %v876 = vadd.f32 %v874, %v875
    %v877 = vsel %vm664, %v806, 0.0
    %v878 = vadd.f32 %v876, %v877
    %v879 = vsel %vm664, %v807, 0.0
    %v880 = vadd.f32 %v878, %v879
    %v881 = vsel %vm664, %v808, 0.0
    %v882 = vadd.f32 %v880, %v881
    %v883 = vsel %vm664, %v809, 0.0
    %v884 = vadd.f32 %v882, %v883
    %v885 = vsel %vm664, %v810, 0.0
    %v886 = vadd.f32 %v884, %v885
    %v887 = vsel %vm664, %v811, 0.0
    %v888 = vadd.f32 %v886, %v887
    %v889 = vsel %vm664, %v812, 0.0
    %v890 = vadd.f32 %v888, %v889
    %v891 = vsel %vm664, %v813, 0.0
    %v892 = vadd.f32 %v890, %v891
    %v893 = vsel %vm664, %v814, 0.0
    %v894 = vadd.f32 %v892, %v893
    %v895 = vsel %vm664, %v815, 0.0
    %v896 = vadd.f32 %v894, %v895
    %v897 = vsel %vm664, %v816, 0.0
    %v898 = vadd.f32 %v896, %v897
    %v899 = vsel %vm664, %v817, 0.0
    %v900 = vadd.f32 %v898, %v899
    %v901 = vsel %vm664, %v818, 0.0
    %v902 = vadd.f32 %v900, %v901
    %v903 = vsel %vm664, %v819, 0.0
    %v904 = vadd.f32 %v902, %v903
    %v905 = vsel %vm664, %v820, 0.0
    %v906 = vadd.f32 %v904, %v905
    %v907 = vsel %vm664, %v821, 0.0
    %v908 = vadd.f32 %v906, %v907
    %v909 = vsel %vm664, %v822, 0.0
    %v910 = vadd.f32 %v908, %v909
    %v911 = vsel %vm664, %v823, 0.0
    %v912 = vadd.f32 %v910, %v911
    %v913 = vsel %vm664, %v824, 0.0
    %v914 = vadd.f32 %v912, %v913
    %v915 = vsel %vm664, %v825, 0.0
    %v916 = vadd.f32 %v914, %v915
    %v917 = vsel %vm664, %v826, 0.0
    %v918 = vadd.f32 %v916, %v917
    %v919 = vsel %vm664, %v827, 0.0
    %v920 = vadd.f32 %v918, %v919
    %v921 = vsel %vm664, %v828, 0.0
    %v922 = vadd.f32 %v920, %v921
    %v923 = vsel %vm664, %v829, 0.0
    %v924 = vadd.f32 %v922, %v923
    %v925 = vsel %vm664, %v830, 0.0
    %v926 = vadd.f32 %v924, %v925
    %v927 = vsel %vm664, %v831, 0.0
    %v928 = vadd.f32 %v926, %v927
    %v929 = vsel %vm664, %v832, 0.0
    %v930 = vadd.f32 %v928, %v929
    %v931 = vsel %vm664, %v833, 0.0
    %v932 = vadd.f32 %v930, %v931
    %v933 = vsel %vm664, %v834, 0.0
    %v934 = vadd.f32 %v932, %v933
    %v935 = vsel %vm664, %v835, 0.0
    %v936 = vadd.f32 %v934, %v935
    %v937 = vsel %vm664, %v836, 0.0
    %v938 = vadd.f32 %v936, %v937
    %v939 = vsel %vm664, %v837, 0.0
    %v940 = vadd.f32 %v938, %v939
    %v941 = vsel %vm664, %v838, 0.0
    %v942 = vadd.f32 %v940, %v941
    %v943 = vsel %vm664, %v839, 0.0
    %v944 = vadd.f32 %v942, %v943
    %v945 = vsel %vm664, %v840, 0.0
    %v946 = vadd.f32 %v944, %v945
    %v947 = vsel %vm664, %v841, 0.0
    %v948 = vadd.f32 %v946, %v947
    %v949 = vsel %vm664, %v842, 0.0
    %v950 = vadd.f32 %v948, %v949
    %v951 = vsel %vm664, %v843, 0.0
    %v952 = vadd.f32 %v950, %v951
    %v953 = vsel %vm664, %v844, 0.0
    %v954 = vadd.f32 %v952, %v953
    %v955 = vsel %vm664, %v845, 0.0
    %v956 = vadd.f32 %v954, %v955
    %v957 = vsel %vm664, %v846, 0.0
    %v958 = vadd.f32 %v956, %v957
    %v959 = vsel %vm664, %v847, 0.0
    %v960 = vadd.f32 %v958, %v959
    %v961 = vsel %vm664, %v848, 0.0
    %v962 = vadd.f32 %v960, %v961
    %v963 = vsel %vm664, %v849, 0.0
    %v964 = vadd.f32 %v962, %v963
    %v965 = vsel %vm664, %v850, 0.0
    %v966 = vadd.f32 %v964, %v965
    %v967 = vsel %vm664, %v851, 0.0
    %v968 = vadd.f32 %v966, %v967
    %v969 = vsel %vm664, %v852, 0.0
    %v970 = vadd.f32 %v968, %v969
    %v971 = vsel %vm664, %v853, 0.0
    %v972 = vadd.f32 %v970, %v971
    %v973 = vsel %vm664, %v854, 0.0
    %v974 = vadd.f32 %v972, %v973
    %v975 = vsel %vm664, %v855, 0.0
    %v976 = vadd.f32 %v974, %v975
    %v977 = vsel %vm664, %v856, 0.0
    %v978 = vadd.f32 %v976, %v977
    %v979 = vsel %vm664, %v857, 0.0
    %v980 = vadd.f32 %v978, %v979
    %v981 = vsel %vm664, %v858, 0.0
    %v982 = vadd.f32 %v980, %v981
    %v983 = vsel %vm664, %v859, 0.0
    %v984 = vadd.f32 %v982, %v983
    %v985 = vsel %vm664, %v860, 0.0
    %v986 = vadd.f32 %v984, %v985
    %v987 = vsel %vm664, %v861, 0.0
    %v988 = vadd.f32 %v986, %v987
    %v989 = vrot.slane %v988, 4
    %v990 = vadd.f32 %v988, %v989
    %v991 = vrot.slane %v990, 2
    %v992 = vadd.f32 %v990, %v991
    %v993 = vrot.slane %v992, 1
    %v994 = vadd.f32 %v992, %v993
    %v995 = vmul.f32 %v797, 0.001953125
    %v996 = vmul.f32 %v994, 0.001953125
    %v997 = vmul.f32 %v995, %v995
    %v998 = vsub.f32 %v996, %v997
    %v999 = vld [vmem:[%s4] sm:$0x1]
    %v1000 = vadd.f32 %v998, 1e-05
    %v1001 = vrsqrt.pop %v1000
    %v1002 = vmul.f32 %v1001, %v1000
    %v1003 = vmul.f32 %v1002, %v1001
    %v1004 = vmul.f32 0.5, %v1003
    %v1005 = vsub.f32 1.5, %v1004
    %v1006 = vmul.f32 %v1001, %v1005
    %vm1007 = vweird.f32 %v1000
    %vm1008 = vweird.f32 %v1001
    %vm1009 = vmor %vm1007, %vm1008
    %v1010 = vsel %vm1009, %v1001, %v1006
    %v1011 = vmul.f32 %v999, %v1010
    %v1012 = vld [vmem:[%s5] sm:$0x1]
    %v1013 = vmul.f32 %v995, %v1011
    %v1014 = vsub.f32 %v1012, %v1013
    %v1016 = vperm.slane %v1011, 0
    %v1018 = vmul.f32 %v600, %v1016
    %v1019 = vmul.f32 %v601, %v1016
    %v1020 = vmul.f32 %v602, %v1016
    %v1021 = vmul.f32 %v603, %v1016
    %v1022 = vmul.f32 %v604, %v1016
    %v1023 = vmul.f32 %v605, %v1016
    %v1024 = vmul.f32 %v606, %v1016
    %v1025 = vmul.f32 %v607, %v1016
    %v1026 = vmul.f32 %v608, %v1016
    %v1027 = vmul.f32 %v609, %v1016
    %v1028 = vmul.f32 %v610, %v1016
    %v1029 = vmul.f32 %v611, %v1016
    %v1030 = vmul.f32 %v612, %v1016
    %v1031 = vmul.f32 %v613, %v1016
    %v1032 = vmul.f32 %v614, %v1016
    %v1033 = vmul.f32 %v615, %v1016
    %v1034 = vmul.f32 %v616, %v1016
    %v1035 = vmul.f32 %v617, %v1016
    %v1036 = vmul.f32 %v618, %v1016
    %v1037 = vmul.f32 %v619, %v1016
    %v1038 = vmul.f32 %v620, %v1016
    %v1039 = vmul.f32 %v621, %v1016
    %v1040 = vmul.f32 %v622, %v1016
    %v1041 = vmul.f32 %v623, %v1016
    %v1042 = vmul.f32 %v624, %v1016
    %v1043 = vmul.f32 %v625, %v1016
    %v1044 = vmul.f32 %v626, %v1016
    %v1045 = vmul.f32 %v627, %v1016
    %v1046 = vmul.f32 %v628, %v1016
    %v1047 = vmul.f32 %v629, %v1016
    %v1048 = vmul.f32 %v630, %v1016
    %v1049 = vmul.f32 %v631, %v1016
    %v1050 = vmul.f32 %v632, %v1016
    %v1051 = vmul.f32 %v633, %v1016
    %v1052 = vmul.f32 %v634, %v1016
    %v1053 = vmul.f32 %v635, %v1016
    %v1054 = vmul.f32 %v636, %v1016
    %v1055 = vmul.f32 %v637, %v1016
    %v1056 = vmul.f32 %v638, %v1016
    %v1057 = vmul.f32 %v639, %v1016
    %v1058 = vmul.f32 %v640, %v1016
    %v1059 = vmul.f32 %v641, %v1016
    %v1060 = vmul.f32 %v642, %v1016
    %v1061 = vmul.f32 %v643, %v1016
    %v1062 = vmul.f32 %v644, %v1016
    %v1063 = vmul.f32 %v645, %v1016
    %v1064 = vmul.f32 %v646, %v1016
    %v1065 = vmul.f32 %v647, %v1016
    %v1066 = vmul.f32 %v648, %v1016
    %v1067 = vmul.f32 %v649, %v1016
    %v1068 = vmul.f32 %v650, %v1016
    %v1069 = vmul.f32 %v651, %v1016
    %v1070 = vmul.f32 %v652, %v1016
    %v1071 = vmul.f32 %v653, %v1016
    %v1072 = vmul.f32 %v654, %v1016
    %v1073 = vmul.f32 %v655, %v1016
    %v1074 = vmul.f32 %v656, %v1016
    %v1075 = vmul.f32 %v657, %v1016
    %v1076 = vmul.f32 %v658, %v1016
    %v1077 = vmul.f32 %v659, %v1016
    %v1078 = vmul.f32 %v660, %v1016
    %v1079 = vmul.f32 %v661, %v1016
    %v1080 = vmul.f32 %v662, %v1016
    %v1081 = vmul.f32 %v663, %v1016
    %v1083 = vperm.slane %v1014, 0
    %v1085 = vadd.f32 %v1018, %v1083
    %v1086 = vadd.f32 %v1019, %v1083
    %v1087 = vadd.f32 %v1020, %v1083
    %v1088 = vadd.f32 %v1021, %v1083
    %v1089 = vadd.f32 %v1022, %v1083
    %v1090 = vadd.f32 %v1023, %v1083
    %v1091 = vadd.f32 %v1024, %v1083
    %v1092 = vadd.f32 %v1025, %v1083
    %v1093 = vadd.f32 %v1026, %v1083
    %v1094 = vadd.f32 %v1027, %v1083
    %v1095 = vadd.f32 %v1028, %v1083
    %v1096 = vadd.f32 %v1029, %v1083
    %v1097 = vadd.f32 %v1030, %v1083
    %v1098 = vadd.f32 %v1031, %v1083
    %v1099 = vadd.f32 %v1032, %v1083
    %v1100 = vadd.f32 %v1033, %v1083
    %v1101 = vadd.f32 %v1034, %v1083
    %v1102 = vadd.f32 %v1035, %v1083
    %v1103 = vadd.f32 %v1036, %v1083
    %v1104 = vadd.f32 %v1037, %v1083
    %v1105 = vadd.f32 %v1038, %v1083
    %v1106 = vadd.f32 %v1039, %v1083
    %v1107 = vadd.f32 %v1040, %v1083
    %v1108 = vadd.f32 %v1041, %v1083
    %v1109 = vadd.f32 %v1042, %v1083
    %v1110 = vadd.f32 %v1043, %v1083
    %v1111 = vadd.f32 %v1044, %v1083
    %v1112 = vadd.f32 %v1045, %v1083
    %v1113 = vadd.f32 %v1046, %v1083
    %v1114 = vadd.f32 %v1047, %v1083
    %v1115 = vadd.f32 %v1048, %v1083
    %v1116 = vadd.f32 %v1049, %v1083
    %v1117 = vadd.f32 %v1050, %v1083
    %v1118 = vadd.f32 %v1051, %v1083
    %v1119 = vadd.f32 %v1052, %v1083
    %v1120 = vadd.f32 %v1053, %v1083
    %v1121 = vadd.f32 %v1054, %v1083
    %v1122 = vadd.f32 %v1055, %v1083
    %v1123 = vadd.f32 %v1056, %v1083
    %v1124 = vadd.f32 %v1057, %v1083
    %v1125 = vadd.f32 %v1058, %v1083
    %v1126 = vadd.f32 %v1059, %v1083
    %v1127 = vadd.f32 %v1060, %v1083
    %v1128 = vadd.f32 %v1061, %v1083
    %v1129 = vadd.f32 %v1062, %v1083
    %v1130 = vadd.f32 %v1063, %v1083
    %v1131 = vadd.f32 %v1064, %v1083
    %v1132 = vadd.f32 %v1065, %v1083
    %v1133 = vadd.f32 %v1066, %v1083
    %v1134 = vadd.f32 %v1067, %v1083
    %v1135 = vadd.f32 %v1068, %v1083
    %v1136 = vadd.f32 %v1069, %v1083
    %v1137 = vadd.f32 %v1070, %v1083
    %v1138 = vadd.f32 %v1071, %v1083
    %v1139 = vadd.f32 %v1072, %v1083
    %v1140 = vadd.f32 %v1073, %v1083
    %v1141 = vadd.f32 %v1074, %v1083
    %v1142 = vadd.f32 %v1075, %v1083
    %v1143 = vadd.f32 %v1076, %v1083
    %v1144 = vadd.f32 %v1077, %v1083
    %v1145 = vadd.f32 %v1078, %v1083
    %v1146 = vadd.f32 %v1079, %v1083
    %v1147 = vadd.f32 %v1080, %v1083
    %v1148 = vadd.f32 %v1081, %v1083
    %v1149 = vmax.f32 %v1085, 0.0
    %v1150 = vmax.f32 %v1086, 0.0
    %v1151 = vmax.f32 %v1087, 0.0
    %v1152 = vmax.f32 %v1088, 0.0
    %v1153 = vmax.f32 %v1089, 0.0
    %v1154 = vmax.f32 %v1090, 0.0
    %v1155 = vmax.f32 %v1091, 0.0
    %v1156 = vmax.f32 %v1092, 0.0
    %v1157 = vmax.f32 %v1093, 0.0
    %v1158 = vmax.f32 %v1094, 0.0
    %v1159 = vmax.f32 %v1095, 0.0
    %v1160 = vmax.f32 %v1096, 0.0
    %v1161 = vmax.f32 %v1097, 0.0
    %v1162 = vmax.f32 %v1098, 0.0
    %v1163 = vmax.f32 %v1099, 0.0
    %v1164 = vmax.f32 %v1100, 0.0
    %v1165 = vmax.f32 %v1101, 0.0
    %v1166 = vmax.f32 %v1102, 0.0
    %v1167 = vmax.f32 %v1103, 0.0
    %v1168 = vmax.f32 %v1104, 0.0
    %v1169 = vmax.f32 %v1105, 0.0
    %v1170 = vmax.f32 %v1106, 0.0
    %v1171 = vmax.f32 %v1107, 0.0
    %v1172 = vmax.f32 %v1108, 0.0
    %v1173 = vmax.f32 %v1109, 0.0
    %v1174 = vmax.f32 %v1110, 0.0
    %v1175 = vmax.f32 %v1111, 0.0
    %v1176 = vmax.f32 %v1112, 0.0
    %v1177 = vmax.f32 %v1113, 0.0
    %v1178 = vmax.f32 %v1114, 0.0
    %v1179 = vmax.f32 %v1115, 0.0
    %v1180 = vmax.f32 %v1116, 0.0
    %v1181 = vmax.f32 %v1117, 0.0
    %v1182 = vmax.f32 %v1118, 0.0
    %v1183 = vmax.f32 %v1119, 0.0
    %v1184 = vmax.f32 %v1120, 0.0
    %v1185 = vmax.f32 %v1121, 0.0
    %v1186 = vmax.f32 %v1122, 0.0
    %v1187 = vmax.f32 %v1123, 0.0
    %v1188 = vmax.f32 %v1124, 0.0
    %v1189 = vmax.f32 %v1125, 0.0
    %v1190 = vmax.f32 %v1126, 0.0
    %v1191 = vmax.f32 %v1127, 0.0
    %v1192 = vmax.f32 %v1128, 0.0
    %v1193 = vmax.f32 %v1129, 0.0
    %v1194 = vmax.f32 %v1130, 0.0
    %v1195 = vmax.f32 %v1131, 0.0
    %v1196 = vmax.f32 %v1132, 0.0
    %v1197 = vmax.f32 %v1133, 0.0
    %v1198 = vmax.f32 %v1134, 0.0
    %v1199 = vmax.f32 %v1135, 0.0
    %v1200 = vmax.f32 %v1136, 0.0
    %v1201 = vmax.f32 %v1137, 0.0
    %v1202 = vmax.f32 %v1138, 0.0
    %v1203 = vmax.f32 %v1139, 0.0
    %v1204 = vmax.f32 %v1140, 0.0
    %v1205 = vmax.f32 %v1141, 0.0
    %v1206 = vmax.f32 %v1142, 0.0
    %v1207 = vmax.f32 %v1143, 0.0
    %v1208 = vmax.f32 %v1144, 0.0
    %v1209 = vmax.f32 %v1145, 0.0
    %v1210 = vmax.f32 %v1146, 0.0
    %v1211 = vmax.f32 %v1147, 0.0
    %v1212 = vmax.f32 %v1148, 0.0
    %vm1277 = vcmask 1040384
    %v1278 = vrot.slane %v1149, 7
    %v1279 = vrot.slane %v1150, 7
    %v1280 = vsel %vm1277, %v1278, %v1279
    %v1281 = vrot.slane %v1151, 7
    %v1282 = vrot.slane %v1152, 7
    %v1283 = vsel %vm1277, %v1281, %v1282
    %v1284 = vrot.slane %v1153, 7
    %v1285 = vrot.slane %v1154, 7
    %v1286 = vsel %vm1277, %v1284, %v1285
    %v1287 = vrot.slane %v1155, 7
    %v1288 = vrot.slane %v1156, 7
    %v1289 = vsel %vm1277, %v1287, %v1288
    %v1290 = vrot.slane %v1157, 7
    %v1291 = vrot.slane %v1158, 7
    %v1292 = vsel %vm1277, %v1290, %v1291
    %v1293 = vrot.slane %v1159, 7
    %v1294 = vrot.slane %v1160, 7
    %v1295 = vsel %vm1277, %v1293, %v1294
    %v1296 = vrot.slane %v1161, 7
    %v1297 = vrot.slane %v1162, 7
    %v1298 = vsel %vm1277, %v1296, %v1297
    %v1299 = vrot.slane %v1163, 7
    %v1300 = vrot.slane %v1164, 7
    %v1301 = vsel %vm1277, %v1299, %v1300
    %v1302 = vrot.slane %v1165, 7
    %v1303 = vrot.slane %v1166, 7
    %v1304 = vsel %vm1277, %v1302, %v1303
    %v1305 = vrot.slane %v1167, 7
    %v1306 = vrot.slane %v1168, 7
    %v1307 = vsel %vm1277, %v1305, %v1306
    %v1308 = vrot.slane %v1169, 7
    %v1309 = vrot.slane %v1170, 7
    %v1310 = vsel %vm1277, %v1308, %v1309
    %v1311 = vrot.slane %v1171, 7
    %v1312 = vrot.slane %v1172, 7
    %v1313 = vsel %vm1277, %v1311, %v1312
    %v1314 = vrot.slane %v1173, 7
    %v1315 = vrot.slane %v1174, 7
    %v1316 = vsel %vm1277, %v1314, %v1315
    %v1317 = vrot.slane %v1175, 7
    %v1318 = vrot.slane %v1176, 7
    %v1319 = vsel %vm1277, %v1317, %v1318
    %v1320 = vrot.slane %v1177, 7
    %v1321 = vrot.slane %v1178, 7
    %v1322 = vsel %vm1277, %v1320, %v1321
    %v1323 = vrot.slane %v1179, 7
    %v1324 = vrot.slane %v1180, 7
    %v1325 = vsel %vm1277, %v1323, %v1324
    %v1326 = vrot.slane %v1181, 7
    %v1327 = vrot.slane %v1182, 7
    %v1328 = vsel %vm1277, %v1326, %v1327
    %v1329 = vrot.slane %v1183, 7
    %v1330 = vrot.slane %v1184, 7
    %v1331 = vsel %vm1277, %v1329, %v1330
    %v1332 = vrot.slane %v1185, 7
    %v1333 = vrot.slane %v1186, 7
    %v1334 = vsel %vm1277, %v1332, %v1333
    %v1335 = vrot.slane %v1187, 7
    %v1336 = vrot.slane %v1188, 7
    %v1337 = vsel %vm1277, %v1335, %v1336
    %v1338 = vrot.slane %v1189, 7
    %v1339 = vrot.slane %v1190, 7
    %v1340 = vsel %vm1277, %v1338, %v1339
    %v1341 = vrot.slane %v1191, 7
    %v1342 = vrot.slane %v1192, 7
    %v1343 = vsel %vm1277, %v1341, %v1342
    %v1344 = vrot.slane %v1193, 7
    %v1345 = vrot.slane %v1194, 7
    %v1346 = vsel %vm1277, %v1344, %v1345
    %v1347 = vrot.slane %v1195, 7
    %v1348 = vrot.slane %v1196, 7
    %v1349 = vsel %vm1277, %v1347, %v1348
    %v1350 = vrot.slane %v1197, 7
    %v1351 = vrot.slane %v1198, 7
    %v1352 = vsel %vm1277, %v1350, %v1351
    %v1353 = vrot.slane %v1199, 7
    %v1354 = vrot.slane %v1200, 7
    %v1355 = vsel %vm1277, %v1353, %v1354
    %v1356 = vrot.slane %v1201, 7
    %v1357 = vrot.slane %v1202, 7
    %v1358 = vsel %vm1277, %v1356, %v1357
    %v1359 = vrot.slane %v1203, 7
    %v1360 = vrot.slane %v1204, 7
    %v1361 = vsel %vm1277, %v1359, %v1360
    %v1362 = vrot.slane %v1205, 7
    %v1363 = vrot.slane %v1206, 7
    %v1364 = vsel %vm1277, %v1362, %v1363
    %v1365 = vrot.slane %v1207, 7
    %v1366 = vrot.slane %v1208, 7
    %v1367 = vsel %vm1277, %v1365, %v1366
    %v1368 = vrot.slane %v1209, 7
    %v1369 = vrot.slane %v1210, 7
    %v1370 = vsel %vm1277, %v1368, %v1369
    %v1371 = vrot.slane %v1211, 7
    %v1372 = vrot.slane %v1212, 7
    %v1373 = vsel %vm1277, %v1371, %v1372
    %v1468 = vsel %vm1277, 0.0, %v1278
    %v1469 = vsel %vm1277, 0.0, %v1281
    %v1470 = vsel %vm1277, 0.0, %v1284
    %v1471 = vsel %vm1277, 0.0, %v1287
    %v1472 = vsel %vm1277, 0.0, %v1290
    %v1473 = vsel %vm1277, 0.0, %v1293
    %v1474 = vsel %vm1277, 0.0, %v1296
    %v1475 = vsel %vm1277, 0.0, %v1299
    %v1476 = vsel %vm1277, 0.0, %v1302
    %v1477 = vsel %vm1277, 0.0, %v1305
    %v1478 = vsel %vm1277, 0.0, %v1308
    %v1479 = vsel %vm1277, 0.0, %v1311
    %v1480 = vsel %vm1277, 0.0, %v1314
    %v1481 = vsel %vm1277, 0.0, %v1317
    %v1482 = vsel %vm1277, 0.0, %v1320
    %v1483 = vsel %vm1277, 0.0, %v1323
    %v1484 = vsel %vm1277, 0.0, %v1326
    %v1485 = vsel %vm1277, 0.0, %v1329
    %v1486 = vsel %vm1277, 0.0, %v1332
    %v1487 = vsel %vm1277, 0.0, %v1335
    %v1488 = vsel %vm1277, 0.0, %v1338
    %v1489 = vsel %vm1277, 0.0, %v1341
    %v1490 = vsel %vm1277, 0.0, %v1344
    %v1491 = vsel %vm1277, 0.0, %v1347
    %v1492 = vsel %vm1277, 0.0, %v1350
    %v1493 = vsel %vm1277, 0.0, %v1353
    %v1494 = vsel %vm1277, 0.0, %v1356
    %v1495 = vsel %vm1277, 0.0, %v1359
    %v1496 = vsel %vm1277, 0.0, %v1362
    %v1497 = vsel %vm1277, 0.0, %v1365
    %v1498 = vsel %vm1277, 0.0, %v1368
    %v1499 = vsel %vm1277, 0.0, %v1371
    %v1500 = vsel %vm1277, %v1279, 0.0
    %v1501 = vsel %vm1277, %v1282, 0.0
    %v1502 = vsel %vm1277, %v1285, 0.0
    %v1503 = vsel %vm1277, %v1288, 0.0
    %v1504 = vsel %vm1277, %v1291, 0.0
    %v1505 = vsel %vm1277, %v1294, 0.0
    %v1506 = vsel %vm1277, %v1297, 0.0
    %v1507 = vsel %vm1277, %v1300, 0.0
    %v1508 = vsel %vm1277, %v1303, 0.0
    %v1509 = vsel %vm1277, %v1306, 0.0
    %v1510 = vsel %vm1277, %v1309, 0.0
    %v1511 = vsel %vm1277, %v1312, 0.0
    %v1512 = vsel %vm1277, %v1315, 0.0
    %v1513 = vsel %vm1277, %v1318, 0.0
    %v1514 = vsel %vm1277, %v1321, 0.0
    %v1515 = vsel %vm1277, %v1324, 0.0
    %v1516 = vsel %vm1277, %v1327, 0.0
    %v1517 = vsel %vm1277, %v1330, 0.0
    %v1518 = vsel %vm1277, %v1333, 0.0
    %v1519 = vsel %vm1277, %v1336, 0.0
    %v1520 = vsel %vm1277, %v1339, 0.0
    %v1521 = vsel %vm1277, %v1342, 0.0
    %v1522 = vsel %vm1277, %v1345, 0.0
    %v1523 = vsel %vm1277, %v1348, 0.0
    %v1524 = vsel %vm1277, %v1351, 0.0
    %v1525 = vsel %vm1277, %v1354, 0.0
    %v1526 = vsel %vm1277, %v1357, 0.0
    %v1527 = vsel %vm1277, %v1360, 0.0
    %v1528 = vsel %vm1277, %v1363, 0.0
    %v1529 = vsel %vm1277, %v1366, 0.0
    %v1530 = vsel %vm1277, %v1369, 0.0
    %v1531 = vsel %vm1277, %v1372, 0.0
    %vm1593 = vcmask 1046528
    %v1594 = vrot.slane 0.0, 1
    %v1595 = vsel %vm1593, %v1594, %v1594
    %v1596 = vrot.slane %v1468, 1
    %v1597 = vrot.slane %v1280, 1
    %v1598 = vsel %vm1593, %v1596, %v1597
    %v1599 = vrot.slane %v1500, 1
    %v1600 = vsel %vm1593, %v1597, %v1599
    %v1601 = vrot.slane %v1469, 1
    %v1602 = vrot.slane %v1283, 1
    %v1603 = vsel %vm1593, %v1601, %v1602
    %v1604 = vrot.slane %v1501, 1
    %v1605 = vsel %vm1593, %v1602, %v1604
    %v1606 = vrot.slane %v1470, 1
    %v1607 = vrot.slane %v1286, 1
    %v1608 = vsel %vm1593, %v1606, %v1607
    %v1609 = vrot.slane %v1502, 1
    %v1610 = vsel %vm1593, %v1607, %v1609
    %v1611 = vrot.slane %v1471, 1
    %v1612 = vrot.slane %v1289, 1
    %v1613 = vsel %vm1593, %v1611, %v1612
    %v1614 = vrot.slane %v1503, 1
    %v1615 = vsel %vm1593, %v1612, %v1614
    %v1616 = vrot.slane %v1472, 1
    %v1617 = vrot.slane %v1292, 1
    %v1618 = vsel %vm1593, %v1616, %v1617
    %v1619 = vrot.slane %v1504, 1
    %v1620 = vsel %vm1593, %v1617, %v1619
    %v1621 = vrot.slane %v1473, 1
    %v1622 = vrot.slane %v1295, 1
    %v1623 = vsel %vm1593, %v1621, %v1622
    %v1624 = vrot.slane %v1505, 1
    %v1625 = vsel %vm1593, %v1622, %v1624
    %v1626 = vrot.slane %v1474, 1
    %v1627 = vrot.slane %v1298, 1
    %v1628 = vsel %vm1593, %v1626, %v1627
    %v1629 = vrot.slane %v1506, 1
    %v1630 = vsel %vm1593, %v1627, %v1629
    %v1631 = vrot.slane %v1475, 1
    %v1632 = vrot.slane %v1301, 1
    %v1633 = vsel %vm1593, %v1631, %v1632
    %v1634 = vrot.slane %v1507, 1
    %v1635 = vsel %vm1593, %v1632, %v1634
    %v1636 = vrot.slane %v1476, 1
    %v1637 = vrot.slane %v1304, 1
    %v1638 = vsel %vm1593, %v1636, %v1637
    %v1639 = vrot.slane %v1508, 1
    %v1640 = vsel %vm1593, %v1637, %v1639
    %v1641 = vrot.slane %v1477, 1
    %v1642 = vrot.slane %v1307, 1
    %v1643 = vsel %vm1593, %v1641, %v1642
    %v1644 = vrot.slane %v1509, 1
    %v1645 = vsel %vm1593, %v1642, %v1644
    %v1646 = vrot.slane %v1478, 1
    %v1647 = vrot.slane %v1310, 1
    %v1648 = vsel %vm1593, %v1646, %v1647
    %v1649 = vrot.slane %v1510, 1
    %v1650 = vsel %vm1593, %v1647, %v1649
    %v1651 = vrot.slane %v1479, 1
    %v1652 = vrot.slane %v1313, 1
    %v1653 = vsel %vm1593, %v1651, %v1652
    %v1654 = vrot.slane %v1511, 1
    %v1655 = vsel %vm1593, %v1652, %v1654
    %v1656 = vrot.slane %v1480, 1
    %v1657 = vrot.slane %v1316, 1
    %v1658 = vsel %vm1593, %v1656, %v1657
    %v1659 = vrot.slane %v1512, 1
    %v1660 = vsel %vm1593, %v1657, %v1659
    %v1661 = vrot.slane %v1481, 1
    %v1662 = vrot.slane %v1319, 1
    %v1663 = vsel %vm1593, %v1661, %v1662
    %v1664 = vrot.slane %v1513, 1
    %v1665 = vsel %vm1593, %v1662, %v1664
    %v1666 = vrot.slane %v1482, 1
    %v1667 = vrot.slane %v1322, 1
    %v1668 = vsel %vm1593, %v1666, %v1667
    %v1669 = vrot.slane %v1514, 1
    %v1670 = vsel %vm1593, %v1667, %v1669
    %v1671 = vrot.slane %v1484, 1
    %v1672 = vrot.slane %v1328, 1
    %v1673 = vsel %vm1593, %v1671, %v1672
    %v1674 = vrot.slane %v1516, 1
    %v1675 = vsel %vm1593, %v1672, %v1674
    %v1676 = vrot.slane %v1485, 1
    %v1677 = vrot.slane %v1331, 1
    %v1678 = vsel %vm1593, %v1676, %v1677
    %v1679 = vrot.slane %v1517, 1
    %v1680 = vsel %vm1593, %v1677, %v1679
    %v1681 = vrot.slane %v1486, 1
    %v1682 = vrot.slane %v1334, 1
    %v1683 = vsel %vm1593, %v1681, %v1682
    %v1684 = vrot.slane %v1518, 1
    %v1685 = vsel %vm1593, %v1682, %v1684
    %v1686 = vrot.slane %v1487, 1
    %v1687 = vrot.slane %v1337, 1
    %v1688 = vsel %vm1593, %v1686, %v1687
    %v1689 = vrot.slane %v1519, 1
    %v1690 = vsel %vm1593, %v1687, %v1689
    %v1691 = vrot.slane %v1488, 1
    %v1692 = vrot.slane %v1340, 1
    %v1693 = vsel %vm1593, %v1691, %v1692
    %v1694 = vrot.slane %v1520, 1
    %v1695 = vsel %vm1593, %v1692, %v1694
    %v1696 = vrot.slane %v1489, 1
    %v1697 = vrot.slane %v1343, 1
    %v1698 = vsel %vm1593, %v1696, %v1697
    %v1699 = vrot.slane %v1521, 1
    %v1700 = vsel %vm1593, %v1697, %v1699
    %v1701 = vrot.slane %v1490, 1
    %v1702 = vrot.slane %v1346, 1
    %v1703 = vsel %vm1593, %v1701, %v1702
    %v1704 = vrot.slane %v1522, 1
    %v1705 = vsel %vm1593, %v1702, %v1704
    %v1706 = vrot.slane %v1491, 1
    %v1707 = vrot.slane %v1349, 1
    %v1708 = vsel %vm1593, %v1706, %v1707
    %v1709 = vrot.slane %v1523, 1
    %v1710 = vsel %vm1593, %v1707, %v1709
    %v1711 = vrot.slane %v1492, 1
    %v1712 = vrot.slane %v1352, 1
    %v1713 = vsel %vm1593, %v1711, %v1712
    %v1714 = vrot.slane %v1524, 1
    %v1715 = vsel %vm1593, %v1712, %v1714
    %v1716 = vrot.slane %v1493, 1
    %v1717 = vrot.slane %v1355, 1
    %v1718 = vsel %vm1593, %v1716, %v1717
    %v1719 = vrot.slane %v1525, 1
    %v1720 = vsel %vm1593, %v1717, %v1719
    %v1721 = vrot.slane %v1494, 1
    %v1722 = vrot.slane %v1358, 1
    %v1723 = vsel %vm1593, %v1721, %v1722
    %v1724 = vrot.slane %v1526, 1
    %v1725 = vsel %vm1593, %v1722, %v1724
    %v1726 = vrot.slane %v1495, 1
    %v1727 = vrot.slane %v1361, 1
    %v1728 = vsel %vm1593, %v1726, %v1727
    %v1729 = vrot.slane %v1527, 1
    %v1730 = vsel %vm1593, %v1727, %v1729
    %v1731 = vrot.slane %v1496, 1
    %v1732 = vrot.slane %v1364, 1
    %v1733 = vsel %vm1593, %v1731, %v1732
    %v1734 = vrot.slane %v1528, 1
    %v1735 = vsel %vm1593, %v1732, %v1734
    %v1736 = vrot.slane %v1497, 1
    %v1737 = vrot.slane %v1367, 1
    %v1738 = vsel %vm1593, %v1736, %v1737
    %v1739 = vrot.slane %v1529, 1
    %v1740 = vsel %vm1593, %v1737, %v1739
    %v1741 = vrot.slane %v1498, 1
    %v1742 = vrot.slane %v1370, 1
    %v1743 = vsel %vm1593, %v1741, %v1742
    %v1744 = vrot.slane %v1530, 1
    %v1745 = vsel %vm1593, %v1742, %v1744
    %1746 = vrot.lane.b32.xlu0 %v1595, 4
    %v1747 = vpop.permute.xlu0 %1746
    %1748 = vrot.lane.b32.xlu0 %v1598, 4
    %v1749 = vpop.permute.xlu0 %1748
    %1750 = vrot.lane.b32.xlu0 %v1600, 4
    %v1751 = vpop.permute.xlu0 %1750
    %1752 = vrot.lane.b32.xlu0 %v1603, 4
    %v1753 = vpop.permute.xlu0 %1752
    %1754 = vrot.lane.b32.xlu0 %v1605, 4
    %v1755 = vpop.permute.xlu0 %1754
    %1756 = vrot.lane.b32.xlu0 %v1608, 4
    %v1757 = vpop.permute.xlu0 %1756
    %1758 = vrot.lane.b32.xlu0 %v1610, 4
    %v1759 = vpop.permute.xlu0 %1758
    %1760 = vrot.lane.b32.xlu0 %v1613, 4
    %v1761 = vpop.permute.xlu0 %1760
    %1762 = vrot.lane.b32.xlu0 %v1615, 4
    %v1763 = vpop.permute.xlu0 %1762
    %1764 = vrot.lane.b32.xlu0 %v1618, 4
    %v1765 = vpop.permute.xlu0 %1764
    %1766 = vrot.lane.b32.xlu0 %v1620, 4
    %v1767 = vpop.permute.xlu0 %1766
    %1768 = vrot.lane.b32.xlu0 %v1623, 4
    %v1769 = vpop.permute.xlu0 %1768
    %1770 = vrot.lane.b32.xlu0 %v1625, 4
    %v1771 = vpop.permute.xlu0 %1770
    %1772 = vrot.lane.b32.xlu0 %v1628, 4
    %v1773 = vpop.permute.xlu0 %1772
    %1774 = vrot.lane.b32.xlu0 %v1630, 4
    %v1775 = vpop.permute.xlu0 %1774
    %1776 = vrot.lane.b32.xlu0 %v1633, 4
    %v1777 = vpop.permute.xlu0 %1776
    %1778 = vrot.lane.b32.xlu0 %v1635, 4
    %v1779 = vpop.permute.xlu0 %1778
    %1780 = vrot.lane.b32.xlu0 %v1638, 4
    %v1781 = vpop.permute.xlu0 %1780
    %1782 = vrot.lane.b32.xlu0 %v1640, 4
    %v1783 = vpop.permute.xlu0 %1782
    %1784 = vrot.lane.b32.xlu0 %v1643, 4
    %v1785 = vpop.permute.xlu0 %1784
    %1786 = vrot.lane.b32.xlu0 %v1645, 4
    %v1787 = vpop.permute.xlu0 %1786
    %1788 = vrot.lane.b32.xlu0 %v1648, 4
    %v1789 = vpop.permute.xlu0 %1788
    %1790 = vrot.lane.b32.xlu0 %v1650, 4
    %v1791 = vpop.permute.xlu0 %1790
    %1792 = vrot.lane.b32.xlu0 %v1653, 4
    %v1793 = vpop.permute.xlu0 %1792
    %1794 = vrot.lane.b32.xlu0 %v1655, 4
    %v1795 = vpop.permute.xlu0 %1794
    %1796 = vrot.lane.b32.xlu0 %v1658, 4
    %v1797 = vpop.permute.xlu0 %1796
    %1798 = vrot.lane.b32.xlu0 %v1660, 4
    %v1799 = vpop.permute.xlu0 %1798
    %1800 = vrot.lane.b32.xlu0 %v1663, 4
    %v1801 = vpop.permute.xlu0 %1800
    %1802 = vrot.lane.b32.xlu0 %v1665, 4
    %v1803 = vpop.permute.xlu0 %1802
    %1804 = vrot.lane.b32.xlu0 %v1668, 4
    %v1805 = vpop.permute.xlu0 %1804
    %1806 = vrot.lane.b32.xlu0 %v1670, 4
    %v1807 = vpop.permute.xlu0 %1806
    %1808 = vrot.lane.b32.xlu0 %v1673, 4
    %v1809 = vpop.permute.xlu0 %1808
    %1810 = vrot.lane.b32.xlu0 %v1675, 4
    %v1811 = vpop.permute.xlu0 %1810
    %1812 = vrot.lane.b32.xlu0 %v1678, 4
    %v1813 = vpop.permute.xlu0 %1812
    %1814 = vrot.lane.b32.xlu0 %v1680, 4
    %v1815 = vpop.permute.xlu0 %1814
    %1816 = vrot.lane.b32.xlu0 %v1683, 4
    %v1817 = vpop.permute.xlu0 %1816
    %1818 = vrot.lane.b32.xlu0 %v1685, 4
    %v1819 = vpop.permute.xlu0 %1818
    %1820 = vrot.lane.b32.xlu0 %v1688, 4
    %v1821 = vpop.permute.xlu0 %1820
    %1822 = vrot.lane.b32.xlu0 %v1690, 4
    %v1823 = vpop.permute.xlu0 %1822
    %1824 = vrot.lane.b32.xlu0 %v1693, 4
    %v1825 = vpop.permute.xlu0 %1824
    %1826 = vrot.lane.b32.xlu0 %v1695, 4
    %v1827 = vpop.permute.xlu0 %1826
    %1828 = vrot.lane.b32.xlu0 %v1698, 4
    %v1829 = vpop.permute.xlu0 %1828
    %1830 = vrot.lane.b32.xlu0 %v1700, 4
    %v1831 = vpop.permute.xlu0 %1830
    %1832 = vrot.lane.b32.xlu0 %v1703, 4
    %v1833 = vpop.permute.xlu0 %1832
    %1834 = vrot.lane.b32.xlu0 %v1705, 4
    %v1835 = vpop.permute.xlu0 %1834
    %1836 = vrot.lane.b32.xlu0 %v1708, 4
    %v1837 = vpop.permute.xlu0 %1836
    %1838 = vrot.lane.b32.xlu0 %v1710, 4
    %v1839 = vpop.permute.xlu0 %1838
    %1840 = vrot.lane.b32.xlu0 %v1713, 4
    %v1841 = vpop.permute.xlu0 %1840
    %1842 = vrot.lane.b32.xlu0 %v1715, 4
    %v1843 = vpop.permute.xlu0 %1842
    %1844 = vrot.lane.b32.xlu0 %v1718, 4
    %v1845 = vpop.permute.xlu0 %1844
    %1846 = vrot.lane.b32.xlu0 %v1720, 4
    %v1847 = vpop.permute.xlu0 %1846
    %1848 = vrot.lane.b32.xlu0 %v1723, 4
    %v1849 = vpop.permute.xlu0 %1848
    %1850 = vrot.lane.b32.xlu0 %v1725, 4
    %v1851 = vpop.permute.xlu0 %1850
    %1852 = vrot.lane.b32.xlu0 %v1728, 4
    %v1853 = vpop.permute.xlu0 %1852
    %1854 = vrot.lane.b32.xlu0 %v1730, 4
    %v1855 = vpop.permute.xlu0 %1854
    %1856 = vrot.lane.b32.xlu0 %v1733, 4
    %v1857 = vpop.permute.xlu0 %1856
    %1858 = vrot.lane.b32.xlu0 %v1735, 4
    %v1859 = vpop.permute.xlu0 %1858
    %1860 = vrot.lane.b32.xlu0 %v1738, 4
    %v1861 = vpop.permute.xlu0 %1860
    %1862 = vrot.lane.b32.xlu0 %v1740, 4
    %v1863 = vpop.permute.xlu0 %1862
    %1864 = vrot.lane.b32.xlu0 %v1743, 4
    %v1865 = vpop.permute.xlu0 %1864
    %1866 = vrot.lane.b32.xlu0 %v1745, 4
    %v1867 = vpop.permute.xlu0 %1866
    %vm1929 = vcmask 1045504
    %v1930 = vrot.slane 0.0, 2
    %v1931 = vsel %vm1929, %v1930, %v1930
    %v1932 = vrot.slane %v1468, 2
    %v1933 = vrot.slane %v1280, 2
    %v1934 = vsel %vm1929, %v1932, %v1933
    %v1935 = vrot.slane %v1500, 2
    %v1936 = vsel %vm1929, %v1933, %v1935
    %v1937 = vrot.slane %v1469, 2
    %v1938 = vrot.slane %v1283, 2
    %v1939 = vsel %vm1929, %v1937, %v1938
    %v1940 = vrot.slane %v1501, 2
    %v1941 = vsel %vm1929, %v1938, %v1940
    %v1942 = vrot.slane %v1470, 2
    %v1943 = vrot.slane %v1286, 2
    %v1944 = vsel %vm1929, %v1942, %v1943
    %v1945 = vrot.slane %v1502, 2
    %v1946 = vsel %vm1929, %v1943, %v1945
    %v1947 = vrot.slane %v1471, 2
    %v1948 = vrot.slane %v1289, 2
    %v1949 = vsel %vm1929, %v1947, %v1948
    %v1950 = vrot.slane %v1503, 2
    %v1951 = vsel %vm1929, %v1948, %v1950
    %v1952 = vrot.slane %v1472, 2
    %v1953 = vrot.slane %v1292, 2
    %v1954 = vsel %vm1929, %v1952, %v1953
    %v1955 = vrot.slane %v1504, 2
    %v1956 = vsel %vm1929, %v1953, %v1955
    %v1957 = vrot.slane %v1473, 2
    %v1958 = vrot.slane %v1295, 2
    %v1959 = vsel %vm1929, %v1957, %v1958
    %v1960 = vrot.slane %v1505, 2
    %v1961 = vsel %vm1929, %v1958, %v1960
    %v1962 = vrot.slane %v1474, 2
    %v1963 = vrot.slane %v1298, 2
    %v1964 = vsel %vm1929, %v1962, %v1963
    %v1965 = vrot.slane %v1506, 2
    %v1966 = vsel %vm1929, %v1963, %v1965
    %v1967 = vrot.slane %v1475, 2
    %v1968 = vrot.slane %v1301, 2
    %v1969 = vsel %vm1929, %v1967, %v1968
    %v1970 = vrot.slane %v1507, 2
    %v1971 = vsel %vm1929, %v1968, %v1970
    %v1972 = vrot.slane %v1476, 2
    %v1973 = vrot.slane %v1304, 2
    %v1974 = vsel %vm1929, %v1972, %v1973
    %v1975 = vrot.slane %v1508, 2
    %v1976 = vsel %vm1929, %v1973, %v1975
    %v1977 = vrot.slane %v1477, 2
    %v1978 = vrot.slane %v1307, 2
    %v1979 = vsel %vm1929, %v1977, %v1978
    %v1980 = vrot.slane %v1509, 2
    %v1981 = vsel %vm1929, %v1978, %v1980
    %v1982 = vrot.slane %v1478, 2
    %v1983 = vrot.slane %v1310, 2
    %v1984 = vsel %vm1929, %v1982, %v1983
    %v1985 = vrot.slane %v1510, 2
    %v1986 = vsel %vm1929, %v1983, %v1985
    %v1987 = vrot.slane %v1479, 2
    %v1988 = vrot.slane %v1313, 2
    %v1989 = vsel %vm1929, %v1987, %v1988
    %v1990 = vrot.slane %v1511, 2
    %v1991 = vsel %vm1929, %v1988, %v1990
    %v1992 = vrot.slane %v1480, 2
    %v1993 = vrot.slane %v1316, 2
    %v1994 = vsel %vm1929, %v1992, %v1993
    %v1995 = vrot.slane %v1512, 2
    %v1996 = vsel %vm1929, %v1993, %v1995
    %v1997 = vrot.slane %v1481, 2
    %v1998 = vrot.slane %v1319, 2
    %v1999 = vsel %vm1929, %v1997, %v1998
    %v2000 = vrot.slane %v1513, 2
    %v2001 = vsel %vm1929, %v1998, %v2000
    %v2002 = vrot.slane %v1482, 2
    %v2003 = vrot.slane %v1322, 2
    %v2004 = vsel %vm1929, %v2002, %v2003
    %v2005 = vrot.slane %v1514, 2
    %v2006 = vsel %vm1929, %v2003, %v2005
    %v2007 = vrot.slane %v1484, 2
    %v2008 = vrot.slane %v1328, 2
    %v2009 = vsel %vm1929, %v2007, %v2008
    %v2010 = vrot.slane %v1516, 2
    %v2011 = vsel %vm1929, %v2008, %v2010
    %v2012 = vrot.slane %v1485, 2
    %v2013 = vrot.slane %v1331, 2
    %v2014 = vsel %vm1929, %v2012, %v2013
    %v2015 = vrot.slane %v1517, 2
    %v2016 = vsel %vm1929, %v2013, %v2015
    %v2017 = vrot.slane %v1486, 2
    %v2018 = vrot.slane %v1334, 2
    %v2019 = vsel %vm1929, %v2017, %v2018
    %v2020 = vrot.slane %v1518, 2
    %v2021 = vsel %vm1929, %v2018, %v2020
    %v2022 = vrot.slane %v1487, 2
    %v2023 = vrot.slane %v1337, 2
    %v2024 = vsel %vm1929, %v2022, %v2023
    %v2025 = vrot.slane %v1519, 2
    %v2026 = vsel %vm1929, %v2023, %v2025
    %v2027 = vrot.slane %v1488, 2
    %v2028 = vrot.slane %v1340, 2
    %v2029 = vsel %vm1929, %v2027, %v2028
    %v2030 = vrot.slane %v1520, 2
    %v2031 = vsel %vm1929, %v2028, %v2030
    %v2032 = vrot.slane %v1489, 2
    %v2033 = vrot.slane %v1343, 2
    %v2034 = vsel %vm1929, %v2032, %v2033
    %v2035 = vrot.slane %v1521, 2
    %v2036 = vsel %vm1929, %v2033, %v2035
    %v2037 = vrot.slane %v1490, 2
    %v2038 = vrot.slane %v1346, 2
    %v2039 = vsel %vm1929, %v2037, %v2038
    %v2040 = vrot.slane %v1522, 2
    %v2041 = vsel %vm1929, %v2038, %v2040
    %v2042 = vrot.slane %v1491, 2
    %v2043 = vrot.slane %v1349, 2
    %v2044 = vsel %vm1929, %v2042, %v2043
    %v2045 = vrot.slane %v1523, 2
    %v2046 = vsel %vm1929, %v2043, %v2045
    %v2047 = vrot.slane %v1492, 2
    %v2048 = vrot.slane %v1352, 2
    %v2049 = vsel %vm1929, %v2047, %v2048
    %v2050 = vrot.slane %v1524, 2
    %v2051 = vsel %vm1929, %v2048, %v2050
    %v2052 = vrot.slane %v1493, 2
    %v2053 = vrot.slane %v1355, 2
    %v2054 = vsel %vm1929, %v2052, %v2053
    %v2055 = vrot.slane %v1525, 2
    %v2056 = vsel %vm1929, %v2053, %v2055
    %v2057 = vrot.slane %v1494, 2
    %v2058 = vrot.slane %v1358, 2
    %v2059 = vsel %vm1929, %v2057, %v2058
    %v2060 = vrot.slane %v1526, 2
    %v2061 = vsel %vm1929, %v2058, %v2060
    %v2062 = vrot.slane %v1495, 2
    %v2063 = vrot.slane %v1361, 2
    %v2064 = vsel %vm1929, %v2062, %v2063
    %v2065 = vrot.slane %v1527, 2
    %v2066 = vsel %vm1929, %v2063, %v2065
    %v2067 = vrot.slane %v1496, 2
    %v2068 = vrot.slane %v1364, 2
    %v2069 = vsel %vm1929, %v2067, %v2068
    %v2070 = vrot.slane %v1528, 2
    %v2071 = vsel %vm1929, %v2068, %v2070
    %v2072 = vrot.slane %v1497, 2
    %v2073 = vrot.slane %v1367, 2
    %v2074 = vsel %vm1929, %v2072, %v2073
    %v2075 = vrot.slane %v1529, 2
    %v2076 = vsel %vm1929, %v2073, %v2075
    %v2077 = vrot.slane %v1498, 2
    %v2078 = vrot.slane %v1370, 2
    %v2079 = vsel %vm1929, %v2077, %v2078
    %v2080 = vrot.slane %v1530, 2
    %v2081 = vsel %vm1929, %v2078, %v2080
    %2082 = vrot.lane.b32.xlu0 %v1931, 8
    %v2083 = vpop.permute.xlu0 %2082
    %2084 = vrot.lane.b32.xlu0 %v1934, 8
    %v2085 = vpop.permute.xlu0 %2084
    %2086 = vrot.lane.b32.xlu0 %v1936, 8
    %v2087 = vpop.permute.xlu0 %2086
    %2088 = vrot.lane.b32.xlu0 %v1939, 8
    %v2089 = vpop.permute.xlu0 %2088
    %2090 = vrot.lane.b32.xlu0 %v1941, 8
    %v2091 = vpop.permute.xlu0 %2090
    %2092 = vrot.lane.b32.xlu0 %v1944, 8
    %v2093 = vpop.permute.xlu0 %2092
    %2094 = vrot.lane.b32.xlu0 %v1946, 8
    %v2095 = vpop.permute.xlu0 %2094
    %2096 = vrot.lane.b32.xlu0 %v1949, 8
    %v2097 = vpop.permute.xlu0 %2096
    %2098 = vrot.lane.b32.xlu0 %v1951, 8
    %v2099 = vpop.permute.xlu0 %2098
    %2100 = vrot.lane.b32.xlu0 %v1954, 8
    %v2101 = vpop.permute.xlu0 %2100
    %2102 = vrot.lane.b32.xlu0 %v1956, 8
    %v2103 = vpop.permute.xlu0 %2102
    %2104 = vrot.lane.b32.xlu0 %v1959, 8
    %v2105 = vpop.permute.xlu0 %2104
    %2106 = vrot.lane.b32.xlu0 %v1961, 8
    %v2107 = vpop.permute.xlu0 %2106
    %2108 = vrot.lane.b32.xlu0 %v1964, 8
    %v2109 = vpop.permute.xlu0 %2108
    %2110 = vrot.lane.b32.xlu0 %v1966, 8
    %v2111 = vpop.permute.xlu0 %2110
    %2112 = vrot.lane.b32.xlu0 %v1969, 8
    %v2113 = vpop.permute.xlu0 %2112
    %2114 = vrot.lane.b32.xlu0 %v1971, 8
    %v2115 = vpop.permute.xlu0 %2114
    %2116 = vrot.lane.b32.xlu0 %v1974, 8
    %v2117 = vpop.permute.xlu0 %2116
    %2118 = vrot.lane.b32.xlu0 %v1976, 8
    %v2119 = vpop.permute.xlu0 %2118
    %2120 = vrot.lane.b32.xlu0 %v1979, 8
    %v2121 = vpop.permute.xlu0 %2120
    %2122 = vrot.lane.b32.xlu0 %v1981, 8
    %v2123 = vpop.permute.xlu0 %2122
    %2124 = vrot.lane.b32.xlu0 %v1984, 8
    %v2125 = vpop.permute.xlu0 %2124
    %2126 = vrot.lane.b32.xlu0 %v1986, 8
    %v2127 = vpop.permute.xlu0 %2126
    %2128 = vrot.lane.b32.xlu0 %v1989, 8
    %v2129 = vpop.permute.xlu0 %2128
    %2130 = vrot.lane.b32.xlu0 %v1991, 8
    %v2131 = vpop.permute.xlu0 %2130
    %2132 = vrot.lane.b32.xlu0 %v1994, 8
    %v2133 = vpop.permute.xlu0 %2132
    %2134 = vrot.lane.b32.xlu0 %v1996, 8
    %v2135 = vpop.permute.xlu0 %2134
    %2136 = vrot.lane.b32.xlu0 %v1999, 8
    %v2137 = vpop.permute.xlu0 %2136
    %2138 = vrot.lane.b32.xlu0 %v2001, 8
    %v2139 = vpop.permute.xlu0 %2138
    %2140 = vrot.lane.b32.xlu0 %v2004, 8
    %v2141 = vpop.permute.xlu0 %2140
    %2142 = vrot.lane.b32.xlu0 %v2006, 8
    %v2143 = vpop.permute.xlu0 %2142
    %2144 = vrot.lane.b32.xlu0 %v2009, 8
    %v2145 = vpop.permute.xlu0 %2144
    %2146 = vrot.lane.b32.xlu0 %v2011, 8
    %v2147 = vpop.permute.xlu0 %2146
    %2148 = vrot.lane.b32.xlu0 %v2014, 8
    %v2149 = vpop.permute.xlu0 %2148
    %2150 = vrot.lane.b32.xlu0 %v2016, 8
    %v2151 = vpop.permute.xlu0 %2150
    %2152 = vrot.lane.b32.xlu0 %v2019, 8
    %v2153 = vpop.permute.xlu0 %2152
    %2154 = vrot.lane.b32.xlu0 %v2021, 8
    %v2155 = vpop.permute.xlu0 %2154
    %2156 = vrot.lane.b32.xlu0 %v2024, 8
    %v2157 = vpop.permute.xlu0 %2156
    %2158 = vrot.lane.b32.xlu0 %v2026, 8
    %v2159 = vpop.permute.xlu0 %2158
    %2160 = vrot.lane.b32.xlu0 %v2029, 8
    %v2161 = vpop.permute.xlu0 %2160
    %2162 = vrot.lane.b32.xlu0 %v2031, 8
    %v2163 = vpop.permute.xlu0 %2162
    %2164 = vrot.lane.b32.xlu0 %v2034, 8
    %v2165 = vpop.permute.xlu0 %2164
    %2166 = vrot.lane.b32.xlu0 %v2036, 8
    %v2167 = vpop.permute.xlu0 %2166
    %2168 = vrot.lane.b32.xlu0 %v2039, 8
    %v2169 = vpop.permute.xlu0 %2168
    %2170 = vrot.lane.b32.xlu0 %v2041, 8
    %v2171 = vpop.permute.xlu0 %2170
    %2172 = vrot.lane.b32.xlu0 %v2044, 8
    %v2173 = vpop.permute.xlu0 %2172
    %2174 = vrot.lane.b32.xlu0 %v2046, 8
    %v2175 = vpop.permute.xlu0 %2174
    %2176 = vrot.lane.b32.xlu0 %v2049, 8
    %v2177 = vpop.permute.xlu0 %2176
    %2178 = vrot.lane.b32.xlu0 %v2051, 8
    %v2179 = vpop.permute.xlu0 %2178
    %2180 = vrot.lane.b32.xlu0 %v2054, 8
    %v2181 = vpop.permute.xlu0 %2180
    %2182 = vrot.lane.b32.xlu0 %v2056, 8
    %v2183 = vpop.permute.xlu0 %2182
    %2184 = vrot.lane.b32.xlu0 %v2059, 8
    %v2185 = vpop.permute.xlu0 %2184
    %2186 = vrot.lane.b32.xlu0 %v2061, 8
    %v2187 = vpop.permute.xlu0 %2186
    %2188 = vrot.lane.b32.xlu0 %v2064, 8
    %v2189 = vpop.permute.xlu0 %2188
    %2190 = vrot.lane.b32.xlu0 %v2066, 8
    %v2191 = vpop.permute.xlu0 %2190
    %2192 = vrot.lane.b32.xlu0 %v2069, 8
    %v2193 = vpop.permute.xlu0 %2192
    %2194 = vrot.lane.b32.xlu0 %v2071, 8
    %v2195 = vpop.permute.xlu0 %2194
    %2196 = vrot.lane.b32.xlu0 %v2074, 8
    %v2197 = vpop.permute.xlu0 %2196
    %2198 = vrot.lane.b32.xlu0 %v2076, 8
    %v2199 = vpop.permute.xlu0 %2198
    %2200 = vrot.lane.b32.xlu0 %v2079, 8
    %v2201 = vpop.permute.xlu0 %2200
    %2202 = vrot.lane.b32.xlu0 %v2081, 8
    %v2203 = vpop.permute.xlu0 %2202
    %2267 = vrot.lane.b32.xlu0 %v1468, 12
    %v2268 = vpop.permute.xlu0 %2267
    %2269 = vrot.lane.b32.xlu0 %v1280, 12
    %v2270 = vpop.permute.xlu0 %2269
    %2271 = vrot.lane.b32.xlu0 %v1469, 12
    %v2272 = vpop.permute.xlu0 %2271
    %2273 = vrot.lane.b32.xlu0 %v1283, 12
    %v2274 = vpop.permute.xlu0 %2273
    %2275 = vrot.lane.b32.xlu0 %v1470, 12
    %v2276 = vpop.permute.xlu0 %2275
    %2277 = vrot.lane.b32.xlu0 %v1286, 12
    %v2278 = vpop.permute.xlu0 %2277
    %2279 = vrot.lane.b32.xlu0 %v1471, 12
    %v2280 = vpop.permute.xlu0 %2279
    %2281 = vrot.lane.b32.xlu0 %v1289, 12
    %v2282 = vpop.permute.xlu0 %2281
    %2283 = vrot.lane.b32.xlu0 %v1472, 12
    %v2284 = vpop.permute.xlu0 %2283
    %2285 = vrot.lane.b32.xlu0 %v1292, 12
    %v2286 = vpop.permute.xlu0 %2285
    %2287 = vrot.lane.b32.xlu0 %v1473, 12
    %v2288 = vpop.permute.xlu0 %2287
    %2289 = vrot.lane.b32.xlu0 %v1295, 12
    %v2290 = vpop.permute.xlu0 %2289
    %2291 = vrot.lane.b32.xlu0 %v1474, 12
    %v2292 = vpop.permute.xlu0 %2291
    %2293 = vrot.lane.b32.xlu0 %v1298, 12
    %v2294 = vpop.permute.xlu0 %2293
    %2295 = vrot.lane.b32.xlu0 %v1475, 12
    %v2296 = vpop.permute.xlu0 %2295
    %2297 = vrot.lane.b32.xlu0 %v1301, 12
    %v2298 = vpop.permute.xlu0 %2297
    %2299 = vrot.lane.b32.xlu0 %v1476, 12
    %v2300 = vpop.permute.xlu0 %2299
    %2301 = vrot.lane.b32.xlu0 %v1304, 12
    %v2302 = vpop.permute.xlu0 %2301
    %2303 = vrot.lane.b32.xlu0 %v1477, 12
    %v2304 = vpop.permute.xlu0 %2303
    %2305 = vrot.lane.b32.xlu0 %v1307, 12
    %v2306 = vpop.permute.xlu0 %2305
    %2307 = vrot.lane.b32.xlu0 %v1478, 12
    %v2308 = vpop.permute.xlu0 %2307
    %2309 = vrot.lane.b32.xlu0 %v1310, 12
    %v2310 = vpop.permute.xlu0 %2309
    %2311 = vrot.lane.b32.xlu0 %v1479, 12
    %v2312 = vpop.permute.xlu0 %2311
    %2313 = vrot.lane.b32.xlu0 %v1313, 12
    %v2314 = vpop.permute.xlu0 %2313
    %2315 = vrot.lane.b32.xlu0 %v1480, 12
    %v2316 = vpop.permute.xlu0 %2315
    %2317 = vrot.lane.b32.xlu0 %v1316, 12
    %v2318 = vpop.permute.xlu0 %2317
    %2319 = vrot.lane.b32.xlu0 %v1481, 12
    %v2320 = vpop.permute.xlu0 %2319
    %2321 = vrot.lane.b32.xlu0 %v1319, 12
    %v2322 = vpop.permute.xlu0 %2321
    %2323 = vrot.lane.b32.xlu0 %v1482, 12
    %v2324 = vpop.permute.xlu0 %2323
    %2325 = vrot.lane.b32.xlu0 %v1322, 12
    %v2326 = vpop.permute.xlu0 %2325
    %2327 = vrot.lane.b32.xlu0 %v1483, 12
    %v2328 = vpop.permute.xlu0 %2327
    %2329 = vrot.lane.b32.xlu0 %v1325, 12
    %v2330 = vpop.permute.xlu0 %2329
    %2331 = vrot.lane.b32.xlu0 %v1484, 12
    %v2332 = vpop.permute.xlu0 %2331
    %2333 = vrot.lane.b32.xlu0 %v1328, 12
    %v2334 = vpop.permute.xlu0 %2333
    %2335 = vrot.lane.b32.xlu0 %v1485, 12
    %v2336 = vpop.permute.xlu0 %2335
    %2337 = vrot.lane.b32.xlu0 %v1331, 12
    %v2338 = vpop.permute.xlu0 %2337
    %2339 = vrot.lane.b32.xlu0 %v1486, 12
    %v2340 = vpop.permute.xlu0 %2339
    %2341 = vrot.lane.b32.xlu0 %v1334, 12
    %v2342 = vpop.permute.xlu0 %2341
    %2343 = vrot.lane.b32.xlu0 %v1487, 12
    %v2344 = vpop.permute.xlu0 %2343
    %2345 = vrot.lane.b32.xlu0 %v1337, 12
    %v2346 = vpop.permute.xlu0 %2345
    %2347 = vrot.lane.b32.xlu0 %v1488, 12
    %v2348 = vpop.permute.xlu0 %2347
    %2349 = vrot.lane.b32.xlu0 %v1340, 12
    %v2350 = vpop.permute.xlu0 %2349
    %2351 = vrot.lane.b32.xlu0 %v1489, 12
    %v2352 = vpop.permute.xlu0 %2351
    %2353 = vrot.lane.b32.xlu0 %v1343, 12
    %v2354 = vpop.permute.xlu0 %2353
    %2355 = vrot.lane.b32.xlu0 %v1490, 12
    %v2356 = vpop.permute.xlu0 %2355
    %2357 = vrot.lane.b32.xlu0 %v1346, 12
    %v2358 = vpop.permute.xlu0 %2357
    %2359 = vrot.lane.b32.xlu0 %v1491, 12
    %v2360 = vpop.permute.xlu0 %2359
    %2361 = vrot.lane.b32.xlu0 %v1349, 12
    %v2362 = vpop.permute.xlu0 %2361
    %2363 = vrot.lane.b32.xlu0 %v1492, 12
    %v2364 = vpop.permute.xlu0 %2363
    %2365 = vrot.lane.b32.xlu0 %v1352, 12
    %v2366 = vpop.permute.xlu0 %2365
    %2367 = vrot.lane.b32.xlu0 %v1493, 12
    %v2368 = vpop.permute.xlu0 %2367
    %2369 = vrot.lane.b32.xlu0 %v1355, 12
    %v2370 = vpop.permute.xlu0 %2369
    %2371 = vrot.lane.b32.xlu0 %v1494, 12
    %v2372 = vpop.permute.xlu0 %2371
    %2373 = vrot.lane.b32.xlu0 %v1358, 12
    %v2374 = vpop.permute.xlu0 %2373
    %2375 = vrot.lane.b32.xlu0 %v1495, 12
    %v2376 = vpop.permute.xlu0 %2375
    %2377 = vrot.lane.b32.xlu0 %v1361, 12
    %v2378 = vpop.permute.xlu0 %2377
    %2379 = vrot.lane.b32.xlu0 %v1496, 12
    %v2380 = vpop.permute.xlu0 %2379
    %2381 = vrot.lane.b32.xlu0 %v1364, 12
    %v2382 = vpop.permute.xlu0 %2381
    %2383 = vrot.lane.b32.xlu0 %v1497, 12
    %v2384 = vpop.permute.xlu0 %2383
    %2385 = vrot.lane.b32.xlu0 %v1367, 12
    %v2386 = vpop.permute.xlu0 %2385
    %2387 = vrot.lane.b32.xlu0 %v1498, 12
    %v2388 = vpop.permute.xlu0 %2387
    %2389 = vrot.lane.b32.xlu0 %v1370, 12
    %v2390 = vpop.permute.xlu0 %2389
    %2391 = vrot.lane.b32.xlu0 %v1499, 12
    %v2392 = vpop.permute.xlu0 %2391
    %2393 = vrot.lane.b32.xlu0 %v1373, 12
    %v2394 = vpop.permute.xlu0 %2393
    %v2461 = vrot.slane %v1483, 1
    %v2462 = vrot.slane %v1325, 1
    %v2463 = vsel %vm1593, %v2461, %v2462
    %v2464 = vrot.slane %v1515, 1
    %v2465 = vsel %vm1593, %v2462, %v2464
    %v2466 = vrot.slane %v1499, 1
    %v2467 = vrot.slane %v1373, 1
    %v2468 = vsel %vm1593, %v2466, %v2467
    %v2469 = vrot.slane %v1531, 1
    %v2470 = vsel %vm1593, %v2467, %v2469
    %2471 = vrot.lane.b32.xlu0 %v1598, 16
    %v2472 = vpop.permute.xlu0 %2471
    %2473 = vrot.lane.b32.xlu0 %v1600, 16
    %v2474 = vpop.permute.xlu0 %2473
    %2475 = vrot.lane.b32.xlu0 %v1603, 16
    %v2476 = vpop.permute.xlu0 %2475
    %2477 = vrot.lane.b32.xlu0 %v1605, 16
    %v2478 = vpop.permute.xlu0 %2477
    %2479 = vrot.lane.b32.xlu0 %v1608, 16
    %v2480 = vpop.permute.xlu0 %2479
    %2481 = vrot.lane.b32.xlu0 %v1610, 16
    %v2482 = vpop.permute.xlu0 %2481
    %2483 = vrot.lane.b32.xlu0 %v1613, 16
    %v2484 = vpop.permute.xlu0 %2483
    %2485 = vrot.lane.b32.xlu0 %v1615, 16
    %v2486 = vpop.permute.xlu0 %2485
    %2487 = vrot.lane.b32.xlu0 %v1618, 16
    %v2488 = vpop.permute.xlu0 %2487
    %2489 = vrot.lane.b32.xlu0 %v1620, 16
    %v2490 = vpop.permute.xlu0 %2489
    %2491 = vrot.lane.b32.xlu0 %v1623, 16
    %v2492 = vpop.permute.xlu0 %2491
    %2493 = vrot.lane.b32.xlu0 %v1625, 16
    %v2494 = vpop.permute.xlu0 %2493
    %2495 = vrot.lane.b32.xlu0 %v1628, 16
    %v2496 = vpop.permute.xlu0 %2495
    %2497 = vrot.lane.b32.xlu0 %v1630, 16
    %v2498 = vpop.permute.xlu0 %2497
    %2499 = vrot.lane.b32.xlu0 %v1633, 16
    %v2500 = vpop.permute.xlu0 %2499
    %2501 = vrot.lane.b32.xlu0 %v1635, 16
    %v2502 = vpop.permute.xlu0 %2501
    %2503 = vrot.lane.b32.xlu0 %v1638, 16
    %v2504 = vpop.permute.xlu0 %2503
    %2505 = vrot.lane.b32.xlu0 %v1640, 16
    %v2506 = vpop.permute.xlu0 %2505
    %2507 = vrot.lane.b32.xlu0 %v1643, 16
    %v2508 = vpop.permute.xlu0 %2507
    %2509 = vrot.lane.b32.xlu0 %v1645, 16
    %v2510 = vpop.permute.xlu0 %2509
    %2511 = vrot.lane.b32.xlu0 %v1648, 16
    %v2512 = vpop.permute.xlu0 %2511
    %2513 = vrot.lane.b32.xlu0 %v1650, 16
    %v2514 = vpop.permute.xlu0 %2513
    %2515 = vrot.lane.b32.xlu0 %v1653, 16
    %v2516 = vpop.permute.xlu0 %2515
    %2517 = vrot.lane.b32.xlu0 %v1655, 16
    %v2518 = vpop.permute.xlu0 %2517
    %2519 = vrot.lane.b32.xlu0 %v1658, 16
    %v2520 = vpop.permute.xlu0 %2519
    %2521 = vrot.lane.b32.xlu0 %v1660, 16
    %v2522 = vpop.permute.xlu0 %2521
    %2523 = vrot.lane.b32.xlu0 %v1663, 16
    %v2524 = vpop.permute.xlu0 %2523
    %2525 = vrot.lane.b32.xlu0 %v1665, 16
    %v2526 = vpop.permute.xlu0 %2525
    %2527 = vrot.lane.b32.xlu0 %v1668, 16
    %v2528 = vpop.permute.xlu0 %2527
    %2529 = vrot.lane.b32.xlu0 %v1670, 16
    %v2530 = vpop.permute.xlu0 %2529
    %2531 = vrot.lane.b32.xlu0 %v2463, 16
    %v2532 = vpop.permute.xlu0 %2531
    %2533 = vrot.lane.b32.xlu0 %v2465, 16
    %v2534 = vpop.permute.xlu0 %2533
    %2535 = vrot.lane.b32.xlu0 %v1673, 16
    %v2536 = vpop.permute.xlu0 %2535
    %2537 = vrot.lane.b32.xlu0 %v1675, 16
    %v2538 = vpop.permute.xlu0 %2537
    %2539 = vrot.lane.b32.xlu0 %v1678, 16
    %v2540 = vpop.permute.xlu0 %2539
    %2541 = vrot.lane.b32.xlu0 %v1680, 16
    %v2542 = vpop.permute.xlu0 %2541
    %2543 = vrot.lane.b32.xlu0 %v1683, 16
    %v2544 = vpop.permute.xlu0 %2543
    %2545 = vrot.lane.b32.xlu0 %v1685, 16
    %v2546 = vpop.permute.xlu0 %2545
    %2547 = vrot.lane.b32.xlu0 %v1688, 16
    %v2548 = vpop.permute.xlu0 %2547
    %2549 = vrot.lane.b32.xlu0 %v1690, 16
    %v2550 = vpop.permute.xlu0 %2549
    %2551 = vrot.lane.b32.xlu0 %v1693, 16
    %v2552 = vpop.permute.xlu0 %2551
    %2553 = vrot.lane.b32.xlu0 %v1695, 16
    %v2554 = vpop.permute.xlu0 %2553
    %2555 = vrot.lane.b32.xlu0 %v1698, 16
    %v2556 = vpop.permute.xlu0 %2555
    %2557 = vrot.lane.b32.xlu0 %v1700, 16
    %v2558 = vpop.permute.xlu0 %2557
    %2559 = vrot.lane.b32.xlu0 %v1703, 16
    %v2560 = vpop.permute.xlu0 %2559
    %2561 = vrot.lane.b32.xlu0 %v1705, 16
    %v2562 = vpop.permute.xlu0 %2561
    %2563 = vrot.lane.b32.xlu0 %v1708, 16
    %v2564 = vpop.permute.xlu0 %2563
    %2565 = vrot.lane.b32.xlu0 %v1710, 16
    %v2566 = vpop.permute.xlu0 %2565
    %2567 = vrot.lane.b32.xlu0 %v1713, 16
    %v2568 = vpop.permute.xlu0 %2567
    %2569 = vrot.lane.b32.xlu0 %v1715, 16
    %v2570 = vpop.permute.xlu0 %2569
    %2571 = vrot.lane.b32.xlu0 %v1718, 16
    %v2572 = vpop.permute.xlu0 %2571
    %2573 = vrot.lane.b32.xlu0 %v1720, 16
    %v2574 = vpop.permute.xlu0 %2573
    %2575 = vrot.lane.b32.xlu0 %v1723, 16
    %v2576 = vpop.permute.xlu0 %2575
    %2577 = vrot.lane.b32.xlu0 %v1725, 16
    %v2578 = vpop.permute.xlu0 %2577
    %2579 = vrot.lane.b32.xlu0 %v1728, 16
    %v2580 = vpop.permute.xlu0 %2579
    %2581 = vrot.lane.b32.xlu0 %v1730, 16
    %v2582 = vpop.permute.xlu0 %2581
    %2583 = vrot.lane.b32.xlu0 %v1733, 16
    %v2584 = vpop.permute.xlu0 %2583
    %2585 = vrot.lane.b32.xlu0 %v1735, 16
    %v2586 = vpop.permute.xlu0 %2585
    %2587 = vrot.lane.b32.xlu0 %v1738, 16
    %v2588 = vpop.permute.xlu0 %2587
    %2589 = vrot.lane.b32.xlu0 %v1740, 16
    %v2590 = vpop.permute.xlu0 %2589
    %2591 = vrot.lane.b32.xlu0 %v1743, 16
    %v2592 = vpop.permute.xlu0 %2591
    %2593 = vrot.lane.b32.xlu0 %v1745, 16
    %v2594 = vpop.permute.xlu0 %2593
    %2595 = vrot.lane.b32.xlu0 %v2468, 16
    %v2596 = vpop.permute.xlu0 %2595
    %2597 = vrot.lane.b32.xlu0 %v2470, 16
    %v2598 = vpop.permute.xlu0 %2597
    %v2663 = vrot.slane %v1483, 2
    %v2664 = vrot.slane %v1325, 2
    %v2665 = vsel %vm1929, %v2663, %v2664
    %v2666 = vrot.slane %v1515, 2
    %v2667 = vsel %vm1929, %v2664, %v2666
    %v2668 = vrot.slane %v1499, 2
    %v2669 = vrot.slane %v1373, 2
    %v2670 = vsel %vm1929, %v2668, %v2669
    %v2671 = vrot.slane %v1531, 2
    %v2672 = vsel %vm1929, %v2669, %v2671
    %2673 = vrot.lane.b32.xlu0 %v1934, 20
    %v2674 = vpop.permute.xlu0 %2673
    %2675 = vrot.lane.b32.xlu0 %v1936, 20
    %v2676 = vpop.permute.xlu0 %2675
    %2677 = vrot.lane.b32.xlu0 %v1939, 20
    %v2678 = vpop.permute.xlu0 %2677
    %2679 = vrot.lane.b32.xlu0 %v1941, 20
    %v2680 = vpop.permute.xlu0 %2679
    %2681 = vrot.lane.b32.xlu0 %v1944, 20
    %v2682 = vpop.permute.xlu0 %2681
    %2683 = vrot.lane.b32.xlu0 %v1946, 20
    %v2684 = vpop.permute.xlu0 %2683
    %2685 = vrot.lane.b32.xlu0 %v1949, 20
    %v2686 = vpop.permute.xlu0 %2685
    %2687 = vrot.lane.b32.xlu0 %v1951, 20
    %v2688 = vpop.permute.xlu0 %2687
    %2689 = vrot.lane.b32.xlu0 %v1954, 20
    %v2690 = vpop.permute.xlu0 %2689
    %2691 = vrot.lane.b32.xlu0 %v1956, 20
    %v2692 = vpop.permute.xlu0 %2691
    %2693 = vrot.lane.b32.xlu0 %v1959, 20
    %v2694 = vpop.permute.xlu0 %2693
    %2695 = vrot.lane.b32.xlu0 %v1961, 20
    %v2696 = vpop.permute.xlu0 %2695
    %2697 = vrot.lane.b32.xlu0 %v1964, 20
    %v2698 = vpop.permute.xlu0 %2697
    %2699 = vrot.lane.b32.xlu0 %v1966, 20
    %v2700 = vpop.permute.xlu0 %2699
    %2701 = vrot.lane.b32.xlu0 %v1969, 20
    %v2702 = vpop.permute.xlu0 %2701
    %2703 = vrot.lane.b32.xlu0 %v1971, 20
    %v2704 = vpop.permute.xlu0 %2703
    %2705 = vrot.lane.b32.xlu0 %v1974, 20
    %v2706 = vpop.permute.xlu0 %2705
    %2707 = vrot.lane.b32.xlu0 %v1976, 20
    %v2708 = vpop.permute.xlu0 %2707
    %2709 = vrot.lane.b32.xlu0 %v1979, 20
    %v2710 = vpop.permute.xlu0 %2709
    %2711 = vrot.lane.b32.xlu0 %v1981, 20
    %v2712 = vpop.permute.xlu0 %2711
    %2713 = vrot.lane.b32.xlu0 %v1984, 20
    %v2714 = vpop.permute.xlu0 %2713
    %2715 = vrot.lane.b32.xlu0 %v1986, 20
    %v2716 = vpop.permute.xlu0 %2715
    %2717 = vrot.lane.b32.xlu0 %v1989, 20
    %v2718 = vpop.permute.xlu0 %2717
    %2719 = vrot.lane.b32.xlu0 %v1991, 20
    %v2720 = vpop.permute.xlu0 %2719
    %2721 = vrot.lane.b32.xlu0 %v1994, 20
    %v2722 = vpop.permute.xlu0 %2721
    %2723 = vrot.lane.b32.xlu0 %v1996, 20
    %v2724 = vpop.permute.xlu0 %2723
    %2725 = vrot.lane.b32.xlu0 %v1999, 20
    %v2726 = vpop.permute.xlu0 %2725
    %2727 = vrot.lane.b32.xlu0 %v2001, 20
    %v2728 = vpop.permute.xlu0 %2727
    %2729 = vrot.lane.b32.xlu0 %v2004, 20
    %v2730 = vpop.permute.xlu0 %2729
    %2731 = vrot.lane.b32.xlu0 %v2006, 20
    %v2732 = vpop.permute.xlu0 %2731
    %2733 = vrot.lane.b32.xlu0 %v2665, 20
    %v2734 = vpop.permute.xlu0 %2733
    %2735 = vrot.lane.b32.xlu0 %v2667, 20
    %v2736 = vpop.permute.xlu0 %2735
    %2737 = vrot.lane.b32.xlu0 %v2009, 20
    %v2738 = vpop.permute.xlu0 %2737
    %2739 = vrot.lane.b32.xlu0 %v2011, 20
    %v2740 = vpop.permute.xlu0 %2739
    %2741 = vrot.lane.b32.xlu0 %v2014, 20
    %v2742 = vpop.permute.xlu0 %2741
    %2743 = vrot.lane.b32.xlu0 %v2016, 20
    %v2744 = vpop.permute.xlu0 %2743
    %2745 = vrot.lane.b32.xlu0 %v2019, 20
    %v2746 = vpop.permute.xlu0 %2745
    %2747 = vrot.lane.b32.xlu0 %v2021, 20
    %v2748 = vpop.permute.xlu0 %2747
    %2749 = vrot.lane.b32.xlu0 %v2024, 20
    %v2750 = vpop.permute.xlu0 %2749
    %2751 = vrot.lane.b32.xlu0 %v2026, 20
    %v2752 = vpop.permute.xlu0 %2751
    %2753 = vrot.lane.b32.xlu0 %v2029, 20
    %v2754 = vpop.permute.xlu0 %2753
    %2755 = vrot.lane.b32.xlu0 %v2031, 20
    %v2756 = vpop.permute.xlu0 %2755
    %2757 = vrot.lane.b32.xlu0 %v2034, 20
    %v2758 = vpop.permute.xlu0 %2757
    %2759 = vrot.lane.b32.xlu0 %v2036, 20
    %v2760 = vpop.permute.xlu0 %2759
    %2761 = vrot.lane.b32.xlu0 %v2039, 20
    %v2762 = vpop.permute.xlu0 %2761
    %2763 = vrot.lane.b32.xlu0 %v2041, 20
    %v2764 = vpop.permute.xlu0 %2763
    %2765 = vrot.lane.b32.xlu0 %v2044, 20
    %v2766 = vpop.permute.xlu0 %2765
    %2767 = vrot.lane.b32.xlu0 %v2046, 20
    %v2768 = vpop.permute.xlu0 %2767
    %2769 = vrot.lane.b32.xlu0 %v2049, 20
    %v2770 = vpop.permute.xlu0 %2769
    %2771 = vrot.lane.b32.xlu0 %v2051, 20
    %v2772 = vpop.permute.xlu0 %2771
    %2773 = vrot.lane.b32.xlu0 %v2054, 20
    %v2774 = vpop.permute.xlu0 %2773
    %2775 = vrot.lane.b32.xlu0 %v2056, 20
    %v2776 = vpop.permute.xlu0 %2775
    %2777 = vrot.lane.b32.xlu0 %v2059, 20
    %v2778 = vpop.permute.xlu0 %2777
    %2779 = vrot.lane.b32.xlu0 %v2061, 20
    %v2780 = vpop.permute.xlu0 %2779
    %2781 = vrot.lane.b32.xlu0 %v2064, 20
    %v2782 = vpop.permute.xlu0 %2781
    %2783 = vrot.lane.b32.xlu0 %v2066, 20
    %v2784 = vpop.permute.xlu0 %2783
    %2785 = vrot.lane.b32.xlu0 %v2069, 20
    %v2786 = vpop.permute.xlu0 %2785
    %2787 = vrot.lane.b32.xlu0 %v2071, 20
    %v2788 = vpop.permute.xlu0 %2787
    %2789 = vrot.lane.b32.xlu0 %v2074, 20
    %v2790 = vpop.permute.xlu0 %2789
    %2791 = vrot.lane.b32.xlu0 %v2076, 20
    %v2792 = vpop.permute.xlu0 %2791
    %2793 = vrot.lane.b32.xlu0 %v2079, 20
    %v2794 = vpop.permute.xlu0 %2793
    %2795 = vrot.lane.b32.xlu0 %v2081, 20
    %v2796 = vpop.permute.xlu0 %2795
    %2797 = vrot.lane.b32.xlu0 %v2670, 20
    %v2798 = vpop.permute.xlu0 %2797
    %2799 = vrot.lane.b32.xlu0 %v2672, 20
    %v2800 = vpop.permute.xlu0 %2799
    %2865 = vrot.lane.b32.xlu0 %v1469, 24
    %v2866 = vpop.permute.xlu0 %2865
    %2867 = vrot.lane.b32.xlu0 %v1283, 24
    %v2868 = vpop.permute.xlu0 %2867
    %2869 = vrot.lane.b32.xlu0 %v1470, 24
    %v2870 = vpop.permute.xlu0 %2869
    %2871 = vrot.lane.b32.xlu0 %v1286, 24
    %v2872 = vpop.permute.xlu0 %2871
    %2873 = vrot.lane.b32.xlu0 %v1471, 24
    %v2874 = vpop.permute.xlu0 %2873
    %2875 = vrot.lane.b32.xlu0 %v1289, 24
    %v2876 = vpop.permute.xlu0 %2875
    %2877 = vrot.lane.b32.xlu0 %v1472, 24
    %v2878 = vpop.permute.xlu0 %2877
    %2879 = vrot.lane.b32.xlu0 %v1292, 24
    %v2880 = vpop.permute.xlu0 %2879
    %2881 = vrot.lane.b32.xlu0 %v1473, 24
    %v2882 = vpop.permute.xlu0 %2881
    %2883 = vrot.lane.b32.xlu0 %v1295, 24
    %v2884 = vpop.permute.xlu0 %2883
    %2885 = vrot.lane.b32.xlu0 %v1474, 24
    %v2886 = vpop.permute.xlu0 %2885
    %2887 = vrot.lane.b32.xlu0 %v1298, 24
    %v2888 = vpop.permute.xlu0 %2887
    %2889 = vrot.lane.b32.xlu0 %v1475, 24
    %v2890 = vpop.permute.xlu0 %2889
    %2891 = vrot.lane.b32.xlu0 %v1301, 24
    %v2892 = vpop.permute.xlu0 %2891
    %2893 = vrot.lane.b32.xlu0 %v1476, 24
    %v2894 = vpop.permute.xlu0 %2893
    %2895 = vrot.lane.b32.xlu0 %v1304, 24
    %v2896 = vpop.permute.xlu0 %2895
    %2897 = vrot.lane.b32.xlu0 %v1477, 24
    %v2898 = vpop.permute.xlu0 %2897
    %2899 = vrot.lane.b32.xlu0 %v1307, 24
    %v2900 = vpop.permute.xlu0 %2899
    %2901 = vrot.lane.b32.xlu0 %v1478, 24
    %v2902 = vpop.permute.xlu0 %2901
    %2903 = vrot.lane.b32.xlu0 %v1310, 24
    %v2904 = vpop.permute.xlu0 %2903
    %2905 = vrot.lane.b32.xlu0 %v1479, 24
    %v2906 = vpop.permute.xlu0 %2905
    %2907 = vrot.lane.b32.xlu0 %v1313, 24
    %v2908 = vpop.permute.xlu0 %2907
    %2909 = vrot.lane.b32.xlu0 %v1480, 24
    %v2910 = vpop.permute.xlu0 %2909
    %2911 = vrot.lane.b32.xlu0 %v1316, 24
    %v2912 = vpop.permute.xlu0 %2911
    %2913 = vrot.lane.b32.xlu0 %v1481, 24
    %v2914 = vpop.permute.xlu0 %2913
    %2915 = vrot.lane.b32.xlu0 %v1319, 24
    %v2916 = vpop.permute.xlu0 %2915
    %2917 = vrot.lane.b32.xlu0 %v1482, 24
    %v2918 = vpop.permute.xlu0 %2917
    %2919 = vrot.lane.b32.xlu0 %v1322, 24
    %v2920 = vpop.permute.xlu0 %2919
    %2921 = vrot.lane.b32.xlu0 %v1483, 24
    %v2922 = vpop.permute.xlu0 %2921
    %2923 = vrot.lane.b32.xlu0 %v1325, 24
    %v2924 = vpop.permute.xlu0 %2923
    %2925 = vrot.lane.b32.xlu0 0.0, 24
    %v2926 = vpop.permute.xlu0 %2925
    %2927 = vrot.lane.b32.xlu0 %v1485, 24
    %v2928 = vpop.permute.xlu0 %2927
    %2929 = vrot.lane.b32.xlu0 %v1331, 24
    %v2930 = vpop.permute.xlu0 %2929
    %2931 = vrot.lane.b32.xlu0 %v1486, 24
    %v2932 = vpop.permute.xlu0 %2931
    %2933 = vrot.lane.b32.xlu0 %v1334, 24
    %v2934 = vpop.permute.xlu0 %2933
    %2935 = vrot.lane.b32.xlu0 %v1487, 24
    %v2936 = vpop.permute.xlu0 %2935
    %2937 = vrot.lane.b32.xlu0 %v1337, 24
    %v2938 = vpop.permute.xlu0 %2937
    %2939 = vrot.lane.b32.xlu0 %v1488, 24
    %v2940 = vpop.permute.xlu0 %2939
    %2941 = vrot.lane.b32.xlu0 %v1340, 24
    %v2942 = vpop.permute.xlu0 %2941
    %2943 = vrot.lane.b32.xlu0 %v1489, 24
    %v2944 = vpop.permute.xlu0 %2943
    %2945 = vrot.lane.b32.xlu0 %v1343, 24
    %v2946 = vpop.permute.xlu0 %2945
    %2947 = vrot.lane.b32.xlu0 %v1490, 24
    %v2948 = vpop.permute.xlu0 %2947
    %2949 = vrot.lane.b32.xlu0 %v1346, 24
    %v2950 = vpop.permute.xlu0 %2949
    %2951 = vrot.lane.b32.xlu0 %v1491, 24
    %v2952 = vpop.permute.xlu0 %2951
    %2953 = vrot.lane.b32.xlu0 %v1349, 24
    %v2954 = vpop.permute.xlu0 %2953
    %2955 = vrot.lane.b32.xlu0 %v1492, 24
    %v2956 = vpop.permute.xlu0 %2955
    %2957 = vrot.lane.b32.xlu0 %v1352, 24
    %v2958 = vpop.permute.xlu0 %2957
    %2959 = vrot.lane.b32.xlu0 %v1493, 24
    %v2960 = vpop.permute.xlu0 %2959
    %2961 = vrot.lane.b32.xlu0 %v1355, 24
    %v2962 = vpop.permute.xlu0 %2961
    %2963 = vrot.lane.b32.xlu0 %v1494, 24
    %v2964 = vpop.permute.xlu0 %2963
    %2965 = vrot.lane.b32.xlu0 %v1358, 24
    %v2966 = vpop.permute.xlu0 %2965
    %2967 = vrot.lane.b32.xlu0 %v1495, 24
    %v2968 = vpop.permute.xlu0 %2967
    %2969 = vrot.lane.b32.xlu0 %v1361, 24
    %v2970 = vpop.permute.xlu0 %2969
    %2971 = vrot.lane.b32.xlu0 %v1496, 24
    %v2972 = vpop.permute.xlu0 %2971
    %2973 = vrot.lane.b32.xlu0 %v1364, 24
    %v2974 = vpop.permute.xlu0 %2973
    %2975 = vrot.lane.b32.xlu0 %v1497, 24
    %v2976 = vpop.permute.xlu0 %2975
    %2977 = vrot.lane.b32.xlu0 %v1367, 24
    %v2978 = vpop.permute.xlu0 %2977
    %2979 = vrot.lane.b32.xlu0 %v1498, 24
    %v2980 = vpop.permute.xlu0 %2979
    %2981 = vrot.lane.b32.xlu0 %v1370, 24
    %v2982 = vpop.permute.xlu0 %2981
    %2983 = vrot.lane.b32.xlu0 %v1499, 24
    %v2984 = vpop.permute.xlu0 %2983
    %2985 = vrot.lane.b32.xlu0 %v1373, 24
    %v2986 = vpop.permute.xlu0 %2985
    %3048 = vrot.lane.b32.xlu0 %v1603, 28
    %v3049 = vpop.permute.xlu0 %3048
    %3050 = vrot.lane.b32.xlu0 %v1605, 28
    %v3051 = vpop.permute.xlu0 %3050
    %3052 = vrot.lane.b32.xlu0 %v1608, 28
    %v3053 = vpop.permute.xlu0 %3052
    %3054 = vrot.lane.b32.xlu0 %v1610, 28
    %v3055 = vpop.permute.xlu0 %3054
    %3056 = vrot.lane.b32.xlu0 %v1613, 28
    %v3057 = vpop.permute.xlu0 %3056
    %3058 = vrot.lane.b32.xlu0 %v1615, 28
    %v3059 = vpop.permute.xlu0 %3058
    %3060 = vrot.lane.b32.xlu0 %v1618, 28
    %v3061 = vpop.permute.xlu0 %3060
    %3062 = vrot.lane.b32.xlu0 %v1620, 28
    %v3063 = vpop.permute.xlu0 %3062
    %3064 = vrot.lane.b32.xlu0 %v1623, 28
    %v3065 = vpop.permute.xlu0 %3064
    %3066 = vrot.lane.b32.xlu0 %v1625, 28
    %v3067 = vpop.permute.xlu0 %3066
    %3068 = vrot.lane.b32.xlu0 %v1628, 28
    %v3069 = vpop.permute.xlu0 %3068
    %3070 = vrot.lane.b32.xlu0 %v1630, 28
    %v3071 = vpop.permute.xlu0 %3070
    %3072 = vrot.lane.b32.xlu0 %v1633, 28
    %v3073 = vpop.permute.xlu0 %3072
    %3074 = vrot.lane.b32.xlu0 %v1635, 28
    %v3075 = vpop.permute.xlu0 %3074
    %3076 = vrot.lane.b32.xlu0 %v1638, 28
    %v3077 = vpop.permute.xlu0 %3076
    %3078 = vrot.lane.b32.xlu0 %v1640, 28
    %v3079 = vpop.permute.xlu0 %3078
    %3080 = vrot.lane.b32.xlu0 %v1643, 28
    %v3081 = vpop.permute.xlu0 %3080
    %3082 = vrot.lane.b32.xlu0 %v1645, 28
    %v3083 = vpop.permute.xlu0 %3082
    %3084 = vrot.lane.b32.xlu0 %v1648, 28
    %v3085 = vpop.permute.xlu0 %3084
    %3086 = vrot.lane.b32.xlu0 %v1650, 28
    %v3087 = vpop.permute.xlu0 %3086
    %3088 = vrot.lane.b32.xlu0 %v1653, 28
    %v3089 = vpop.permute.xlu0 %3088
    %3090 = vrot.lane.b32.xlu0 %v1655, 28
    %v3091 = vpop.permute.xlu0 %3090
    %3092 = vrot.lane.b32.xlu0 %v1658, 28
    %v3093 = vpop.permute.xlu0 %3092
    %3094 = vrot.lane.b32.xlu0 %v1660, 28
    %v3095 = vpop.permute.xlu0 %3094
    %3096 = vrot.lane.b32.xlu0 %v1663, 28
    %v3097 = vpop.permute.xlu0 %3096
    %3098 = vrot.lane.b32.xlu0 %v1665, 28
    %v3099 = vpop.permute.xlu0 %3098
    %3100 = vrot.lane.b32.xlu0 %v1668, 28
    %v3101 = vpop.permute.xlu0 %3100
    %3102 = vrot.lane.b32.xlu0 %v1670, 28
    %v3103 = vpop.permute.xlu0 %3102
    %3104 = vrot.lane.b32.xlu0 %v2463, 28
    %v3105 = vpop.permute.xlu0 %3104
    %3106 = vrot.lane.b32.xlu0 %v2465, 28
    %v3107 = vpop.permute.xlu0 %3106
    %3108 = vrot.lane.b32.xlu0 %v1595, 28
    %v3109 = vpop.permute.xlu0 %3108
    %3110 = vrot.lane.b32.xlu0 %v1678, 28
    %v3111 = vpop.permute.xlu0 %3110
    %3112 = vrot.lane.b32.xlu0 %v1680, 28
    %v3113 = vpop.permute.xlu0 %3112
    %3114 = vrot.lane.b32.xlu0 %v1683, 28
    %v3115 = vpop.permute.xlu0 %3114
    %3116 = vrot.lane.b32.xlu0 %v1685, 28
    %v3117 = vpop.permute.xlu0 %3116
    %3118 = vrot.lane.b32.xlu0 %v1688, 28
    %v3119 = vpop.permute.xlu0 %3118
    %3120 = vrot.lane.b32.xlu0 %v1690, 28
    %v3121 = vpop.permute.xlu0 %3120
    %3122 = vrot.lane.b32.xlu0 %v1693, 28
    %v3123 = vpop.permute.xlu0 %3122
    %3124 = vrot.lane.b32.xlu0 %v1695, 28
    %v3125 = vpop.permute.xlu0 %3124
    %3126 = vrot.lane.b32.xlu0 %v1698, 28
    %v3127 = vpop.permute.xlu0 %3126
    %3128 = vrot.lane.b32.xlu0 %v1700, 28
    %v3129 = vpop.permute.xlu0 %3128
    %3130 = vrot.lane.b32.xlu0 %v1703, 28
    %v3131 = vpop.permute.xlu0 %3130
    %3132 = vrot.lane.b32.xlu0 %v1705, 28
    %v3133 = vpop.permute.xlu0 %3132
    %3134 = vrot.lane.b32.xlu0 %v1708, 28
    %v3135 = vpop.permute.xlu0 %3134
    %3136 = vrot.lane.b32.xlu0 %v1710, 28
    %v3137 = vpop.permute.xlu0 %3136
    %3138 = vrot.lane.b32.xlu0 %v1713, 28
    %v3139 = vpop.permute.xlu0 %3138
    %3140 = vrot.lane.b32.xlu0 %v1715, 28
    %v3141 = vpop.permute.xlu0 %3140
    %3142 = vrot.lane.b32.xlu0 %v1718, 28
    %v3143 = vpop.permute.xlu0 %3142
    %3144 = vrot.lane.b32.xlu0 %v1720, 28
    %v3145 = vpop.permute.xlu0 %3144
    %3146 = vrot.lane.b32.xlu0 %v1723, 28
    %v3147 = vpop.permute.xlu0 %3146
    %3148 = vrot.lane.b32.xlu0 %v1725, 28
    %v3149 = vpop.permute.xlu0 %3148
    %3150 = vrot.lane.b32.xlu0 %v1728, 28
    %v3151 = vpop.permute.xlu0 %3150
    %3152 = vrot.lane.b32.xlu0 %v1730, 28
    %v3153 = vpop.permute.xlu0 %3152
    %3154 = vrot.lane.b32.xlu0 %v1733, 28
    %v3155 = vpop.permute.xlu0 %3154
    %3156 = vrot.lane.b32.xlu0 %v1735, 28
    %v3157 = vpop.permute.xlu0 %3156
    %3158 = vrot.lane.b32.xlu0 %v1738, 28
    %v3159 = vpop.permute.xlu0 %3158
    %3160 = vrot.lane.b32.xlu0 %v1740, 28
    %v3161 = vpop.permute.xlu0 %3160
    %3162 = vrot.lane.b32.xlu0 %v1743, 28
    %v3163 = vpop.permute.xlu0 %3162
    %3164 = vrot.lane.b32.xlu0 %v1745, 28
    %v3165 = vpop.permute.xlu0 %3164
    %3166 = vrot.lane.b32.xlu0 %v2468, 28
    %v3167 = vpop.permute.xlu0 %3166
    %3168 = vrot.lane.b32.xlu0 %v2470, 28
    %v3169 = vpop.permute.xlu0 %3168
    %3231 = vrot.lane.b32.xlu0 %v1939, 32
    %v3232 = vpop.permute.xlu0 %3231
    %3233 = vrot.lane.b32.xlu0 %v1941, 32
    %v3234 = vpop.permute.xlu0 %3233
    %3235 = vrot.lane.b32.xlu0 %v1944, 32
    %v3236 = vpop.permute.xlu0 %3235
    %3237 = vrot.lane.b32.xlu0 %v1946, 32
    %v3238 = vpop.permute.xlu0 %3237
    %3239 = vrot.lane.b32.xlu0 %v1949, 32
    %v3240 = vpop.permute.xlu0 %3239
    %3241 = vrot.lane.b32.xlu0 %v1951, 32
    %v3242 = vpop.permute.xlu0 %3241
    %3243 = vrot.lane.b32.xlu0 %v1954, 32
    %v3244 = vpop.permute.xlu0 %3243
    %3245 = vrot.lane.b32.xlu0 %v1956, 32
    %v3246 = vpop.permute.xlu0 %3245
    %3247 = vrot.lane.b32.xlu0 %v1959, 32
    %v3248 = vpop.permute.xlu0 %3247
    %3249 = vrot.lane.b32.xlu0 %v1961, 32
    %v3250 = vpop.permute.xlu0 %3249
    %3251 = vrot.lane.b32.xlu0 %v1964, 32
    %v3252 = vpop.permute.xlu0 %3251
    %3253 = vrot.lane.b32.xlu0 %v1966, 32
    %v3254 = vpop.permute.xlu0 %3253
    %3255 = vrot.lane.b32.xlu0 %v1969, 32
    %v3256 = vpop.permute.xlu0 %3255
    %3257 = vrot.lane.b32.xlu0 %v1971, 32
    %v3258 = vpop.permute.xlu0 %3257
    %3259 = vrot.lane.b32.xlu0 %v1974, 32
    %v3260 = vpop.permute.xlu0 %3259
    %3261 = vrot.lane.b32.xlu0 %v1976, 32
    %v3262 = vpop.permute.xlu0 %3261
    %3263 = vrot.lane.b32.xlu0 %v1979, 32
    %v3264 = vpop.permute.xlu0 %3263
    %3265 = vrot.lane.b32.xlu0 %v1981, 32
    %v3266 = vpop.permute.xlu0 %3265
    %3267 = vrot.lane.b32.xlu0 %v1984, 32
    %v3268 = vpop.permute.xlu0 %3267
    %3269 = vrot.lane.b32.xlu0 %v1986, 32
    %v3270 = vpop.permute.xlu0 %3269
    %3271 = vrot.lane.b32.xlu0 %v1989, 32
    %v3272 = vpop.permute.xlu0 %3271
    %3273 = vrot.lane.b32.xlu0 %v1991, 32
    %v3274 = vpop.permute.xlu0 %3273
    %3275 = vrot.lane.b32.xlu0 %v1994, 32
    %v3276 = vpop.permute.xlu0 %3275
    %3277 = vrot.lane.b32.xlu0 %v1996, 32
    %v3278 = vpop.permute.xlu0 %3277
    %3279 = vrot.lane.b32.xlu0 %v1999, 32
    %v3280 = vpop.permute.xlu0 %3279
    %3281 = vrot.lane.b32.xlu0 %v2001, 32
    %v3282 = vpop.permute.xlu0 %3281
    %3283 = vrot.lane.b32.xlu0 %v2004, 32
    %v3284 = vpop.permute.xlu0 %3283
    %3285 = vrot.lane.b32.xlu0 %v2006, 32
    %v3286 = vpop.permute.xlu0 %3285
    %3287 = vrot.lane.b32.xlu0 %v2665, 32
    %v3288 = vpop.permute.xlu0 %3287
    %3289 = vrot.lane.b32.xlu0 %v2667, 32
    %v3290 = vpop.permute.xlu0 %3289
    %3291 = vrot.lane.b32.xlu0 %v1931, 32
    %v3292 = vpop.permute.xlu0 %3291
    %3293 = vrot.lane.b32.xlu0 %v2014, 32
    %v3294 = vpop.permute.xlu0 %3293
    %3295 = vrot.lane.b32.xlu0 %v2016, 32
    %v3296 = vpop.permute.xlu0 %3295
    %3297 = vrot.lane.b32.xlu0 %v2019, 32
    %v3298 = vpop.permute.xlu0 %3297
    %3299 = vrot.lane.b32.xlu0 %v2021, 32
    %v3300 = vpop.permute.xlu0 %3299
    %3301 = vrot.lane.b32.xlu0 %v2024, 32
    %v3302 = vpop.permute.xlu0 %3301
    %3303 = vrot.lane.b32.xlu0 %v2026, 32
    %v3304 = vpop.permute.xlu0 %3303
    %3305 = vrot.lane.b32.xlu0 %v2029, 32
    %v3306 = vpop.permute.xlu0 %3305
    %3307 = vrot.lane.b32.xlu0 %v2031, 32
    %v3308 = vpop.permute.xlu0 %3307
    %3309 = vrot.lane.b32.xlu0 %v2034, 32
    %v3310 = vpop.permute.xlu0 %3309
    %3311 = vrot.lane.b32.xlu0 %v2036, 32
    %v3312 = vpop.permute.xlu0 %3311
    %3313 = vrot.lane.b32.xlu0 %v2039, 32
    %v3314 = vpop.permute.xlu0 %3313
    %3315 = vrot.lane.b32.xlu0 %v2041, 32
    %v3316 = vpop.permute.xlu0 %3315
    %3317 = vrot.lane.b32.xlu0 %v2044, 32
    %v3318 = vpop.permute.xlu0 %3317
    %3319 = vrot.lane.b32.xlu0 %v2046, 32
    %v3320 = vpop.permute.xlu0 %3319
    %3321 = vrot.lane.b32.xlu0 %v2049, 32
    %v3322 = vpop.permute.xlu0 %3321
    %3323 = vrot.lane.b32.xlu0 %v2051, 32
    %v3324 = vpop.permute.xlu0 %3323
    %3325 = vrot.lane.b32.xlu0 %v2054, 32
    %v3326 = vpop.permute.xlu0 %3325
    %3327 = vrot.lane.b32.xlu0 %v2056, 32
    %v3328 = vpop.permute.xlu0 %3327
    %3329 = vrot.lane.b32.xlu0 %v2059, 32
    %v3330 = vpop.permute.xlu0 %3329
    %3331 = vrot.lane.b32.xlu0 %v2061, 32
    %v3332 = vpop.permute.xlu0 %3331
    %3333 = vrot.lane.b32.xlu0 %v2064, 32
    %v3334 = vpop.permute.xlu0 %3333
    %3335 = vrot.lane.b32.xlu0 %v2066, 32
    %v3336 = vpop.permute.xlu0 %3335
    %3337 = vrot.lane.b32.xlu0 %v2069, 32
    %v3338 = vpop.permute.xlu0 %3337
    %3339 = vrot.lane.b32.xlu0 %v2071, 32
    %v3340 = vpop.permute.xlu0 %3339
    %3341 = vrot.lane.b32.xlu0 %v2074, 32
    %v3342 = vpop.permute.xlu0 %3341
    %3343 = vrot.lane.b32.xlu0 %v2076, 32
    %v3344 = vpop.permute.xlu0 %3343
    %3345 = vrot.lane.b32.xlu0 %v2079, 32
    %v3346 = vpop.permute.xlu0 %3345
    %3347 = vrot.lane.b32.xlu0 %v2081, 32
    %v3348 = vpop.permute.xlu0 %3347
    %3349 = vrot.lane.b32.xlu0 %v2670, 32
    %v3350 = vpop.permute.xlu0 %3349
    %3351 = vrot.lane.b32.xlu0 %v2672, 32
    %v3352 = vpop.permute.xlu0 %3351
    %v3414 = vsel %vm664, 0.0, %v1747
    %v3415 = vsel %vm664, %v1468, %v1749
    %v3416 = vsel %vm664, %v1280, %v1751
    %v3417 = vsel %vm664, %v1469, %v1753
    %v3418 = vsel %vm664, %v1283, %v1755
    %v3419 = vsel %vm664, %v1470, %v1757
    %v3420 = vsel %vm664, %v1286, %v1759
    %v3421 = vsel %vm664, %v1471, %v1761
    %v3422 = vsel %vm664, %v1289, %v1763
    %v3423 = vsel %vm664, %v1472, %v1765
    %v3424 = vsel %vm664, %v1292, %v1767
    %v3425 = vsel %vm664, %v1473, %v1769
    %v3426 = vsel %vm664, %v1295, %v1771
    %v3427 = vsel %vm664, %v1474, %v1773
    %v3428 = vsel %vm664, %v1298, %v1775
    %v3429 = vsel %vm664, %v1475, %v1777
    %v3430 = vsel %vm664, %v1301, %v1779
    %v3431 = vsel %vm664, %v1476, %v1781
    %v3432 = vsel %vm664, %v1304, %v1783
    %v3433 = vsel %vm664, %v1477, %v1785
    %v3434 = vsel %vm664, %v1307, %v1787
    %v3435 = vsel %vm664, %v1478, %v1789
    %v3436 = vsel %vm664, %v1310, %v1791
    %v3437 = vsel %vm664, %v1479, %v1793
    %v3438 = vsel %vm664, %v1313, %v1795
    %v3439 = vsel %vm664, %v1480, %v1797
    %v3440 = vsel %vm664, %v1316, %v1799
    %v3441 = vsel %vm664, %v1481, %v1801
    %v3442 = vsel %vm664, %v1319, %v1803
    %v3443 = vsel %vm664, %v1482, %v1805
    %v3444 = vsel %vm664, %v1322, %v1807
    %v3445 = vsel %vm664, %v1484, %v1809
    %v3446 = vsel %vm664, %v1328, %v1811
    %v3447 = vsel %vm664, %v1485, %v1813
    %v3448 = vsel %vm664, %v1331, %v1815
    %v3449 = vsel %vm664, %v1486, %v1817
    %v3450 = vsel %vm664, %v1334, %v1819
    %v3451 = vsel %vm664, %v1487, %v1821
    %v3452 = vsel %vm664, %v1337, %v1823
    %v3453 = vsel %vm664, %v1488, %v1825
    %v3454 = vsel %vm664, %v1340, %v1827
    %v3455 = vsel %vm664, %v1489, %v1829
    %v3456 = vsel %vm664, %v1343, %v1831
    %v3457 = vsel %vm664, %v1490, %v1833
    %v3458 = vsel %vm664, %v1346, %v1835
    %v3459 = vsel %vm664, %v1491, %v1837
    %v3460 = vsel %vm664, %v1349, %v1839
    %v3461 = vsel %vm664, %v1492, %v1841
    %v3462 = vsel %vm664, %v1352, %v1843
    %v3463 = vsel %vm664, %v1493, %v1845
    %v3464 = vsel %vm664, %v1355, %v1847
    %v3465 = vsel %vm664, %v1494, %v1849
    %v3466 = vsel %vm664, %v1358, %v1851
    %v3467 = vsel %vm664, %v1495, %v1853
    %v3468 = vsel %vm664, %v1361, %v1855
    %v3469 = vsel %vm664, %v1496, %v1857
    %v3470 = vsel %vm664, %v1364, %v1859
    %v3471 = vsel %vm664, %v1497, %v1861
    %v3472 = vsel %vm664, %v1367, %v1863
    %v3473 = vsel %vm664, %v1498, %v1865
    %v3474 = vsel %vm664, %v1370, %v1867
    %vm3475 = vcmask 64512
    %v3476 = vsel %vm3475, %v3414, %v2083
    %v3477 = vsel %vm3475, %v3415, %v2085
    %v3478 = vsel %vm3475, %v3416, %v2087
    %v3479 = vsel %vm3475, %v3417, %v2089
    %v3480 = vsel %vm3475, %v3418, %v2091
    %v3481 = vsel %vm3475, %v3419, %v2093
    %v3482 = vsel %vm3475, %v3420, %v2095
    %v3483 = vsel %vm3475, %v3421, %v2097
    %v3484 = vsel %vm3475, %v3422, %v2099
    %v3485 = vsel %vm3475, %v3423, %v2101
    %v3486 = vsel %vm3475, %v3424, %v2103
    %v3487 = vsel %vm3475, %v3425, %v2105
    %v3488 = vsel %vm3475, %v3426, %v2107
    %v3489 = vsel %vm3475, %v3427, %v2109
    %v3490 = vsel %vm3475, %v3428, %v2111
    %v3491 = vsel %vm3475, %v3429, %v2113
    %v3492 = vsel %vm3475, %v3430, %v2115
    %v3493 = vsel %vm3475, %v3431, %v2117
    %v3494 = vsel %vm3475, %v3432, %v2119
    %v3495 = vsel %vm3475, %v3433, %v2121
    %v3496 = vsel %vm3475, %v3434, %v2123
    %v3497 = vsel %vm3475, %v3435, %v2125
    %v3498 = vsel %vm3475, %v3436, %v2127
    %v3499 = vsel %vm3475, %v3437, %v2129
    %v3500 = vsel %vm3475, %v3438, %v2131
    %v3501 = vsel %vm3475, %v3439, %v2133
    %v3502 = vsel %vm3475, %v3440, %v2135
    %v3503 = vsel %vm3475, %v3441, %v2137
    %v3504 = vsel %vm3475, %v3442, %v2139
    %v3505 = vsel %vm3475, %v3443, %v2141
    %v3506 = vsel %vm3475, %v3444, %v2143
    %v3507 = vsel %vm3475, %v3445, %v2145
    %v3508 = vsel %vm3475, %v3446, %v2147
    %v3509 = vsel %vm3475, %v3447, %v2149
    %v3510 = vsel %vm3475, %v3448, %v2151
    %v3511 = vsel %vm3475, %v3449, %v2153
    %v3512 = vsel %vm3475, %v3450, %v2155
    %v3513 = vsel %vm3475, %v3451, %v2157
    %v3514 = vsel %vm3475, %v3452, %v2159
    %v3515 = vsel %vm3475, %v3453, %v2161
    %v3516 = vsel %vm3475, %v3454, %v2163
    %v3517 = vsel %vm3475, %v3455, %v2165
    %v3518 = vsel %vm3475, %v3456, %v2167
    %v3519 = vsel %vm3475, %v3457, %v2169
    %v3520 = vsel %vm3475, %v3458, %v2171
    %v3521 = vsel %vm3475, %v3459, %v2173
    %v3522 = vsel %vm3475, %v3460, %v2175
    %v3523 = vsel %vm3475, %v3461, %v2177
    %v3524 = vsel %vm3475, %v3462, %v2179
    %v3525 = vsel %vm3475, %v3463, %v2181
    %v3526 = vsel %vm3475, %v3464, %v2183
    %v3527 = vsel %vm3475, %v3465, %v2185
    %v3528 = vsel %vm3475, %v3466, %v2187
    %v3529 = vsel %vm3475, %v3467, %v2189
    %v3530 = vsel %vm3475, %v3468, %v2191
    %v3531 = vsel %vm3475, %v3469, %v2193
    %v3532 = vsel %vm3475, %v3470, %v2195
    %v3533 = vsel %vm3475, %v3471, %v2197
    %v3534 = vsel %vm3475, %v3472, %v2199
    %v3535 = vsel %vm3475, %v3473, %v2201
    %v3536 = vsel %vm3475, %v3474, %v2203
    %vm3537 = vcmask 97280
    %v3538 = vsel %vm3537, %v3476, %v2268
    %v3539 = vsel %vm3537, %v3476, %v2270
    %v3540 = vsel %vm3537, %v3477, %v2272
    %v3541 = vsel %vm3537, %v3478, %v2274
    %v3542 = vsel %vm3537, %v3479, %v2276
    %v3543 = vsel %vm3537, %v3480, %v2278
    %v3544 = vsel %vm3537, %v3481, %v2280
    %v3545 = vsel %vm3537, %v3482, %v2282
    %v3546 = vsel %vm3537, %v3483, %v2284
    %v3547 = vsel %vm3537, %v3484, %v2286
    %v3548 = vsel %vm3537, %v3485, %v2288
    %v3549 = vsel %vm3537, %v3486, %v2290
    %v3550 = vsel %vm3537, %v3487, %v2292
    %v3551 = vsel %vm3537, %v3488, %v2294
    %v3552 = vsel %vm3537, %v3489, %v2296
    %v3553 = vsel %vm3537, %v3490, %v2298
    %v3554 = vsel %vm3537, %v3491, %v2300
    %v3555 = vsel %vm3537, %v3492, %v2302
    %v3556 = vsel %vm3537, %v3493, %v2304
    %v3557 = vsel %vm3537, %v3494, %v2306
    %v3558 = vsel %vm3537, %v3495, %v2308
    %v3559 = vsel %vm3537, %v3496, %v2310
    %v3560 = vsel %vm3537, %v3497, %v2312
    %v3561 = vsel %vm3537, %v3498, %v2314
    %v3562 = vsel %vm3537, %v3499, %v2316
    %v3563 = vsel %vm3537, %v3500, %v2318
    %v3564 = vsel %vm3537, %v3501, %v2320
    %v3565 = vsel %vm3537, %v3502, %v2322
    %v3566 = vsel %vm3537, %v3503, %v2324
    %v3567 = vsel %vm3537, %v3504, %v2326
    %v3568 = vsel %vm3537, %v3505, %v2328
    %v3569 = vsel %vm3537, %v3506, %v2330
    %v3570 = vsel %vm3537, %v3476, %v2332
    %v3571 = vsel %vm3537, %v3476, %v2334
    %v3572 = vsel %vm3537, %v3507, %v2336
    %v3573 = vsel %vm3537, %v3508, %v2338
    %v3574 = vsel %vm3537, %v3509, %v2340
    %v3575 = vsel %vm3537, %v3510, %v2342
    %v3576 = vsel %vm3537, %v3511, %v2344
    %v3577 = vsel %vm3537, %v3512, %v2346
    %v3578 = vsel %vm3537, %v3513, %v2348
    %v3579 = vsel %vm3537, %v3514, %v2350
    %v3580 = vsel %vm3537, %v3515, %v2352
    %v3581 = vsel %vm3537, %v3516, %v2354
    %v3582 = vsel %vm3537, %v3517, %v2356
    %v3583 = vsel %vm3537, %v3518, %v2358
    %v3584 = vsel %vm3537, %v3519, %v2360
    %v3585 = vsel %vm3537, %v3520, %v2362
    %v3586 = vsel %vm3537, %v3521, %v2364
    %v3587 = vsel %vm3537, %v3522, %v2366
    %v3588 = vsel %vm3537, %v3523, %v2368
    %v3589 = vsel %vm3537, %v3524, %v2370
    %v3590 = vsel %vm3537, %v3525, %v2372
    %v3591 = vsel %vm3537, %v3526, %v2374
    %v3592 = vsel %vm3537, %v3527, %v2376
    %v3593 = vsel %vm3537, %v3528, %v2378
    %v3594 = vsel %vm3537, %v3529, %v2380
    %v3595 = vsel %vm3537, %v3530, %v2382
    %v3596 = vsel %vm3537, %v3531, %v2384
    %v3597 = vsel %vm3537, %v3532, %v2386
    %v3598 = vsel %vm3537, %v3533, %v2388
    %v3599 = vsel %vm3537, %v3534, %v2390
    %v3600 = vsel %vm3537, %v3535, %v2392
    %v3601 = vsel %vm3537, %v3536, %v2394
    %vm3602 = vcmask 130048
    %v3603 = vsel %vm3602, %v3538, %v2472
    %v3604 = vsel %vm3602, %v3539, %v2474
    %v3605 = vsel %vm3602, %v3540, %v2476
    %v3606 = vsel %vm3602, %v3541, %v2478
    %v3607 = vsel %vm3602, %v3542, %v2480
    %v3608 = vsel %vm3602, %v3543, %v2482
    %v3609 = vsel %vm3602, %v3544, %v2484
    %v3610 = vsel %vm3602, %v3545, %v2486
    %v3611 = vsel %vm3602, %v3546, %v2488
    %v3612 = vsel %vm3602, %v3547, %v2490
    %v3613 = vsel %vm3602, %v3548, %v2492
    %v3614 = vsel %vm3602, %v3549, %v2494
    %v3615 = vsel %vm3602, %v3550, %v2496
    %v3616 = vsel %vm3602, %v3551, %v2498
    %v3617 = vsel %vm3602, %v3552, %v2500
    %v3618 = vsel %vm3602, %v3553, %v2502
    %v3619 = vsel %vm3602, %v3554, %v2504
    %v3620 = vsel %vm3602, %v3555, %v2506
    %v3621 = vsel %vm3602, %v3556, %v2508
    %v3622 = vsel %vm3602, %v3557, %v2510
    %v3623 = vsel %vm3602, %v3558, %v2512
    %v3624 = vsel %vm3602, %v3559, %v2514
    %v3625 = vsel %vm3602, %v3560, %v2516
    %v3626 = vsel %vm3602, %v3561, %v2518
    %v3627 = vsel %vm3602, %v3562, %v2520
    %v3628 = vsel %vm3602, %v3563, %v2522
    %v3629 = vsel %vm3602, %v3564, %v2524
    %v3630 = vsel %vm3602, %v3565, %v2526
    %v3631 = vsel %vm3602, %v3566, %v2528
    %v3632 = vsel %vm3602, %v3567, %v2530
    %v3633 = vsel %vm3602, %v3568, %v2532
    %v3634 = vsel %vm3602, %v3569, %v2534
    %v3635 = vsel %vm3602, %v3570, %v2536
    %v3636 = vsel %vm3602, %v3571, %v2538
    %v3637 = vsel %vm3602, %v3572, %v2540
    %v3638 = vsel %vm3602, %v3573, %v2542
    %v3639 = vsel %vm3602, %v3574, %v2544
    %v3640 = vsel %vm3602, %v3575, %v2546
    %v3641 = vsel %vm3602, %v3576, %v2548
    %v3642 = vsel %vm3602, %v3577, %v2550
    %v3643 = vsel %vm3602, %v3578, %v2552
    %v3644 = vsel %vm3602, %v3579, %v2554
    %v3645 = vsel %vm3602, %v3580, %v2556
    %v3646 = vsel %vm3602, %v3581, %v2558
    %v3647 = vsel %vm3602, %v3582, %v2560
    %v3648 = vsel %vm3602, %v3583, %v2562
    %v3649 = vsel %vm3602, %v3584, %v2564
    %v3650 = vsel %vm3602, %v3585, %v2566
    %v3651 = vsel %vm3602, %v3586, %v2568
    %v3652 = vsel %vm3602, %v3587, %v2570
    %v3653 = vsel %vm3602, %v3588, %v2572
    %v3654 = vsel %vm3602, %v3589, %v2574
    %v3655 = vsel %vm3602, %v3590, %v2576
    %v3656 = vsel %vm3602, %v3591, %v2578
    %v3657 = vsel %vm3602, %v3592, %v2580
    %v3658 = vsel %vm3602, %v3593, %v2582
    %v3659 = vsel %vm3602, %v3594, %v2584
    %v3660 = vsel %vm3602, %v3595, %v2586
    %v3661 = vsel %vm3602, %v3596, %v2588
    %v3662 = vsel %vm3602, %v3597, %v2590
    %v3663 = vsel %vm3602, %v3598, %v2592
    %v3664 = vsel %vm3602, %v3599, %v2594
    %v3665 = vsel %vm3602, %v3600, %v2596
    %v3666 = vsel %vm3602, %v3601, %v2598
    %vm3667 = vcmask 162816
    %v3668 = vsel %vm3667, %v3603, %v2674
    %v3669 = vsel %vm3667, %v3604, %v2676
    %v3670 = vsel %vm3667, %v3605, %v2678
    %v3671 = vsel %vm3667, %v3606, %v2680
    %v3672 = vsel %vm3667, %v3607, %v2682
    %v3673 = vsel %vm3667, %v3608, %v2684
    %v3674 = vsel %vm3667, %v3609, %v2686
    %v3675 = vsel %vm3667, %v3610, %v2688
    %v3676 = vsel %vm3667, %v3611, %v2690
    %v3677 = vsel %vm3667, %v3612, %v2692
    %v3678 = vsel %vm3667, %v3613, %v2694
    %v3679 = vsel %vm3667, %v3614, %v2696
    %v3680 = vsel %vm3667, %v3615, %v2698
    %v3681 = vsel %vm3667, %v3616, %v2700
    %v3682 = vsel %vm3667, %v3617, %v2702
    %v3683 = vsel %vm3667, %v3618, %v2704
    %v3684 = vsel %vm3667, %v3619, %v2706
    %v3685 = vsel %vm3667, %v3620, %v2708
    %v3686 = vsel %vm3667, %v3621, %v2710
    %v3687 = vsel %vm3667, %v3622, %v2712
    %v3688 = vsel %vm3667, %v3623, %v2714
    %v3689 = vsel %vm3667, %v3624, %v2716
    %v3690 = vsel %vm3667, %v3625, %v2718
    %v3691 = vsel %vm3667, %v3626, %v2720
    %v3692 = vsel %vm3667, %v3627, %v2722
    %v3693 = vsel %vm3667, %v3628, %v2724
    %v3694 = vsel %vm3667, %v3629, %v2726
    %v3695 = vsel %vm3667, %v3630, %v2728
    %v3696 = vsel %vm3667, %v3631, %v2730
    %v3697 = vsel %vm3667, %v3632, %v2732
    %v3698 = vsel %vm3667, %v3633, %v2734
    %v3699 = vsel %vm3667, %v3634, %v2736
    %v3700 = vsel %vm3667, %v3635, %v2738
    %v3701 = vsel %vm3667, %v3636, %v2740
    %v3702 = vsel %vm3667, %v3637, %v2742
    %v3703 = vsel %vm3667, %v3638, %v2744
    %v3704 = vsel %vm3667, %v3639, %v2746
    %v3705 = vsel %vm3667, %v3640, %v2748
    %v3706 = vsel %vm3667, %v3641, %v2750
    %v3707 = vsel %vm3667, %v3642, %v2752
    %v3708 = vsel %vm3667, %v3643, %v2754
    %v3709 = vsel %vm3667, %v3644, %v2756
    %v3710 = vsel %vm3667, %v3645, %v2758
    %v3711 = vsel %vm3667, %v3646, %v2760
    %v3712 = vsel %vm3667, %v3647, %v2762
    %v3713 = vsel %vm3667, %v3648, %v2764
    %v3714 = vsel %vm3667, %v3649, %v2766
    %v3715 = vsel %vm3667, %v3650, %v2768
    %v3716 = vsel %vm3667, %v3651, %v2770
    %v3717 = vsel %vm3667, %v3652, %v2772
    %v3718 = vsel %vm3667, %v3653, %v2774
    %v3719 = vsel %vm3667, %v3654, %v2776
    %v3720 = vsel %vm3667, %v3655, %v2778
    %v3721 = vsel %vm3667, %v3656, %v2780
    %v3722 = vsel %vm3667, %v3657, %v2782
    %v3723 = vsel %vm3667, %v3658, %v2784
    %v3724 = vsel %vm3667, %v3659, %v2786
    %v3725 = vsel %vm3667, %v3660, %v2788
    %v3726 = vsel %vm3667, %v3661, %v2790
    %v3727 = vsel %vm3667, %v3662, %v2792
    %v3728 = vsel %vm3667, %v3663, %v2794
    %v3729 = vsel %vm3667, %v3664, %v2796
    %v3730 = vsel %vm3667, %v3665, %v2798
    %v3731 = vsel %vm3667, %v3666, %v2800
    %vm3732 = vcmask 195584
    %v3733 = vsel %vm3732, %v3668, %v2866
    %v3734 = vsel %vm3732, %v3669, %v2868
    %v3735 = vsel %vm3732, %v3670, %v2870
    %v3736 = vsel %vm3732, %v3671, %v2872
    %v3737 = vsel %vm3732, %v3672, %v2874
    %v3738 = vsel %vm3732, %v3673, %v2876
    %v3739 = vsel %vm3732, %v3674, %v2878
    %v3740 = vsel %vm3732, %v3675, %v2880
    %v3741 = vsel %vm3732, %v3676, %v2882
    %v3742 = vsel %vm3732, %v3677, %v2884
    %v3743 = vsel %vm3732, %v3678, %v2886
    %v3744 = vsel %vm3732, %v3679, %v2888
    %v3745 = vsel %vm3732, %v3680, %v2890
    %v3746 = vsel %vm3732, %v3681, %v2892
    %v3747 = vsel %vm3732, %v3682, %v2894
    %v3748 = vsel %vm3732, %v3683, %v2896
    %v3749 = vsel %vm3732, %v3684, %v2898
    %v3750 = vsel %vm3732, %v3685, %v2900
    %v3751 = vsel %vm3732, %v3686, %v2902
    %v3752 = vsel %vm3732, %v3687, %v2904
    %v3753 = vsel %vm3732, %v3688, %v2906
    %v3754 = vsel %vm3732, %v3689, %v2908
    %v3755 = vsel %vm3732, %v3690, %v2910
    %v3756 = vsel %vm3732, %v3691, %v2912
    %v3757 = vsel %vm3732, %v3692, %v2914
    %v3758 = vsel %vm3732, %v3693, %v2916
    %v3759 = vsel %vm3732, %v3694, %v2918
    %v3760 = vsel %vm3732, %v3695, %v2920
    %v3761 = vsel %vm3732, %v3696, %v2922
    %v3762 = vsel %vm3732, %v3697, %v2924
    %v3763 = vsel %vm3732, %v3698, %v2926
    %v3764 = vsel %vm3732, %v3699, %v2926
    %v3765 = vsel %vm3732, %v3700, %v2928
    %v3766 = vsel %vm3732, %v3701, %v2930
    %v3767 = vsel %vm3732, %v3702, %v2932
    %v3768 = vsel %vm3732, %v3703, %v2934
    %v3769 = vsel %vm3732, %v3704, %v2936
    %v3770 = vsel %vm3732, %v3705, %v2938
    %v3771 = vsel %vm3732, %v3706, %v2940
    %v3772 = vsel %vm3732, %v3707, %v2942
    %v3773 = vsel %vm3732, %v3708, %v2944
    %v3774 = vsel %vm3732, %v3709, %v2946
    %v3775 = vsel %vm3732, %v3710, %v2948
    %v3776 = vsel %vm3732, %v3711, %v2950
    %v3777 = vsel %vm3732, %v3712, %v2952
    %v3778 = vsel %vm3732, %v3713, %v2954
    %v3779 = vsel %vm3732, %v3714, %v2956
    %v3780 = vsel %vm3732, %v3715, %v2958
    %v3781 = vsel %vm3732, %v3716, %v2960
    %v3782 = vsel %vm3732, %v3717, %v2962
    %v3783 = vsel %vm3732, %v3718, %v2964
    %v3784 = vsel %vm3732, %v3719, %v2966
    %v3785 = vsel %vm3732, %v3720, %v2968
    %v3786 = vsel %vm3732, %v3721, %v2970
    %v3787 = vsel %vm3732, %v3722, %v2972
    %v3788 = vsel %vm3732, %v3723, %v2974
    %v3789 = vsel %vm3732, %v3724, %v2976
    %v3790 = vsel %vm3732, %v3725, %v2978
    %v3791 = vsel %vm3732, %v3726, %v2980
    %v3792 = vsel %vm3732, %v3727, %v2982
    %v3793 = vsel %vm3732, %v3728, %v2984
    %v3794 = vsel %vm3732, %v3729, %v2986
    %v3795 = vsel %vm3732, %v3730, %v2926
    %v3796 = vsel %vm3732, %v3731, %v2926
    %vm3797 = vcmask 228352
    %v3798 = vsel %vm3797, %v3733, %v3049
    %v3799 = vsel %vm3797, %v3734, %v3051
    %v3800 = vsel %vm3797, %v3735, %v3053
    %v3801 = vsel %vm3797, %v3736, %v3055
    %v3802 = vsel %vm3797, %v3737, %v3057
    %v3803 = vsel %vm3797, %v3738, %v3059
    %v3804 = vsel %vm3797, %v3739, %v3061
    %v3805 = vsel %vm3797, %v3740, %v3063
    %v3806 = vsel %vm3797, %v3741, %v3065
    %v3807 = vsel %vm3797, %v3742, %v3067
    %v3808 = vsel %vm3797, %v3743, %v3069
    %v3809 = vsel %vm3797, %v3744, %v3071
    %v3810 = vsel %vm3797, %v3745, %v3073
    %v3811 = vsel %vm3797, %v3746, %v3075
    %v3812 = vsel %vm3797, %v3747, %v3077
    %v3813 = vsel %vm3797, %v3748, %v3079
    %v3814 = vsel %vm3797, %v3749, %v3081
    %v3815 = vsel %vm3797, %v3750, %v3083
    %v3816 = vsel %vm3797, %v3751, %v3085
    %v3817 = vsel %vm3797, %v3752, %v3087
    %v3818 = vsel %vm3797, %v3753, %v3089
    %v3819 = vsel %vm3797, %v3754, %v3091
    %v3820 = vsel %vm3797, %v3755, %v3093
    %v3821 = vsel %vm3797, %v3756, %v3095
    %v3822 = vsel %vm3797, %v3757, %v3097
    %v3823 = vsel %vm3797, %v3758, %v3099
    %v3824 = vsel %vm3797, %v3759, %v3101
    %v3825 = vsel %vm3797, %v3760, %v3103
    %v3826 = vsel %vm3797, %v3761, %v3105
    %v3827 = vsel %vm3797, %v3762, %v3107
    %v3828 = vsel %vm3797, %v3763, %v3109
    %v3829 = vsel %vm3797, %v3764, %v3109
    %v3830 = vsel %vm3797, %v3765, %v3111
    %v3831 = vsel %vm3797, %v3766, %v3113
    %v3832 = vsel %vm3797, %v3767, %v3115
    %v3833 = vsel %vm3797, %v3768, %v3117
    %v3834 = vsel %vm3797, %v3769, %v3119
    %v3835 = vsel %vm3797, %v3770, %v3121
    %v3836 = vsel %vm3797, %v3771, %v3123
    %v3837 = vsel %vm3797, %v3772, %v3125
    %v3838 = vsel %vm3797, %v3773, %v3127
    %v3839 = vsel %vm3797, %v3774, %v3129
    %v3840 = vsel %vm3797, %v3775, %v3131
    %v3841 = vsel %vm3797, %v3776, %v3133
    %v3842 = vsel %vm3797, %v3777, %v3135
    %v3843 = vsel %vm3797, %v3778, %v3137
    %v3844 = vsel %vm3797, %v3779, %v3139
    %v3845 = vsel %vm3797, %v3780, %v3141
    %v3846 = vsel %vm3797, %v3781, %v3143
    %v3847 = vsel %vm3797, %v3782, %v3145
    %v3848 = vsel %vm3797, %v3783, %v3147
    %v3849 = vsel %vm3797, %v3784, %v3149
    %v3850 = vsel %vm3797, %v3785, %v3151
    %v3851 = vsel %vm3797, %v3786, %v3153
    %v3852 = vsel %vm3797, %v3787, %v3155
    %v3853 = vsel %vm3797, %v3788, %v3157
    %v3854 = vsel %vm3797, %v3789, %v3159
    %v3855 = vsel %vm3797, %v3790, %v3161
    %v3856 = vsel %vm3797, %v3791, %v3163
    %v3857 = vsel %vm3797, %v3792, %v3165
    %v3858 = vsel %vm3797, %v3793, %v3167
    %v3859 = vsel %vm3797, %v3794, %v3169
    %v3860 = vsel %vm3797, %v3795, %v3109
    %v3861 = vsel %vm3797, %v3796, %v3109
    %vm3862 = vcmask 261120
    %v3863 = vsel %vm3862, %v3798, %v3232
    %v3864 = vsel %vm3862, %v3799, %v3234
    %v3865 = vsel %vm3862, %v3800, %v3236
    %v3866 = vsel %vm3862, %v3801, %v3238
    %v3867 = vsel %vm3862, %v3802, %v3240
    %v3868 = vsel %vm3862, %v3803, %v3242
    %v3869 = vsel %vm3862, %v3804, %v3244
    %v3870 = vsel %vm3862, %v3805, %v3246
    %v3871 = vsel %vm3862, %v3806, %v3248
    %v3872 = vsel %vm3862, %v3807, %v3250
    %v3873 = vsel %vm3862, %v3808, %v3252
    %v3874 = vsel %vm3862, %v3809, %v3254
    %v3875 = vsel %vm3862, %v3810, %v3256
    %v3876 = vsel %vm3862, %v3811, %v3258
    %v3877 = vsel %vm3862, %v3812, %v3260
    %v3878 = vsel %vm3862, %v3813, %v3262
    %v3879 = vsel %vm3862, %v3814, %v3264
    %v3880 = vsel %vm3862, %v3815, %v3266
    %v3881 = vsel %vm3862, %v3816, %v3268
    %v3882 = vsel %vm3862, %v3817, %v3270
    %v3883 = vsel %vm3862, %v3818, %v3272
    %v3884 = vsel %vm3862, %v3819, %v3274
    %v3885 = vsel %vm3862, %v3820, %v3276
    %v3886 = vsel %vm3862, %v3821, %v3278
    %v3887 = vsel %vm3862, %v3822, %v3280
    %v3888 = vsel %vm3862, %v3823, %v3282
    %v3889 = vsel %vm3862, %v3824, %v3284
    %v3890 = vsel %vm3862, %v3825, %v3286
    %v3891 = vsel %vm3862, %v3826, %v3288
    %v3892 = vsel %vm3862, %v3827, %v3290
    %v3893 = vsel %vm3862, %v3828, %v3292
    %v3894 = vsel %vm3862, %v3829, %v3292
    %v3895 = vsel %vm3862, %v3830, %v3294
    %v3896 = vsel %vm3862, %v3831, %v3296
    %v3897 = vsel %vm3862, %v3832, %v3298
    %v3898 = vsel %vm3862, %v3833, %v3300
    %v3899 = vsel %vm3862, %v3834, %v3302
    %v3900 = vsel %vm3862, %v3835, %v3304
    %v3901 = vsel %vm3862, %v3836, %v3306
    %v3902 = vsel %vm3862, %v3837, %v3308
    %v3903 = vsel %vm3862, %v3838, %v3310
    %v3904 = vsel %vm3862, %v3839, %v3312
    %v3905 = vsel %vm3862, %v3840, %v3314
    %v3906 = vsel %vm3862, %v3841, %v3316
    %v3907 = vsel %vm3862, %v3842, %v3318
    %v3908 = vsel %vm3862, %v3843, %v3320
    %v3909 = vsel %vm3862, %v3844, %v3322
    %v3910 = vsel %vm3862, %v3845, %v3324
    %v3911 = vsel %vm3862, %v3846, %v3326
    %v3912 = vsel %vm3862, %v3847, %v3328
    %v3913 = vsel %vm3862, %v3848, %v3330
    %v3914 = vsel %vm3862, %v3849, %v3332
    %v3915 = vsel %vm3862, %v3850, %v3334
    %v3916 = vsel %vm3862, %v3851, %v3336
    %v3917 = vsel %vm3862, %v3852, %v3338
    %v3918 = vsel %vm3862, %v3853, %v3340
    %v3919 = vsel %vm3862, %v3854, %v3342
    %v3920 = vsel %vm3862, %v3855, %v3344
    %v3921 = vsel %vm3862, %v3856, %v3346
    %v3922 = vsel %vm3862, %v3857, %v3348
    %v3923 = vsel %vm3862, %v3858, %v3350
    %v3924 = vsel %vm3862, %v3859, %v3352
    %v3925 = vsel %vm3862, %v3860, %v3292
    %v3926 = vsel %vm3862, %v3861, %v3292
    %v3927 = vld [vmem:[%s3] sm:$0xff]
    %v3928 = vld [vmem:[%s3 + $0x8] sm:$0xff]
    %v3929 = vld [vmem:[%s3 + $0x10] sm:$0xff]
    %v3930 = vld [vmem:[%s3 + $0x18] sm:$0xff]
    %v3931 = vld [vmem:[%s3 + $0x20] sm:$0xf]
    %vm3932 = vcmask 293888
    %v3934 = vsel %vm3932, %v3863, 0
    %v3937 = vsel %vm3932, %v3864, 0
    %v3940 = vsel %vm3932, %v3865, 0
    %v3943 = vsel %vm3932, %v3866, 0
    %v3946 = vsel %vm3932, %v3867, 0
    %v3949 = vsel %vm3932, %v3868, 0
    %v3952 = vsel %vm3932, %v3869, 0
    %v3955 = vsel %vm3932, %v3870, 0
    %v3958 = vsel %vm3932, %v3871, 0
    %v3961 = vsel %vm3932, %v3872, 0
    %v3964 = vsel %vm3932, %v3873, 0
    %v3967 = vsel %vm3932, %v3874, 0
    %v3970 = vsel %vm3932, %v3875, 0
    %v3973 = vsel %vm3932, %v3876, 0
    %v3976 = vsel %vm3932, %v3877, 0
    %v3979 = vsel %vm3932, %v3878, 0
    %v3982 = vsel %vm3932, %v3879, 0
    %v3985 = vsel %vm3932, %v3880, 0
    %v3988 = vsel %vm3932, %v3881, 0
    %v3991 = vsel %vm3932, %v3882, 0
    %v3994 = vsel %vm3932, %v3883, 0
    %v3997 = vsel %vm3932, %v3884, 0
    %v4000 = vsel %vm3932, %v3885, 0
    %v4003 = vsel %vm3932, %v3886, 0
    %v4006 = vsel %vm3932, %v3887, 0
    %v4009 = vsel %vm3932, %v3888, 0
    %v4012 = vsel %vm3932, %v3889, 0
    %v4015 = vsel %vm3932, %v3890, 0
    %v4018 = vsel %vm3932, %v3891, 0
    %v4021 = vsel %vm3932, %v3892, 0
    %v4024 = vsel %vm3932, %v3893, 0
    %v4027 = vsel %vm3932, %v3894, 0
    %v4030 = vsel %vm3932, %v3895, 0
    %v4033 = vsel %vm3932, %v3896, 0
    %v4036 = vsel %vm3932, %v3897, 0
    %v4039 = vsel %vm3932, %v3898, 0
    %v4042 = vsel %vm3932, %v3899, 0
    %v4045 = vsel %vm3932, %v3900, 0
    %v4048 = vsel %vm3932, %v3901, 0
    %v4051 = vsel %vm3932, %v3902, 0
    %v4054 = vsel %vm3932, %v3903, 0
    %v4057 = vsel %vm3932, %v3904, 0
    %v4060 = vsel %vm3932, %v3905, 0
    %v4063 = vsel %vm3932, %v3906, 0
    %v4066 = vsel %vm3932, %v3907, 0
    %v4069 = vsel %vm3932, %v3908, 0
    %v4072 = vsel %vm3932, %v3909, 0
    %v4075 = vsel %vm3932, %v3910, 0
    %v4078 = vsel %vm3932, %v3911, 0
    %v4081 = vsel %vm3932, %v3912, 0
    %v4084 = vsel %vm3932, %v3913, 0
    %v4087 = vsel %vm3932, %v3914, 0
    %v4090 = vsel %vm3932, %v3915, 0
    %v4093 = vsel %vm3932, %v3916, 0
    %v4096 = vsel %vm3932, %v3917, 0
    %v4099 = vsel %vm3932, %v3918, 0
    %v4102 = vsel %vm3932, %v3919, 0
    %v4105 = vsel %vm3932, %v3920, 0
    %v4108 = vsel %vm3932, %v3921, 0
    %v4111 = vsel %vm3932, %v3922, 0
    %v4114 = vsel %vm3932, %v3923, 0
    %v4117 = vsel %vm3932, %v3924, 0
    %v4120 = vsel %vm3932, %v3925, 0
    %v4123 = vsel %vm3932, %v3926, 0
    %vm4125 = vcmask 1043456
    %v4127 = vsel %vm4125, %v3931, 0
    %4129 = vmatpush.msra.mxu0 0.0
    %4130 = vmatpush.msra.mxu0 0.0
    %4131 = vmatpush.msra.mxu0 0.0
    %4132 = vmatpush.msra.mxu0 0.0
    %4133 = vmatpush.msra.mxu0 0.0
    %4134 = vmatpush.msra.mxu0 0.0
    %4135 = vmatpush.msra.mxu0 0.0
    %4136 = vmatpush.msra.mxu0 0.0
    %4137 = vmatpush.msra.mxu0 0.0
    %4138 = vmatpush.msra.mxu0 0.0
    %4139 = vmatpush.msra.mxu0 0.0
    %4140 = vmatpush.msra.mxu0 %v4127
    %4141 = vmatpush.msra.mxu0 %v3930
    %4142 = vmatpush.msra.mxu0 %v3929
    %4143 = vmatpush.msra.mxu0 %v3928
    %4144 = vmatpush.msra.mxu0 %v3927
    %4145 = vmatmul.f32.gmra.mxu0 %v3934
    %v4146 = vpop.f32.mrf.mxu0
    %v4147 = vadd.f32 0.0, %v4146
    %4148 = vmatmul.f32.gmra.mxu0 %v3937
    %v4149 = vpop.f32.mrf.mxu0
    %v4150 = vadd.f32 0.0, %v4149
    %4151 = vmatmul.f32.gmra.mxu0 %v3940
    %v4152 = vpop.f32.mrf.mxu0
    %v4153 = vadd.f32 0.0, %v4152
    %4154 = vmatmul.f32.gmra.mxu0 %v3943
    %v4155 = vpop.f32.mrf.mxu0
    %v4156 = vadd.f32 0.0, %v4155
    %4157 = vmatmul.f32.gmra.mxu0 %v3946
    %v4158 = vpop.f32.mrf.mxu0
    %v4159 = vadd.f32 0.0, %v4158
    %4160 = vmatmul.f32.gmra.mxu0 %v3949
    %v4161 = vpop.f32.mrf.mxu0
    %v4162 = vadd.f32 0.0, %v4161
    %4163 = vmatmul.f32.gmra.mxu0 %v3952
    %v4164 = vpop.f32.mrf.mxu0
    %v4165 = vadd.f32 0.0, %v4164
    %4166 = vmatmul.f32.gmra.mxu0 %v3955
    %v4167 = vpop.f32.mrf.mxu0
    %v4168 = vadd.f32 0.0, %v4167
    %4169 = vmatmul.f32.gmra.mxu0 %v3958
    %v4170 = vpop.f32.mrf.mxu0
    %v4171 = vadd.f32 0.0, %v4170
    %4172 = vmatmul.f32.gmra.mxu0 %v3961
    %v4173 = vpop.f32.mrf.mxu0
    %v4174 = vadd.f32 0.0, %v4173
    %4175 = vmatmul.f32.gmra.mxu0 %v3964
    %v4176 = vpop.f32.mrf.mxu0
    %v4177 = vadd.f32 0.0, %v4176
    %4178 = vmatmul.f32.gmra.mxu0 %v3967
    %v4179 = vpop.f32.mrf.mxu0
    %v4180 = vadd.f32 0.0, %v4179
    %4181 = vmatmul.f32.gmra.mxu0 %v3970
    %v4182 = vpop.f32.mrf.mxu0
    %v4183 = vadd.f32 0.0, %v4182
    %4184 = vmatmul.f32.gmra.mxu0 %v3973
    %v4185 = vpop.f32.mrf.mxu0
    %v4186 = vadd.f32 0.0, %v4185
    %4187 = vmatmul.f32.gmra.mxu0 %v3976
    %v4188 = vpop.f32.mrf.mxu0
    %v4189 = vadd.f32 0.0, %v4188
    %4190 = vmatmul.f32.gmra.mxu0 %v3979
    %v4191 = vpop.f32.mrf.mxu0
    %v4192 = vadd.f32 0.0, %v4191
    %4193 = vmatmul.f32.gmra.mxu0 %v3982
    %v4194 = vpop.f32.mrf.mxu0
    %v4195 = vadd.f32 0.0, %v4194
    %4196 = vmatmul.f32.gmra.mxu0 %v3985
    %v4197 = vpop.f32.mrf.mxu0
    %v4198 = vadd.f32 0.0, %v4197
    %4199 = vmatmul.f32.gmra.mxu0 %v3988
    %v4200 = vpop.f32.mrf.mxu0
    %v4201 = vadd.f32 0.0, %v4200
    %4202 = vmatmul.f32.gmra.mxu0 %v3991
    %v4203 = vpop.f32.mrf.mxu0
    %v4204 = vadd.f32 0.0, %v4203
    %4205 = vmatmul.f32.gmra.mxu0 %v3994
    %v4206 = vpop.f32.mrf.mxu0
    %v4207 = vadd.f32 0.0, %v4206
    %4208 = vmatmul.f32.gmra.mxu0 %v3997
    %v4209 = vpop.f32.mrf.mxu0
    %v4210 = vadd.f32 0.0, %v4209
    %4211 = vmatmul.f32.gmra.mxu0 %v4000
    %v4212 = vpop.f32.mrf.mxu0
    %v4213 = vadd.f32 0.0, %v4212
    %4214 = vmatmul.f32.gmra.mxu0 %v4003
    %v4215 = vpop.f32.mrf.mxu0
    %v4216 = vadd.f32 0.0, %v4215
    %4217 = vmatmul.f32.gmra.mxu0 %v4006
    %v4218 = vpop.f32.mrf.mxu0
    %v4219 = vadd.f32 0.0, %v4218
    %4220 = vmatmul.f32.gmra.mxu0 %v4009
    %v4221 = vpop.f32.mrf.mxu0
    %v4222 = vadd.f32 0.0, %v4221
    %4223 = vmatmul.f32.gmra.mxu0 %v4012
    %v4224 = vpop.f32.mrf.mxu0
    %v4225 = vadd.f32 0.0, %v4224
    %4226 = vmatmul.f32.gmra.mxu0 %v4015
    %v4227 = vpop.f32.mrf.mxu0
    %v4228 = vadd.f32 0.0, %v4227
    %4229 = vmatmul.f32.gmra.mxu0 %v4018
    %v4230 = vpop.f32.mrf.mxu0
    %v4231 = vadd.f32 0.0, %v4230
    %4232 = vmatmul.f32.gmra.mxu0 %v4021
    %v4233 = vpop.f32.mrf.mxu0
    %v4234 = vadd.f32 0.0, %v4233
    %4235 = vmatmul.f32.gmra.mxu0 %v4024
    %v4236 = vpop.f32.mrf.mxu0
    %v4237 = vadd.f32 0.0, %v4236
    %4238 = vmatmul.f32.gmra.mxu0 %v4027
    %v4239 = vpop.f32.mrf.mxu0
    %v4240 = vadd.f32 0.0, %v4239
    %4241 = vmatmul.f32.gmra.mxu0 %v4030
    %v4242 = vpop.f32.mrf.mxu0
    %v4243 = vadd.f32 0.0, %v4242
    %4244 = vmatmul.f32.gmra.mxu0 %v4033
    %v4245 = vpop.f32.mrf.mxu0
    %v4246 = vadd.f32 0.0, %v4245
    %4247 = vmatmul.f32.gmra.mxu0 %v4036
    %v4248 = vpop.f32.mrf.mxu0
    %v4249 = vadd.f32 0.0, %v4248
    %4250 = vmatmul.f32.gmra.mxu0 %v4039
    %v4251 = vpop.f32.mrf.mxu0
    %v4252 = vadd.f32 0.0, %v4251
    %4253 = vmatmul.f32.gmra.mxu0 %v4042
    %v4254 = vpop.f32.mrf.mxu0
    %v4255 = vadd.f32 0.0, %v4254
    %4256 = vmatmul.f32.gmra.mxu0 %v4045
    %v4257 = vpop.f32.mrf.mxu0
    %v4258 = vadd.f32 0.0, %v4257
    %4259 = vmatmul.f32.gmra.mxu0 %v4048
    %v4260 = vpop.f32.mrf.mxu0
    %v4261 = vadd.f32 0.0, %v4260
    %4262 = vmatmul.f32.gmra.mxu0 %v4051
    %v4263 = vpop.f32.mrf.mxu0
    %v4264 = vadd.f32 0.0, %v4263
    %4265 = vmatmul.f32.gmra.mxu0 %v4054
    %v4266 = vpop.f32.mrf.mxu0
    %v4267 = vadd.f32 0.0, %v4266
    %4268 = vmatmul.f32.gmra.mxu0 %v4057
    %v4269 = vpop.f32.mrf.mxu0
    %v4270 = vadd.f32 0.0, %v4269
    %4271 = vmatmul.f32.gmra.mxu0 %v4060
    %v4272 = vpop.f32.mrf.mxu0
    %v4273 = vadd.f32 0.0, %v4272
    %4274 = vmatmul.f32.gmra.mxu0 %v4063
    %v4275 = vpop.f32.mrf.mxu0
    %v4276 = vadd.f32 0.0, %v4275
    %4277 = vmatmul.f32.gmra.mxu0 %v4066
    %v4278 = vpop.f32.mrf.mxu0
    %v4279 = vadd.f32 0.0, %v4278
    %4280 = vmatmul.f32.gmra.mxu0 %v4069
    %v4281 = vpop.f32.mrf.mxu0
    %v4282 = vadd.f32 0.0, %v4281
    %4283 = vmatmul.f32.gmra.mxu0 %v4072
    %v4284 = vpop.f32.mrf.mxu0
    %v4285 = vadd.f32 0.0, %v4284
    %4286 = vmatmul.f32.gmra.mxu0 %v4075
    %v4287 = vpop.f32.mrf.mxu0
    %v4288 = vadd.f32 0.0, %v4287
    %4289 = vmatmul.f32.gmra.mxu0 %v4078
    %v4290 = vpop.f32.mrf.mxu0
    %v4291 = vadd.f32 0.0, %v4290
    %4292 = vmatmul.f32.gmra.mxu0 %v4081
    %v4293 = vpop.f32.mrf.mxu0
    %v4294 = vadd.f32 0.0, %v4293
    %4295 = vmatmul.f32.gmra.mxu0 %v4084
    %v4296 = vpop.f32.mrf.mxu0
    %v4297 = vadd.f32 0.0, %v4296
    %4298 = vmatmul.f32.gmra.mxu0 %v4087
    %v4299 = vpop.f32.mrf.mxu0
    %v4300 = vadd.f32 0.0, %v4299
    %4301 = vmatmul.f32.gmra.mxu0 %v4090
    %v4302 = vpop.f32.mrf.mxu0
    %v4303 = vadd.f32 0.0, %v4302
    %4304 = vmatmul.f32.gmra.mxu0 %v4093
    %v4305 = vpop.f32.mrf.mxu0
    %v4306 = vadd.f32 0.0, %v4305
    %4307 = vmatmul.f32.gmra.mxu0 %v4096
    %v4308 = vpop.f32.mrf.mxu0
    %v4309 = vadd.f32 0.0, %v4308
    %4310 = vmatmul.f32.gmra.mxu0 %v4099
    %v4311 = vpop.f32.mrf.mxu0
    %v4312 = vadd.f32 0.0, %v4311
    %4313 = vmatmul.f32.gmra.mxu0 %v4102
    %v4314 = vpop.f32.mrf.mxu0
    %v4315 = vadd.f32 0.0, %v4314
    %4316 = vmatmul.f32.gmra.mxu0 %v4105
    %v4317 = vpop.f32.mrf.mxu0
    %v4318 = vadd.f32 0.0, %v4317
    %4319 = vmatmul.f32.gmra.mxu0 %v4108
    %v4320 = vpop.f32.mrf.mxu0
    %v4321 = vadd.f32 0.0, %v4320
    %4322 = vmatmul.f32.gmra.mxu0 %v4111
    %v4323 = vpop.f32.mrf.mxu0
    %v4324 = vadd.f32 0.0, %v4323
    %4325 = vmatmul.f32.gmra.mxu0 %v4114
    %v4326 = vpop.f32.mrf.mxu0
    %v4327 = vadd.f32 0.0, %v4326
    %4328 = vmatmul.f32.gmra.mxu0 %v4117
    %v4329 = vpop.f32.mrf.mxu0
    %v4330 = vadd.f32 0.0, %v4329
    %4331 = vmatmul.f32.gmra.mxu0 %v4120
    %v4332 = vpop.f32.mrf.mxu0
    %v4333 = vadd.f32 0.0, %v4332
    %4334 = vmatmul.f32.gmra.mxu0 %v4123
    %v4335 = vpop.f32.mrf.mxu0
    %v4336 = vadd.f32 0.0, %v4335
    %4337 = vdwg.mxu0
    %4338 = vst [vmem:[#allocation2] sm:$0xff] %v4147
    %4339 = vst [vmem:[#allocation2 + $0x8] sm:$0xff] %v4150
    %4340 = vst [vmem:[#allocation2 + $0x10] sm:$0xff] %v4153
    %4341 = vst [vmem:[#allocation2 + $0x18] sm:$0xff] %v4156
    %4342 = vst [vmem:[#allocation2 + $0x20] sm:$0xff] %v4159
    %4343 = vst [vmem:[#allocation2 + $0x28] sm:$0xff] %v4162
    %4344 = vst [vmem:[#allocation2 + $0x30] sm:$0xff] %v4165
    %4345 = vst [vmem:[#allocation2 + $0x38] sm:$0xff] %v4168
    %4346 = vst [vmem:[#allocation2 + $0x40] sm:$0xff] %v4171
    %4347 = vst [vmem:[#allocation2 + $0x48] sm:$0xff] %v4174
    %4348 = vst [vmem:[#allocation2 + $0x50] sm:$0xff] %v4177
    %4349 = vst [vmem:[#allocation2 + $0x58] sm:$0xff] %v4180
    %4350 = vst [vmem:[#allocation2 + $0x60] sm:$0xff] %v4183
    %4351 = vst [vmem:[#allocation2 + $0x68] sm:$0xff] %v4186
    %4352 = vst [vmem:[#allocation2 + $0x70] sm:$0xff] %v4189
    %4353 = vst [vmem:[#allocation2 + $0x78] sm:$0xff] %v4192
    %4354 = vst [vmem:[#allocation2 + $0x80] sm:$0xff] %v4195
    %4355 = vst [vmem:[#allocation2 + $0x88] sm:$0xff] %v4198
    %4356 = vst [vmem:[#allocation2 + $0x90] sm:$0xff] %v4201
    %4357 = vst [vmem:[#allocation2 + $0x98] sm:$0xff] %v4204
    %4358 = vst [vmem:[#allocation2 + $0xa0] sm:$0xff] %v4207
    %4359 = vst [vmem:[#allocation2 + $0xa8] sm:$0xff] %v4210
    %4360 = vst [vmem:[#allocation2 + $0xb0] sm:$0xff] %v4213
    %4361 = vst [vmem:[#allocation2 + $0xb8] sm:$0xff] %v4216
    %4362 = vst [vmem:[#allocation2 + $0xc0] sm:$0xff] %v4219
    %4363 = vst [vmem:[#allocation2 + $0xc8] sm:$0xff] %v4222
    %4364 = vst [vmem:[#allocation2 + $0xd0] sm:$0xff] %v4225
    %4365 = vst [vmem:[#allocation2 + $0xd8] sm:$0xff] %v4228
    %4366 = vst [vmem:[#allocation2 + $0xe0] sm:$0xff] %v4231
    %4367 = vst [vmem:[#allocation2 + $0xe8] sm:$0xff] %v4234
    %4368 = vst [vmem:[#allocation2 + $0xf0] sm:$0xff] %v4237
    %4369 = vst [vmem:[#allocation2 + $0xf8] sm:$0xff] %v4240
    %4370 = vst [vmem:[#allocation2 + $0x100] sm:$0xff] %v4243
    %4371 = vst [vmem:[#allocation2 + $0x108] sm:$0xff] %v4246
    %4372 = vst [vmem:[#allocation2 + $0x110] sm:$0xff] %v4249
    %4373 = vst [vmem:[#allocation2 + $0x118] sm:$0xff] %v4252
    %4374 = vst [vmem:[#allocation2 + $0x120] sm:$0xff] %v4255
    %4375 = vst [vmem:[#allocation2 + $0x128] sm:$0xff] %v4258
    %4376 = vst [vmem:[#allocation2 + $0x130] sm:$0xff] %v4261
    %4377 = vst [vmem:[#allocation2 + $0x138] sm:$0xff] %v4264
    %4378 = vst [vmem:[#allocation2 + $0x140] sm:$0xff] %v4267
    %4379 = vst [vmem:[#allocation2 + $0x148] sm:$0xff] %v4270
    %4380 = vst [vmem:[#allocation2 + $0x150] sm:$0xff] %v4273
    %4381 = vst [vmem:[#allocation2 + $0x158] sm:$0xff] %v4276
    %4382 = vst [vmem:[#allocation2 + $0x160] sm:$0xff] %v4279
    %4383 = vst [vmem:[#allocation2 + $0x168] sm:$0xff] %v4282
    %4384 = vst [vmem:[#allocation2 + $0x170] sm:$0xff] %v4285
    %4385 = vst [vmem:[#allocation2 + $0x178] sm:$0xff] %v4288
    %4386 = vst [vmem:[#allocation2 + $0x180] sm:$0xff] %v4291
    %4387 = vst [vmem:[#allocation2 + $0x188] sm:$0xff] %v4294
    %4388 = vst [vmem:[#allocation2 + $0x190] sm:$0xff] %v4297
    %4389 = vst [vmem:[#allocation2 + $0x198] sm:$0xff] %v4300
    %4390 = vst [vmem:[#allocation2 + $0x1a0] sm:$0xff] %v4303
    %4391 = vst [vmem:[#allocation2 + $0x1a8] sm:$0xff] %v4306
    %4392 = vst [vmem:[#allocation2 + $0x1b0] sm:$0xff] %v4309
    %4393 = vst [vmem:[#allocation2 + $0x1b8] sm:$0xff] %v4312
    %4394 = vst [vmem:[#allocation2 + $0x1c0] sm:$0xff] %v4315
    %4395 = vst [vmem:[#allocation2 + $0x1c8] sm:$0xff] %v4318
    %4396 = vst [vmem:[#allocation2 + $0x1d0] sm:$0xff] %v4321
    %4397 = vst [vmem:[#allocation2 + $0x1d8] sm:$0xff] %v4324
    %4398 = vst [vmem:[#allocation2 + $0x1e0] sm:$0xff] %v4327
    %4399 = vst [vmem:[#allocation2 + $0x1e8] sm:$0xff] %v4330
    %4400 = vst [vmem:[#allocation2 + $0x1f0] sm:$0xff] %v4333
    %4401 = vst [vmem:[#allocation2 + $0x1f8] sm:$0xff] %v4336
    // Predicated region
    $region26: #{tpu_custom_call.1} parent=1 // pred_check
      _
    $region27: #{tpu_custom_call.1} parent=1 // pred_check_branch
      %4403 = sbr.rel (0) target = $region29
    $region28: #{tpu_custom_call.1} parent=1 // pred_region
      %4405 = vsyncadd [#allocation3], 0
      %s4406 = sshll.u32 [#allocation2], 4
      %s4407 = int_to_ptr.vmem [resolvable:$true] %s4406
      %s4408 = sshll.u32 %s6, 4
      %s4409 = int_to_ptr.hbm [resolvable:$true] %s4408
      %4414 = dma.vmem_to_hbm [thread:$0]  %s4407, 8192, %s4409, [#allocation3], 128, 128, 8
    $region29: #{tpu_custom_call.1} parent=1 // pred_fallthru
      _
    // Predicated region
    $region30: #{tpu_custom_call.1} parent=1 // pred_check
      _
    $region31: #{tpu_custom_call.1} parent=1 // pred_check_branch
      %4416 = sbr.rel (0) target = $region33
    $region32: #{tpu_custom_call.1} parent=1 // pred_region
      %4418 = dma.done [#allocation3], 8192
    $region33: #{tpu_custom_call.1} parent=1 // pred_fallthru
      _
    %4419 = vsyncpa [#allocation3], 1

</llo_original>
